<compile_context>
chip_gen: v7x
topology: tpu7x:2x2x1
jax: 0.10.0
libtpu: 0.0.40
codegen_flags: <defaults>
</compile_context>

<pallas_src>
import functools

import jax
import jax.numpy as jnp
from jax.experimental import pallas as pl
from jax.experimental.pallas import tpu as pltpu

BATCH = 2          # stands in for the hard-coded batch_size = 100 in the reference
TYPE_NUM = 855     # fc = Linear(1176, type_num) exists in __init__ but is unused in forward()

LANE = 128
MAX_TM = 2048      # M-tile size (lanes); keeps per-block VMEM < ~2 MB even at batch 100


def _round_up(x, m):
    return (x + m - 1) // m * m


# --------------------------------------------------------------------------
# Pallas kernels
# --------------------------------------------------------------------------
def _conv_pool_relu_kernel(x_ref, w_ref, b_ref, o_ref):
    """Fused 3x3 valid conv + 2x2/2 maxpool + bias + ReLU (lane-dense output).

    x_ref : (4, K, TM) bf16  im2col patches, one (K, M-tile) matrix per pool tap
    w_ref : (Co, K)    bf16  conv weight as a matmul LHS
    b_ref : (Co, 1)    f32   bias (broadcast over lanes)
    o_ref : (Co, TM)   bf16
    """
    w = w_ref[...]
    acc = jnp.dot(w, x_ref[0], preferred_element_type=jnp.float32)
    for t in range(1, 4):
        acc = jnp.maximum(acc, jnp.dot(w, x_ref[t],
                                       preferred_element_type=jnp.float32))
    o_ref[...] = jnp.maximum(acc + b_ref[...], 0.0).astype(o_ref.dtype)


def _final_fused_kernel(xf_ref, xs_ref, w_ref, b_ref, o_ref):
    """Last conv/pool/relu for BOTH branches + add + sigmoid, fused.

    xf_ref / xs_ref : (4, K, M) bf16 patches for branch 'first' / 'second'
    o_ref           : (6, M)    f32 = sigmoid(cpr(first) + cpr(second))
    """
    w = w_ref[...]
    b = b_ref[...]

    def cpr(x_ref):
        acc = jnp.dot(w, x_ref[0], preferred_element_type=jnp.float32)
        for t in range(1, 4):
            acc = jnp.maximum(acc, jnp.dot(w, x_ref[t],
                                           preferred_element_type=jnp.float32))
        return jnp.maximum(acc + b, 0.0)

    o_ref[...] = jax.nn.sigmoid(cpr(xf_ref) + cpr(xs_ref))


# --------------------------------------------------------------------------
# Glue: pooled im2col (pure reshuffles, no FLOPs, no big transposes)
# --------------------------------------------------------------------------
def _im2col_pooled_taps(h):
    """h: (C, B, Hi, Wi) -> (4, C*9, B*Hp*Wp) bf16 patch matrices.

    K order = (ci, ky, kx) (matches OIHW weight reshape); M order = (b, hp, wp)
    row-major; leading 4 = 2x2 pooling tap (a, b) row-major.
    """
    C, B, Hi, Wi = h.shape
    Ho, Wo = Hi - 2, Wi - 2
    Hp, Wp = Ho // 2, Wo // 2
    shifts = jnp.stack([h[:, :, ky:ky + Ho, kx:kx + Wo]
                        for ky in range(3) for kx in range(3)], axis=1)
    shifts = shifts.reshape(C * 9, B, Ho, Wo)
    taps = []
    for a in range(2):
        for bb in range(2):
            t = shifts[:, :, a:2 * Hp:2, bb:2 * Wp:2]          # (C*9, B, Hp, Wp)
            taps.append(t.reshape(C * 9, B * Hp * Wp))
    patches = jnp.stack(taps, axis=0).astype(jnp.bfloat16)     # (4, K, M)
    return patches, (B, Hp, Wp)


def conv_pool_relu(h, w, b):
    """h: (Ci, B, Hi, Wi) bf16; w: (Co, Ci, 3, 3); b: (Co,) -> (Co, B, Hp, Wp) bf16."""
    patches, (B, Hp, Wp) = _im2col_pooled_taps(h)
    Co, Ci = w.shape[0], w.shape[1]
    K = Ci * 9
    M = B * Hp * Wp
    tm = min(MAX_TM, _round_up(M, LANE))
    m_pad = _round_up(M, tm)
    if m_pad != M:
        patches = jnp.pad(patches, ((0, 0), (0, 0), (0, m_pad - M)))
    w_mat = w.reshape(Co, K).astype(jnp.bfloat16)
    b_mat = b.reshape(Co, 1).astype(jnp.float32)
    out = pl.pallas_call(
        _conv_pool_relu_kernel,
        out_shape=jax.ShapeDtypeStruct((Co, m_pad), jnp.bfloat16),
        grid=(m_pad // tm,),
        in_specs=[
            pl.BlockSpec((4, K, tm), lambda i: (0, 0, i)),
            pl.BlockSpec((Co, K), lambda i: (0, 0)),
            pl.BlockSpec((Co, 1), lambda i: (0, 0)),
        ],
        out_specs=pl.BlockSpec((Co, tm), lambda i: (0, i)),
        compiler_params=pltpu.CompilerParams(
            dimension_semantics=("parallel",),
            vmem_limit_bytes=32 * 1024 * 1024,
        ),
    )(patches, w_mat, b_mat)
    return out[:, :M].reshape(Co, B, Hp, Wp)


def final_layer_fused(h3, w, b, n):
    """Last conv layer for both branches + add + sigmoid.

    h3: (12, 2N, Hi, Wi) bf16 with the two branches concatenated along batch.
    Returns (N, Co*Hp*Wp) f32 in PyTorch .view (c, h, w) flatten order.
    """
    Co, Ci = w.shape[0], w.shape[1]
    K = Ci * 9
    pf, (_, Hp, Wp) = _im2col_pooled_taps(h3[:, :n])
    ps, _ = _im2col_pooled_taps(h3[:, n:])
    M = n * Hp * Wp
    m_pad = _round_up(M, LANE)
    if m_pad != M:
        pf = jnp.pad(pf, ((0, 0), (0, 0), (0, m_pad - M)))
        ps = jnp.pad(ps, ((0, 0), (0, 0), (0, m_pad - M)))
    w_mat = w.reshape(Co, K).astype(jnp.bfloat16)
    b_mat = b.reshape(Co, 1).astype(jnp.float32)
    out = pl.pallas_call(
        _final_fused_kernel,
        out_shape=jax.ShapeDtypeStruct((Co, m_pad), jnp.float32),
        grid=(1,),
        in_specs=[
            pl.BlockSpec((4, K, m_pad), lambda i: (0, 0, 0)),
            pl.BlockSpec((4, K, m_pad), lambda i: (0, 0, 0)),
            pl.BlockSpec((Co, K), lambda i: (0, 0)),
            pl.BlockSpec((Co, 1), lambda i: (0, 0)),
        ],
        out_specs=pl.BlockSpec((Co, m_pad), lambda i: (0, 0)),
        compiler_params=pltpu.CompilerParams(
            vmem_limit_bytes=32 * 1024 * 1024,
        ),
    )(pf, ps, w_mat, b_mat)
    out = out[:, :M].reshape(Co, n, Hp * Wp)                   # (Co, N, HW)
    return jnp.transpose(out, (1, 0, 2)).reshape(n, Co * Hp * Wp)  # (N, F), CHW order


# --------------------------------------------------------------------------
# Model
# --------------------------------------------------------------------------
def init_params(key):
    """Deterministic init mimicking PyTorch's default uniform(-1/sqrt(fan_in), ...)."""
    def conv_init(k, co, ci, ks=3):
        kw, kb = jax.random.split(k)
        bound = 1.0 / (ci * ks * ks) ** 0.5
        w = jax.random.uniform(kw, (co, ci, ks, ks), jnp.float32, -bound, bound)
        b = jax.random.uniform(kb, (co,), jnp.float32, -bound, bound)
        return w, b

    k1, k2, k3, k4 = jax.random.split(key, 4)
    # TODO(synk): self.fc (Linear(1176, TYPE_NUM)) is never used in forward(),
    # so its parameters are intentionally not materialized here.
    return {
        "conv1": conv_init(k1, 6, 1),
        "conv2": conv_init(k2, 6, 6),
        "conv3": conv_init(k3, 12, 6),
        "conv4": conv_init(k4, 6, 12),
    }


def coon_forward(params, x):
    """x: (N, 2, H, W) float32.  Returns sigmoid(flat(branch0) + flat(branch1))."""
    n = x.shape[0]
    # Merge the two branches along the batch dim (shared conv weights) and go
    # channel-major (C, B, H, W) + bf16 for all intermediate activations.
    h = jnp.concatenate([x[:, 0], x[:, 1]], axis=0)[None].astype(jnp.bfloat16)
    for name in ("conv1", "conv2", "conv3"):
        w, b = params[name]
        h = conv_pool_relu(h, w, b)
    w4, b4 = params["conv4"]
    return final_layer_fused(h, w4, b4, n)


# --------------------------------------------------------------------------
# Pure-JAX f32 reference (for a correctness check only)
# --------------------------------------------------------------------------
def _ref_conv_pool_relu(x, w, b):
    y = jax.lax.conv_general_dilated(
        x, w, (1, 1), "VALID",
        dimension_numbers=("NCHW", "OIHW", "NCHW"),
        precision=jax.lax.Precision.HIGHEST)
    y = y + b[None, :, None, None]
    y = jax.lax.reduce_window(y, -jnp.inf, jax.lax.max,
                              (1, 1, 2, 2), (1, 1, 2, 2), "VALID")
    return jnp.maximum(y, 0.0)


def ref_forward(params, x):
    def branch(img):
        h = img
        for name in ("conv1", "conv2", "conv3", "conv4"):
            h = _ref_conv_pool_relu(h, *params[name])
        return h.reshape(h.shape[0], -1)
    return jax.nn.sigmoid(branch(x[:, 0:1]) + branch(x[:, 1:2]))


# --------------------------------------------------------------------------
if __name__ == "__main__":
    key = jax.random.PRNGKey(0)
    k_params, k_x = jax.random.split(key)
    params = init_params(k_params)

    # Small input consistent with the module: (N, 2, 62, 62) ->
    # conv/pool stack: 62 -> 30 -> 14 -> 6 -> 2, so flat features = 6*2*2 = 24.
    x = jax.random.normal(k_x, (BATCH, 2, 62, 62), jnp.float32)

    fwd = jax.jit(functools.partial(coon_forward, params))
    y = jax.block_until_ready(fwd(x))

    assert y.shape == (BATCH, 24), y.shape

    y_ref = ref_forward(params, x)
    max_err = float(jnp.max(jnp.abs(y - y_ref)))
    if max_err > 2e-2:
        raise SystemExit(f"mismatch vs reference: max abs err = {max_err}")

    print("KERNEL_OK")
</pallas_src>

<mosaic_0001>
module attributes {stable_mosaic.version = 11 : i64} {
  func.func @_conv_pool_relu_kernel(%arg0: i32, %arg1: memref<4x9x2048xbf16, #tpu.memory_space<vmem>>, %arg2: memref<6x9xbf16, #tpu.memory_space<vmem>>, %arg3: memref<6x1xf32, #tpu.memory_space<vmem>>, %arg4: memref<6x2048xbf16, #tpu.memory_space<vmem>>) attributes {dimension_semantics = [#tpu.dimension_semantics<parallel>], iteration_bounds = array<i64: 2>, scalar_prefetch = 0 : i64, scratch_operands = 0 : i64, tpu.core_type = #tpu.core_type<tc>, window_params = [{transform_indices = @transform_0, window_bounds = array<i64: 4, 9, 2048>}, {pipeline_mode = #tpu.pipeline_mode<synchronous>, transform_indices = @transform_1, window_bounds = array<i64: 6, 9>}, {pipeline_mode = #tpu.pipeline_mode<synchronous>, transform_indices = @transform_2, window_bounds = array<i64: 6, 1>}, {transform_indices = @transform_3, window_bounds = array<i64: 6, 2048>}]} {
    %c0 = arith.constant 0 : index
    %c0_0 = arith.constant 0 : index
    %0 = vector.load %arg2[%c0, %c0_0] : memref<6x9xbf16, #tpu.memory_space<vmem>>, vector<6x9xbf16>
    %c0_1 = arith.constant 0 : index
    %c0_2 = arith.constant 0 : index
    %c0_3 = arith.constant 0 : index
    %1 = vector.load %arg1[%c0_1, %c0_2, %c0_3] : memref<4x9x2048xbf16, #tpu.memory_space<vmem>>, vector<1x9x2048xbf16>
    %2 = vector.shape_cast %1 : vector<1x9x2048xbf16> to vector<9x2048xbf16>
    %cst = arith.constant dense<0.000000e+00> : vector<6x2048xf32>
    %3 = tpu.matmul %0, %2, %cst {dimension_numbers = #tpu.dot_dimension_numbers<[1], [0], [0], [1], [0, 0, 1, 1], [], []>} : vector<6x9xbf16>, vector<9x2048xbf16>, vector<6x2048xf32> -> vector<6x2048xf32>
    %c1 = arith.constant 1 : index
    %c0_4 = arith.constant 0 : index
    %c0_5 = arith.constant 0 : index
    %4 = vector.load %arg1[%c1, %c0_4, %c0_5] : memref<4x9x2048xbf16, #tpu.memory_space<vmem>>, vector<1x9x2048xbf16>
    %5 = vector.shape_cast %4 : vector<1x9x2048xbf16> to vector<9x2048xbf16>
    %cst_6 = arith.constant dense<0.000000e+00> : vector<6x2048xf32>
    %6 = tpu.matmul %0, %5, %cst_6 {dimension_numbers = #tpu.dot_dimension_numbers<[1], [0], [0], [1], [0, 0, 1, 1], [], []>} : vector<6x9xbf16>, vector<9x2048xbf16>, vector<6x2048xf32> -> vector<6x2048xf32>
    %7 = arith.maximumf %3, %6 : vector<6x2048xf32>
    %c2 = arith.constant 2 : index
    %c0_7 = arith.constant 0 : index
    %c0_8 = arith.constant 0 : index
    %8 = vector.load %arg1[%c2, %c0_7, %c0_8] : memref<4x9x2048xbf16, #tpu.memory_space<vmem>>, vector<1x9x2048xbf16>
    %9 = vector.shape_cast %8 : vector<1x9x2048xbf16> to vector<9x2048xbf16>
    %cst_9 = arith.constant dense<0.000000e+00> : vector<6x2048xf32>
    %10 = tpu.matmul %0, %9, %cst_9 {dimension_numbers = #tpu.dot_dimension_numbers<[1], [0], [0], [1], [0, 0, 1, 1], [], []>} : vector<6x9xbf16>, vector<9x2048xbf16>, vector<6x2048xf32> -> vector<6x2048xf32>
    %11 = arith.maximumf %7, %10 : vector<6x2048xf32>
    %c3 = arith.constant 3 : index
    %c0_10 = arith.constant 0 : index
    %c0_11 = arith.constant 0 : index
    %12 = vector.load %arg1[%c3, %c0_10, %c0_11] : memref<4x9x2048xbf16, #tpu.memory_space<vmem>>, vector<1x9x2048xbf16>
    %13 = vector.shape_cast %12 : vector<1x9x2048xbf16> to vector<9x2048xbf16>
    %cst_12 = arith.constant dense<0.000000e+00> : vector<6x2048xf32>
    %14 = tpu.matmul %0, %13, %cst_12 {dimension_numbers = #tpu.dot_dimension_numbers<[1], [0], [0], [1], [0, 0, 1, 1], [], []>} : vector<6x9xbf16>, vector<9x2048xbf16>, vector<6x2048xf32> -> vector<6x2048xf32>
    %15 = arith.maximumf %11, %14 : vector<6x2048xf32>
    %c0_13 = arith.constant 0 : index
    %c0_14 = arith.constant 0 : index
    %16 = vector.load %arg3[%c0_13, %c0_14] : memref<6x1xf32, #tpu.memory_space<vmem>>, vector<6x1xf32>
    %17 = vector.broadcast %16 : vector<6x1xf32> to vector<6x2048xf32>
    %18 = arith.addf %15, %17 : vector<6x2048xf32>
    %cst_15 = arith.constant 0.000000e+00 : f32
    %19 = vector.broadcast %cst_15 : f32 to vector<6x2048xf32>
    %20 = arith.maximumf %18, %19 : vector<6x2048xf32>
    %21 = arith.truncf %20 : vector<6x2048xf32> to vector<6x2048xbf16>
    %c0_16 = arith.constant 0 : index
    %c0_17 = arith.constant 0 : index
    %22 = vector.load %arg4[%c0_16, %c0_17] : memref<6x2048xbf16, #tpu.memory_space<vmem>>, vector<6x2048xbf16>
    tpu.vector_store %arg4[%c0_16, %c0_17], %21 {strides = array<i32>} : memref<6x2048xbf16, #tpu.memory_space<vmem>>, vector<6x2048xbf16>,
    return
  }
  func.func @transform_0(%arg0: i32) -> (i32, i32, i32) {
    %c0_i32 = arith.constant 0 : i32
    %c0_i32_0 = arith.constant 0 : i32
    %c0_i32_1 = arith.constant 0 : i32
    return %c0_i32, %c0_i32_0, %arg0 : i32, i32, i32
  }
  func.func @transform_1(%arg0: i32) -> (i32, i32) {
    %c0_i32 = arith.constant 0 : i32
    %c0_i32_0 = arith.constant 0 : i32
    %c0_i32_1 = arith.constant 0 : i32
    return %c0_i32, %c0_i32_0 : i32, i32
  }
  func.func @transform_2(%arg0: i32) -> (i32, i32) {
    %c0_i32 = arith.constant 0 : i32
    %c0_i32_0 = arith.constant 0 : i32
    %c0_i32_1 = arith.constant 0 : i32
    return %c0_i32, %c0_i32_0 : i32, i32
  }
  func.func @transform_3(%arg0: i32) -> (i32, i32) {
    %c0_i32 = arith.constant 0 : i32
    %c0_i32_0 = arith.constant 0 : i32
    return %c0_i32, %arg0 : i32, i32
  }
}

module attributes {stable_mosaic.version = 11 : i64} {
  func.func @_conv_pool_relu_kernel(%arg0: i32, %arg1: memref<4x54x896xbf16, #tpu.memory_space<vmem>>, %arg2: memref<6x54xbf16, #tpu.memory_space<vmem>>, %arg3: memref<6x1xf32, #tpu.memory_space<vmem>>, %arg4: memref<6x896xbf16, #tpu.memory_space<vmem>>) attributes {dimension_semantics = [#tpu.dimension_semantics<parallel>], iteration_bounds = array<i64: 1>, scalar_prefetch = 0 : i64, scratch_operands = 0 : i64, tpu.core_type = #tpu.core_type<tc>, window_params = [{transform_indices = @transform_0, window_bounds = array<i64: 4, 54, 896>}, {pipeline_mode = #tpu.pipeline_mode<synchronous>, transform_indices = @transform_1, window_bounds = array<i64: 6, 54>}, {pipeline_mode = #tpu.pipeline_mode<synchronous>, transform_indices = @transform_2, window_bounds = array<i64: 6, 1>}, {transform_indices = @transform_3, window_bounds = array<i64: 6, 896>}]} {
    %c0 = arith.constant 0 : index
    %c0_0 = arith.constant 0 : index
    %0 = vector.load %arg2[%c0, %c0_0] : memref<6x54xbf16, #tpu.memory_space<vmem>>, vector<6x54xbf16>
    %c0_1 = arith.constant 0 : index
    %c0_2 = arith.constant 0 : index
    %c0_3 = arith.constant 0 : index
    %1 = vector.load %arg1[%c0_1, %c0_2, %c0_3] : memref<4x54x896xbf16, #tpu.memory_space<vmem>>, vector<1x54x896xbf16>
    %2 = vector.shape_cast %1 : vector<1x54x896xbf16> to vector<54x896xbf16>
    %cst = arith.constant dense<0.000000e+00> : vector<6x896xf32>
    %3 = tpu.matmul %0, %2, %cst {dimension_numbers = #tpu.dot_dimension_numbers<[1], [0], [0], [1], [0, 0, 1, 1], [], []>} : vector<6x54xbf16>, vector<54x896xbf16>, vector<6x896xf32> -> vector<6x896xf32>
    %c1 = arith.constant 1 : index
    %c0_4 = arith.constant 0 : index
    %c0_5 = arith.constant 0 : index
    %4 = vector.load %arg1[%c1, %c0_4, %c0_5] : memref<4x54x896xbf16, #tpu.memory_space<vmem>>, vector<1x54x896xbf16>
    %5 = vector.shape_cast %4 : vector<1x54x896xbf16> to vector<54x896xbf16>
    %cst_6 = arith.constant dense<0.000000e+00> : vector<6x896xf32>
    %6 = tpu.matmul %0, %5, %cst_6 {dimension_numbers = #tpu.dot_dimension_numbers<[1], [0], [0], [1], [0, 0, 1, 1], [], []>} : vector<6x54xbf16>, vector<54x896xbf16>, vector<6x896xf32> -> vector<6x896xf32>
    %7 = arith.maximumf %3, %6 : vector<6x896xf32>
    %c2 = arith.constant 2 : index
    %c0_7 = arith.constant 0 : index
    %c0_8 = arith.constant 0 : index
    %8 = vector.load %arg1[%c2, %c0_7, %c0_8] : memref<4x54x896xbf16, #tpu.memory_space<vmem>>, vector<1x54x896xbf16>
    %9 = vector.shape_cast %8 : vector<1x54x896xbf16> to vector<54x896xbf16>
    %cst_9 = arith.constant dense<0.000000e+00> : vector<6x896xf32>
    %10 = tpu.matmul %0, %9, %cst_9 {dimension_numbers = #tpu.dot_dimension_numbers<[1], [0], [0], [1], [0, 0, 1, 1], [], []>} : vector<6x54xbf16>, vector<54x896xbf16>, vector<6x896xf32> -> vector<6x896xf32>
    %11 = arith.maximumf %7, %10 : vector<6x896xf32>
    %c3 = arith.constant 3 : index
    %c0_10 = arith.constant 0 : index
    %c0_11 = arith.constant 0 : index
    %12 = vector.load %arg1[%c3, %c0_10, %c0_11] : memref<4x54x896xbf16, #tpu.memory_space<vmem>>, vector<1x54x896xbf16>
    %13 = vector.shape_cast %12 : vector<1x54x896xbf16> to vector<54x896xbf16>
    %cst_12 = arith.constant dense<0.000000e+00> : vector<6x896xf32>
    %14 = tpu.matmul %0, %13, %cst_12 {dimension_numbers = #tpu.dot_dimension_numbers<[1], [0], [0], [1], [0, 0, 1, 1], [], []>} : vector<6x54xbf16>, vector<54x896xbf16>, vector<6x896xf32> -> vector<6x896xf32>
    %15 = arith.maximumf %11, %14 : vector<6x896xf32>
    %c0_13 = arith.constant 0 : index
    %c0_14 = arith.constant 0 : index
    %16 = vector.load %arg3[%c0_13, %c0_14] : memref<6x1xf32, #tpu.memory_space<vmem>>, vector<6x1xf32>
    %17 = vector.broadcast %16 : vector<6x1xf32> to vector<6x896xf32>
    %18 = arith.addf %15, %17 : vector<6x896xf32>
    %cst_15 = arith.constant 0.000000e+00 : f32
    %19 = vector.broadcast %cst_15 : f32 to vector<6x896xf32>
    %20 = arith.maximumf %18, %19 : vector<6x896xf32>
    %21 = arith.truncf %20 : vector<6x896xf32> to vector<6x896xbf16>
    %c0_16 = arith.constant 0 : index
    %c0_17 = arith.constant 0 : index
    %22 = vector.load %arg4[%c0_16, %c0_17] : memref<6x896xbf16, #tpu.memory_space<vmem>>, vector<6x896xbf16>
    tpu.vector_store %arg4[%c0_16, %c0_17], %21 {strides = array<i32>} : memref<6x896xbf16, #tpu.memory_space<vmem>>, vector<6x896xbf16>,
    return
  }
  func.func @transform_0(%arg0: i32) -> (i32, i32, i32) {
    %c0_i32 = arith.constant 0 : i32
    %c0_i32_0 = arith.constant 0 : i32
    %c0_i32_1 = arith.constant 0 : i32
    return %c0_i32, %c0_i32_0, %arg0 : i32, i32, i32
  }
  func.func @transform_1(%arg0: i32) -> (i32, i32) {
    %c0_i32 = arith.constant 0 : i32
    %c0_i32_0 = arith.constant 0 : i32
    %c0_i32_1 = arith.constant 0 : i32
    return %c0_i32, %c0_i32_0 : i32, i32
  }
  func.func @transform_2(%arg0: i32) -> (i32, i32) {
    %c0_i32 = arith.constant 0 : i32
    %c0_i32_0 = arith.constant 0 : i32
    %c0_i32_1 = arith.constant 0 : i32
    return %c0_i32, %c0_i32_0 : i32, i32
  }
  func.func @transform_3(%arg0: i32) -> (i32, i32) {
    %c0_i32 = arith.constant 0 : i32
    %c0_i32_0 = arith.constant 0 : i32
    return %c0_i32, %arg0 : i32, i32
  }
}

module attributes {stable_mosaic.version = 11 : i64} {
  func.func @_conv_pool_relu_kernel(%arg0: i32, %arg1: memref<4x54x256xbf16, #tpu.memory_space<vmem>>, %arg2: memref<12x54xbf16, #tpu.memory_space<vmem>>, %arg3: memref<12x1xf32, #tpu.memory_space<vmem>>, %arg4: memref<12x256xbf16, #tpu.memory_space<vmem>>) attributes {dimension_semantics = [#tpu.dimension_semantics<parallel>], iteration_bounds = array<i64: 1>, scalar_prefetch = 0 : i64, scratch_operands = 0 : i64, tpu.core_type = #tpu.core_type<tc>, window_params = [{transform_indices = @transform_0, window_bounds = array<i64: 4, 54, 256>}, {pipeline_mode = #tpu.pipeline_mode<synchronous>, transform_indices = @transform_1, window_bounds = array<i64: 12, 54>}, {pipeline_mode = #tpu.pipeline_mode<synchronous>, transform_indices = @transform_2, window_bounds = array<i64: 12, 1>}, {transform_indices = @transform_3, window_bounds = array<i64: 12, 256>}]} {
    %c0 = arith.constant 0 : index
    %c0_0 = arith.constant 0 : index
    %0 = vector.load %arg2[%c0, %c0_0] : memref<12x54xbf16, #tpu.memory_space<vmem>>, vector<12x54xbf16>
    %c0_1 = arith.constant 0 : index
    %c0_2 = arith.constant 0 : index
    %c0_3 = arith.constant 0 : index
    %1 = vector.load %arg1[%c0_1, %c0_2, %c0_3] : memref<4x54x256xbf16, #tpu.memory_space<vmem>>, vector<1x54x256xbf16>
    %2 = vector.shape_cast %1 : vector<1x54x256xbf16> to vector<54x256xbf16>
    %cst = arith.constant dense<0.000000e+00> : vector<12x256xf32>
    %3 = tpu.matmul %0, %2, %cst {dimension_numbers = #tpu.dot_dimension_numbers<[1], [0], [0], [1], [0, 0, 1, 1], [], []>} : vector<12x54xbf16>, vector<54x256xbf16>, vector<12x256xf32> -> vector<12x256xf32>
    %c1 = arith.constant 1 : index
    %c0_4 = arith.constant 0 : index
    %c0_5 = arith.constant 0 : index
    %4 = vector.load %arg1[%c1, %c0_4, %c0_5] : memref<4x54x256xbf16, #tpu.memory_space<vmem>>, vector<1x54x256xbf16>
    %5 = vector.shape_cast %4 : vector<1x54x256xbf16> to vector<54x256xbf16>
    %cst_6 = arith.constant dense<0.000000e+00> : vector<12x256xf32>
    %6 = tpu.matmul %0, %5, %cst_6 {dimension_numbers = #tpu.dot_dimension_numbers<[1], [0], [0], [1], [0, 0, 1, 1], [], []>} : vector<12x54xbf16>, vector<54x256xbf16>, vector<12x256xf32> -> vector<12x256xf32>
    %7 = arith.maximumf %3, %6 : vector<12x256xf32>
    %c2 = arith.constant 2 : index
    %c0_7 = arith.constant 0 : index
    %c0_8 = arith.constant 0 : index
    %8 = vector.load %arg1[%c2, %c0_7, %c0_8] : memref<4x54x256xbf16, #tpu.memory_space<vmem>>, vector<1x54x256xbf16>
    %9 = vector.shape_cast %8 : vector<1x54x256xbf16> to vector<54x256xbf16>
    %cst_9 = arith.constant dense<0.000000e+00> : vector<12x256xf32>
    %10 = tpu.matmul %0, %9, %cst_9 {dimension_numbers = #tpu.dot_dimension_numbers<[1], [0], [0], [1], [0, 0, 1, 1], [], []>} : vector<12x54xbf16>, vector<54x256xbf16>, vector<12x256xf32> -> vector<12x256xf32>
    %11 = arith.maximumf %7, %10 : vector<12x256xf32>
    %c3 = arith.constant 3 : index
    %c0_10 = arith.constant 0 : index
    %c0_11 = arith.constant 0 : index
    %12 = vector.load %arg1[%c3, %c0_10, %c0_11] : memref<4x54x256xbf16, #tpu.memory_space<vmem>>, vector<1x54x256xbf16>
    %13 = vector.shape_cast %12 : vector<1x54x256xbf16> to vector<54x256xbf16>
    %cst_12 = arith.constant dense<0.000000e+00> : vector<12x256xf32>
    %14 = tpu.matmul %0, %13, %cst_12 {dimension_numbers = #tpu.dot_dimension_numbers<[1], [0], [0], [1], [0, 0, 1, 1], [], []>} : vector<12x54xbf16>, vector<54x256xbf16>, vector<12x256xf32> -> vector<12x256xf32>
    %15 = arith.maximumf %11, %14 : vector<12x256xf32>
    %c0_13 = arith.constant 0 : index
    %c0_14 = arith.constant 0 : index
    %16 = vector.load %arg3[%c0_13, %c0_14] : memref<12x1xf32, #tpu.memory_space<vmem>>, vector<12x1xf32>
    %17 = vector.broadcast %16 : vector<12x1xf32> to vector<12x256xf32>
    %18 = arith.addf %15, %17 : vector<12x256xf32>
    %cst_15 = arith.constant 0.000000e+00 : f32
    %19 = vector.broadcast %cst_15 : f32 to vector<12x256xf32>
    %20 = arith.maximumf %18, %19 : vector<12x256xf32>
    %21 = arith.truncf %20 : vector<12x256xf32> to vector<12x256xbf16>
    %c0_16 = arith.constant 0 : index
    %c0_17 = arith.constant 0 : index
    %22 = vector.load %arg4[%c0_16, %c0_17] : memref<12x256xbf16, #tpu.memory_space<vmem>>, vector<12x256xbf16>
    tpu.vector_store %arg4[%c0_16, %c0_17], %21 {strides = array<i32>} : memref<12x256xbf16, #tpu.memory_space<vmem>>, vector<12x256xbf16>,
    return
  }
  func.func @transform_0(%arg0: i32) -> (i32, i32, i32) {
    %c0_i32 = arith.constant 0 : i32
    %c0_i32_0 = arith.constant 0 : i32
    %c0_i32_1 = arith.constant 0 : i32
    return %c0_i32, %c0_i32_0, %arg0 : i32, i32, i32
  }
  func.func @transform_1(%arg0: i32) -> (i32, i32) {
    %c0_i32 = arith.constant 0 : i32
    %c0_i32_0 = arith.constant 0 : i32
    %c0_i32_1 = arith.constant 0 : i32
    return %c0_i32, %c0_i32_0 : i32, i32
  }
  func.func @transform_2(%arg0: i32) -> (i32, i32) {
    %c0_i32 = arith.constant 0 : i32
    %c0_i32_0 = arith.constant 0 : i32
    %c0_i32_1 = arith.constant 0 : i32
    return %c0_i32, %c0_i32_0 : i32, i32
  }
  func.func @transform_3(%arg0: i32) -> (i32, i32) {
    %c0_i32 = arith.constant 0 : i32
    %c0_i32_0 = arith.constant 0 : i32
    return %c0_i32, %arg0 : i32, i32
  }
}

module attributes {stable_mosaic.version = 11 : i64} {
  func.func @_final_fused_kernel(%arg0: i32, %arg1: memref<4x108x128xbf16, #tpu.memory_space<vmem>>, %arg2: memref<4x108x128xbf16, #tpu.memory_space<vmem>>, %arg3: memref<6x108xbf16, #tpu.memory_space<vmem>>, %arg4: memref<6x1xf32, #tpu.memory_space<vmem>>, %arg5: memref<6x128xf32, #tpu.memory_space<vmem>>) attributes {dimension_semantics = [#tpu.dimension_semantics<arbitrary>], iteration_bounds = array<i64: 1>, scalar_prefetch = 0 : i64, scratch_operands = 0 : i64, tpu.core_type = #tpu.core_type<tc>, window_params = [{pipeline_mode = #tpu.pipeline_mode<synchronous>, transform_indices = @transform_0, window_bounds = array<i64: 4, 108, 128>}, {pipeline_mode = #tpu.pipeline_mode<synchronous>, transform_indices = @transform_1, window_bounds = array<i64: 4, 108, 128>}, {pipeline_mode = #tpu.pipeline_mode<synchronous>, transform_indices = @transform_2, window_bounds = array<i64: 6, 108>}, {pipeline_mode = #tpu.pipeline_mode<synchronous>, transform_indices = @transform_3, window_bounds = array<i64: 6, 1>}, {pipeline_mode = #tpu.pipeline_mode<synchronous>, transform_indices = @transform_4, window_bounds = array<i64: 6, 128>}]} {
    %c0 = arith.constant 0 : index
    %c0_0 = arith.constant 0 : index
    %0 = vector.load %arg3[%c0, %c0_0] : memref<6x108xbf16, #tpu.memory_space<vmem>>, vector<6x108xbf16>
    %c0_1 = arith.constant 0 : index
    %c0_2 = arith.constant 0 : index
    %1 = vector.load %arg4[%c0_1, %c0_2] : memref<6x1xf32, #tpu.memory_space<vmem>>, vector<6x1xf32>
    %c0_3 = arith.constant 0 : index
    %c0_4 = arith.constant 0 : index
    %c0_5 = arith.constant 0 : index
    %2 = vector.load %arg1[%c0_3, %c0_4, %c0_5] : memref<4x108x128xbf16, #tpu.memory_space<vmem>>, vector<1x108x128xbf16>
    %3 = vector.shape_cast %2 : vector<1x108x128xbf16> to vector<108x128xbf16>
    %cst = arith.constant dense<0.000000e+00> : vector<6x128xf32>
    %4 = tpu.matmul %0, %3, %cst {dimension_numbers = #tpu.dot_dimension_numbers<[1], [0], [0], [1], [0, 0, 1, 1], [], []>} : vector<6x108xbf16>, vector<108x128xbf16>, vector<6x128xf32> -> vector<6x128xf32>
    %c1 = arith.constant 1 : index
    %c0_6 = arith.constant 0 : index
    %c0_7 = arith.constant 0 : index
    %5 = vector.load %arg1[%c1, %c0_6, %c0_7] : memref<4x108x128xbf16, #tpu.memory_space<vmem>>, vector<1x108x128xbf16>
    %6 = vector.shape_cast %5 : vector<1x108x128xbf16> to vector<108x128xbf16>
    %cst_8 = arith.constant dense<0.000000e+00> : vector<6x128xf32>
    %7 = tpu.matmul %0, %6, %cst_8 {dimension_numbers = #tpu.dot_dimension_numbers<[1], [0], [0], [1], [0, 0, 1, 1], [], []>} : vector<6x108xbf16>, vector<108x128xbf16>, vector<6x128xf32> -> vector<6x128xf32>
    %8 = arith.maximumf %4, %7 : vector<6x128xf32>
    %c2 = arith.constant 2 : index
    %c0_9 = arith.constant 0 : index
    %c0_10 = arith.constant 0 : index
    %9 = vector.load %arg1[%c2, %c0_9, %c0_10] : memref<4x108x128xbf16, #tpu.memory_space<vmem>>, vector<1x108x128xbf16>
    %10 = vector.shape_cast %9 : vector<1x108x128xbf16> to vector<108x128xbf16>
    %cst_11 = arith.constant dense<0.000000e+00> : vector<6x128xf32>
    %11 = tpu.matmul %0, %10, %cst_11 {dimension_numbers = #tpu.dot_dimension_numbers<[1], [0], [0], [1], [0, 0, 1, 1], [], []>} : vector<6x108xbf16>, vector<108x128xbf16>, vector<6x128xf32> -> vector<6x128xf32>
    %12 = arith.maximumf %8, %11 : vector<6x128xf32>
    %c3 = arith.constant 3 : index
    %c0_12 = arith.constant 0 : index
    %c0_13 = arith.constant 0 : index
    %13 = vector.load %arg1[%c3, %c0_12, %c0_13] : memref<4x108x128xbf16, #tpu.memory_space<vmem>>, vector<1x108x128xbf16>
    %14 = vector.shape_cast %13 : vector<1x108x128xbf16> to vector<108x128xbf16>
    %cst_14 = arith.constant dense<0.000000e+00> : vector<6x128xf32>
    %15 = tpu.matmul %0, %14, %cst_14 {dimension_numbers = #tpu.dot_dimension_numbers<[1], [0], [0], [1], [0, 0, 1, 1], [], []>} : vector<6x108xbf16>, vector<108x128xbf16>, vector<6x128xf32> -> vector<6x128xf32>
    %16 = arith.maximumf %12, %15 : vector<6x128xf32>
    %17 = vector.broadcast %1 : vector<6x1xf32> to vector<6x128xf32>
    %18 = arith.addf %16, %17 : vector<6x128xf32>
    %cst_15 = arith.constant 0.000000e+00 : f32
    %19 = vector.broadcast %cst_15 : f32 to vector<6x128xf32>
    %20 = arith.maximumf %18, %19 : vector<6x128xf32>
    %c0_16 = arith.constant 0 : index
    %c0_17 = arith.constant 0 : index
    %c0_18 = arith.constant 0 : index
    %21 = vector.load %arg2[%c0_16, %c0_17, %c0_18] : memref<4x108x128xbf16, #tpu.memory_space<vmem>>, vector<1x108x128xbf16>
    %22 = vector.shape_cast %21 : vector<1x108x128xbf16> to vector<108x128xbf16>
    %cst_19 = arith.constant dense<0.000000e+00> : vector<6x128xf32>
    %23 = tpu.matmul %0, %22, %cst_19 {dimension_numbers = #tpu.dot_dimension_numbers<[1], [0], [0], [1], [0, 0, 1, 1], [], []>} : vector<6x108xbf16>, vector<108x128xbf16>, vector<6x128xf32> -> vector<6x128xf32>
    %c1_20 = arith.constant 1 : index
    %c0_21 = arith.constant 0 : index
    %c0_22 = arith.constant 0 : index
    %24 = vector.load %arg2[%c1_20, %c0_21, %c0_22] : memref<4x108x128xbf16, #tpu.memory_space<vmem>>, vector<1x108x128xbf16>
    %25 = vector.shape_cast %24 : vector<1x108x128xbf16> to vector<108x128xbf16>
    %cst_23 = arith.constant dense<0.000000e+00> : vector<6x128xf32>
    %26 = tpu.matmul %0, %25, %cst_23 {dimension_numbers = #tpu.dot_dimension_numbers<[1], [0], [0], [1], [0, 0, 1, 1], [], []>} : vector<6x108xbf16>, vector<108x128xbf16>, vector<6x128xf32> -> vector<6x128xf32>
    %27 = arith.maximumf %23, %26 : vector<6x128xf32>
    %c2_24 = arith.constant 2 : index
    %c0_25 = arith.constant 0 : index
    %c0_26 = arith.constant 0 : index
    %28 = vector.load %arg2[%c2_24, %c0_25, %c0_26] : memref<4x108x128xbf16, #tpu.memory_space<vmem>>, vector<1x108x128xbf16>
    %29 = vector.shape_cast %28 : vector<1x108x128xbf16> to vector<108x128xbf16>
    %cst_27 = arith.constant dense<0.000000e+00> : vector<6x128xf32>
    %30 = tpu.matmul %0, %29, %cst_27 {dimension_numbers = #tpu.dot_dimension_numbers<[1], [0], [0], [1], [0, 0, 1, 1], [], []>} : vector<6x108xbf16>, vector<108x128xbf16>, vector<6x128xf32> -> vector<6x128xf32>
    %31 = arith.maximumf %27, %30 : vector<6x128xf32>
    %c3_28 = arith.constant 3 : index
    %c0_29 = arith.constant 0 : index
    %c0_30 = arith.constant 0 : index
    %32 = vector.load %arg2[%c3_28, %c0_29, %c0_30] : memref<4x108x128xbf16, #tpu.memory_space<vmem>>, vector<1x108x128xbf16>
    %33 = vector.shape_cast %32 : vector<1x108x128xbf16> to vector<108x128xbf16>
    %cst_31 = arith.constant dense<0.000000e+00> : vector<6x128xf32>
    %34 = tpu.matmul %0, %33, %cst_31 {dimension_numbers = #tpu.dot_dimension_numbers<[1], [0], [0], [1], [0, 0, 1, 1], [], []>} : vector<6x108xbf16>, vector<108x128xbf16>, vector<6x128xf32> -> vector<6x128xf32>
    %35 = arith.maximumf %31, %34 : vector<6x128xf32>
    %36 = vector.broadcast %1 : vector<6x1xf32> to vector<6x128xf32>
    %37 = arith.addf %35, %36 : vector<6x128xf32>
    %cst_32 = arith.constant 0.000000e+00 : f32
    %38 = vector.broadcast %cst_32 : f32 to vector<6x128xf32>
    %39 = arith.maximumf %37, %38 : vector<6x128xf32>
    %40 = arith.addf %20, %39 : vector<6x128xf32>
    %41 = arith.negf %40 : vector<6x128xf32>
    %42 = math.exp %41 : vector<6x128xf32>
    %cst_33 = arith.constant 1.000000e+00 : f32
    %43 = vector.broadcast %cst_33 : f32 to vector<6x128xf32>
    %44 = arith.addf %43, %42 : vector<6x128xf32>
    %45 = arith.divf %43, %44 : vector<6x128xf32>
    %c0_34 = arith.constant 0 : index
    %c0_35 = arith.constant 0 : index
    %46 = vector.load %arg5[%c0_34, %c0_35] : memref<6x128xf32, #tpu.memory_space<vmem>>, vector<6x128xf32>
    tpu.vector_store %arg5[%c0_34, %c0_35], %45 {strides = array<i32>} : memref<6x128xf32, #tpu.memory_space<vmem>>, vector<6x128xf32>,
    return
  }
  func.func @transform_0(%arg0: i32) -> (i32, i32, i32) {
    %c0_i32 = arith.constant 0 : i32
    %c0_i32_0 = arith.constant 0 : i32
    %c0_i32_1 = arith.constant 0 : i32
    %c0_i32_2 = arith.constant 0 : i32
    return %c0_i32, %c0_i32_0, %c0_i32_1 : i32, i32, i32
  }
  func.func @transform_1(%arg0: i32) -> (i32, i32, i32) {
    %c0_i32 = arith.constant 0 : i32
    %c0_i32_0 = arith.constant 0 : i32
    %c0_i32_1 = arith.constant 0 : i32
    %c0_i32_2 = arith.constant 0 : i32
    return %c0_i32, %c0_i32_0, %c0_i32_1 : i32, i32, i32
  }
  func.func @transform_2(%arg0: i32) -> (i32, i32) {
    %c0_i32 = arith.constant 0 : i32
    %c0_i32_0 = arith.constant 0 : i32
    %c0_i32_1 = arith.constant 0 : i32
    return %c0_i32, %c0_i32_0 : i32, i32
  }
  func.func @transform_3(%arg0: i32) -> (i32, i32) {
    %c0_i32 = arith.constant 0 : i32
    %c0_i32_0 = arith.constant 0 : i32
    %c0_i32_1 = arith.constant 0 : i32
    return %c0_i32, %c0_i32_0 : i32, i32
  }
  func.func @transform_4(%arg0: i32) -> (i32, i32) {
    %c0_i32 = arith.constant 0 : i32
    %c0_i32_0 = arith.constant 0 : i32
    %c0_i32_1 = arith.constant 0 : i32
    return %c0_i32, %c0_i32_0 : i32, i32
  }
}

</mosaic_0001>

<llo_original>
// kernel: coon_forward.4
$region0: #{coon_forward.4}
  #allocation0 [shape = 'u32[]', space=smem, size = 0x4, offset = 0x4, fixed_abs, tag = 'smem constant byte address 0x4 - core index']
  #allocation1 [shape = 'u32[144,128]{1,0:T(1,128)}', space=vmem, size = 0x12000, scoped, tag = 'internal scratch']
  %s0 = inlined_call_operand.vmem [shape: bf16[4,9,4096], index: 0, kind: input, shape index: {}]
  %s1 = inlined_call_operand.vmem [shape: bf16[6,9], index: 1, kind: input, shape index: {}]
  %s2 = inlined_call_operand.vmem [shape: f32[6,1], index: 2, kind: input, shape index: {}]
  %s3 = inlined_call_operand.vmem [shape: bf16[6,4096], index: 3, kind: output, shape index: {}]
  %s4 = sld [smem:[#allocation0]]
  $region68: #{coon_forward.4} parent=0
    _
  %s6 = ssub.s32 1, %s4
  %s7 = scalar_select 0, %s6, %s4
  $region1: #{coon_forward.4} parent=0
    #allocation2 [shape = 'u8[524288]{0}', space=vmem, size = 0x80000, scoped, tag = 'input window, operand 0']
    loop: start=0, step=1, limit=4
    $region2: #{coon_forward.4} parent=1 // loop_pre_header
      _
    $region3: #{coon_forward.4} parent=1 // loop_header
      %s9 = sphi 0, %s13
      %p10 = scmp.ge.s32.totalorder %s9, 4
      %s19 = sphi 0, %s21
      %s22 = sphi 0, %s19
      %s23 = sphi 0, %s22
      %s39 = sphi 0, %s23
      %s43 = sphi 0, %s43
      %s45 = sphi 0, %s43
      %s46 = sphi 0, %s45
      %s60 = sphi 0, %s46
      %s64 = sphi 0, %s64
      %s66 = sphi 0, %s64
      %s67 = sphi 0, %s66
      %s81 = sphi 0, %s67
      %s87 = sphi 0, %s89
      %s90 = sphi 0, %s87
      %s91 = sphi 0, %s90
      %s107 = sphi 0, %s91
    $region4: #{coon_forward.4} parent=1 // loop_header_branch
      %12 = sbr.rel (%p10) target = $region8
    $region5: #{coon_forward.4} parent=1 // loop_body
      %s14 = ssub.s32 %s9, 1
      %s15 = ssub.s32 %s9, 2
      %s16 = sadd.s32 %s9, 1
      %s17 = ssub.s32 %s9, %s16
      %p18 = scmp.eq.s32.totalorder %s17, 0
      %s20 = sadd.s32 %s19, 1
      %s21 = scalar_select %p18, %s19, %s20
      %p24 = pneg %p18
      %p25 = scmp.eq.s32.totalorder %s9, 1
      %p26 = por %p24, %p25
      %p27 = scmp.ne.s32.totalorder %s19, %s22
      %p28 = scmp.eq.s32.totalorder %s9, 0
      %p29 = por %p27, %p28
      %p30 = scmp.ne.s32.totalorder %s19, %s22
      %p31 = scmp.eq.s32.totalorder %s14, 1
      %p32 = por %p30, %p31
      %p33 = scmp.ne.s32.totalorder %s22, %s23
      %p34 = scmp.eq.s32.totalorder %s14, 0
      %p35 = por %p33, %p34
      %p36 = scmp.ne.s32.totalorder %s22, %s23
      %p37 = scmp.eq.s32.totalorder %s15, 1
      %p38 = por %p36, %p37
      %p40 = scmp.ne.s32.totalorder %s23, %s39
      %p41 = scmp.eq.s32.totalorder %s15, 0
      %p42 = por %p40, %p41
      %s44 = sadd.s32 %s43, 1
      %p47 = scmp.eq.s32.totalorder %s9, 1
      %p48 = scmp.ne.s32.totalorder %s43, %s45
      %p49 = scmp.eq.s32.totalorder %s9, 0
      %p50 = por %p48, %p49
      %p51 = scmp.ne.s32.totalorder %s43, %s45
      %p52 = scmp.eq.s32.totalorder %s14, 1
      %p53 = por %p51, %p52
      %p54 = scmp.ne.s32.totalorder %s45, %s46
      %p55 = scmp.eq.s32.totalorder %s14, 0
      %p56 = por %p54, %p55
      %p57 = scmp.ne.s32.totalorder %s45, %s46
      %p58 = scmp.eq.s32.totalorder %s15, 1
      %p59 = por %p57, %p58
      %p61 = scmp.ne.s32.totalorder %s46, %s60
      %p62 = scmp.eq.s32.totalorder %s15, 0
      %p63 = por %p61, %p62
      %s65 = sadd.s32 %s64, 1
      %p68 = scmp.eq.s32.totalorder %s9, 1
      %p69 = scmp.ne.s32.totalorder %s64, %s66
      %p70 = scmp.eq.s32.totalorder %s9, 0
      %p71 = por %p69, %p70
      %p72 = scmp.ne.s32.totalorder %s64, %s66
      %p73 = scmp.eq.s32.totalorder %s14, 1
      %p74 = por %p72, %p73
      %p75 = scmp.ne.s32.totalorder %s66, %s67
      %p76 = scmp.eq.s32.totalorder %s14, 0
      %p77 = por %p75, %p76
      %p78 = scmp.ne.s32.totalorder %s66, %s67
      %p79 = scmp.eq.s32.totalorder %s15, 1
      %p80 = por %p78, %p79
      %p82 = scmp.ne.s32.totalorder %s67, %s81
      %p83 = scmp.eq.s32.totalorder %s15, 0
      %p84 = por %p82, %p83
      %s85 = ssub.s32 %s9, %s16
      %p86 = scmp.eq.s32.totalorder %s85, 0
      %s88 = sadd.s32 %s87, 1
      %s89 = scalar_select %p86, %s87, %s88
      %p92 = pneg %p86
      %p93 = scmp.eq.s32.totalorder %s9, 1
      %p94 = por %p92, %p93
      %p95 = scmp.ne.s32.totalorder %s87, %s90
      %p96 = scmp.eq.s32.totalorder %s9, 0
      %p97 = por %p95, %p96
      %p98 = scmp.ne.s32.totalorder %s87, %s90
      %p99 = scmp.eq.s32.totalorder %s14, 1
      %p100 = por %p98, %p99
      %p101 = scmp.ne.s32.totalorder %s90, %s91
      %p102 = scmp.eq.s32.totalorder %s14, 0
      %p103 = por %p101, %p102
      %p104 = scmp.ne.s32.totalorder %s90, %s91
      %p105 = scmp.eq.s32.totalorder %s15, 1
      %p106 = por %p104, %p105
      %p108 = scmp.ne.s32.totalorder %s91, %s107
      %p109 = scmp.eq.s32.totalorder %s15, 0
      %p110 = por %p108, %p109
      %p111 = scmp.le.s32.totalorder 1, %s9
      %p112 = scmp.lt.s32.totalorder %s9, 3
      %p113 = pnand %p111, %p112
      %p114 = pneg %p113
      // Predicated region
      $region9: #{coon_forward.4} parent=5 // pred_check
        _
      $region10: #{coon_forward.4} parent=5 // pred_check_branch
        %116 = sbr.rel (%p113) target = $region12
      $region11: #{coon_forward.4} parent=5 // pred_region
        %s117 = ssub.s32 %s9, 1
        // Predicated region
        $region13: #{coon_forward.4} parent=11 // pred_check
          %p118 = pneg %p56
        $region14: #{coon_forward.4} parent=11 // pred_check_branch
          %120 = sbr.rel (%p118) target = $region16
        $region15: #{coon_forward.4} parent=11 // pred_region
          _
        $region16: #{coon_forward.4} parent=11 // pred_fallthru
          _
        // Predicated region
        $region17: #{coon_forward.4} parent=11 // pred_check
          %p121 = pneg %p77
        $region18: #{coon_forward.4} parent=11 // pred_check_branch
          %123 = sbr.rel (%p121) target = $region20
        $region19: #{coon_forward.4} parent=11 // pred_region
          _
        $region20: #{coon_forward.4} parent=11 // pred_fallthru
          _
      $region12: #{coon_forward.4} parent=5 // pred_fallthru
        _
      %p124 = scmp.lt.s32.totalorder %s9, 2
      // Predicated region
      $region21: #{coon_forward.4} parent=5 // pred_check
        %p125 = pneg %p124
      $region22: #{coon_forward.4} parent=5 // pred_check_branch
        %127 = sbr.rel (%p125) target = $region24
      $region23: #{coon_forward.4} parent=5 // pred_region
        // Predicated region
        $region25: #{coon_forward.4} parent=23 // pred_check
          %p128 = pneg %p29
        $region26: #{coon_forward.4} parent=23 // pred_check_branch
          %130 = sbr.rel (%p128) target = $region28
        $region27: #{coon_forward.4} parent=23 // pred_region
          %s131 = sand.u32 %s19, 1
          %s132 = sand.u32 %s19, 1
          %s133 = smul.addr %s132, 512
          %s134 = scalar_lea.vmem [#allocation2], %s133
          %s135 = smul.u32 16, %s9
          %s136 = smul.addr %s135, 4
          %s137 = scalar_lea.vmem %s0, %s136
          // Predicated region
          $region29: #{coon_forward.4} parent=27 // pred_check
            _
          $region30: #{coon_forward.4} parent=27 // pred_check_branch
            %139 = sbr.rel (0) target = $region32
          $region31: #{coon_forward.4} parent=27 // pred_region
            // Predicated region
            $region33: #{coon_forward.4} parent=31 // pred_check
              _
            $region34: #{coon_forward.4} parent=31 // pred_check_branch
              %141 = sbr.rel (0) target = $region36
            $region35: #{coon_forward.4} parent=31 // pred_region
              loop: start=0, step=1, limit=1
              $region37: #{coon_forward.4} parent=35 // loop_pre_header
                _
              $region38: #{coon_forward.4} parent=35 // loop_header
                %s143 = sphi 0, %s147
                %p144 = scmp.ge.s32.totalorder %s143, 1
                %s148 = sphi %s137, %s137
                %s149 = sphi %s134, %s134
              $region39: #{coon_forward.4} parent=35 // loop_header_branch
                %146 = sbr.rel (%p144) target = $region43
              $region40: #{coon_forward.4} parent=35 // loop_body
                %v150 = vld [vmem:[%s148] sm:$0xff]
                %151 = vst [vmem:[%s149] sm:$0xff] %v150
                %v152 = vld [vmem:[%s148 + $0x8] sm:$0xff]
                %153 = vst [vmem:[%s149 + $0x8] sm:$0xff] %v152
                %v154 = vld [vmem:[%s148 + $0x10] sm:$0xff]
                %155 = vst [vmem:[%s149 + $0x10] sm:$0xff] %v154
                %v156 = vld [vmem:[%s148 + $0x18] sm:$0xff]
                %157 = vst [vmem:[%s149 + $0x18] sm:$0xff] %v156
                %v158 = vld [vmem:[%s148 + $0x20] sm:$0xff]
                %159 = vst [vmem:[%s149 + $0x20] sm:$0xff] %v158
                %v160 = vld [vmem:[%s148 + $0x28] sm:$0xff]
                %161 = vst [vmem:[%s149 + $0x28] sm:$0xff] %v160
                %v162 = vld [vmem:[%s148 + $0x30] sm:$0xff]
                %163 = vst [vmem:[%s149 + $0x30] sm:$0xff] %v162
                %v164 = vld [vmem:[%s148 + $0x38] sm:$0xff]
                %165 = vst [vmem:[%s149 + $0x38] sm:$0xff] %v164
                %v166 = vld [vmem:[%s148 + $0x80] sm:$0xff]
                %167 = vst [vmem:[%s149 + $0x40] sm:$0xff] %v166
                %v168 = vld [vmem:[%s148 + $0x88] sm:$0xff]
                %169 = vst [vmem:[%s149 + $0x48] sm:$0xff] %v168
                %v170 = vld [vmem:[%s148 + $0x90] sm:$0xff]
                %171 = vst [vmem:[%s149 + $0x50] sm:$0xff] %v170
                %v172 = vld [vmem:[%s148 + $0x98] sm:$0xff]
                %173 = vst [vmem:[%s149 + $0x58] sm:$0xff] %v172
                %v174 = vld [vmem:[%s148 + $0xa0] sm:$0xff]
                %175 = vst [vmem:[%s149 + $0x60] sm:$0xff] %v174
                %v176 = vld [vmem:[%s148 + $0xa8] sm:$0xff]
                %177 = vst [vmem:[%s149 + $0x68] sm:$0xff] %v176
                %v178 = vld [vmem:[%s148 + $0xb0] sm:$0xff]
                %179 = vst [vmem:[%s149 + $0x70] sm:$0xff] %v178
                %v180 = vld [vmem:[%s148 + $0xb8] sm:$0xff]
                %181 = vst [vmem:[%s149 + $0x78] sm:$0xff] %v180
                %v182 = vld [vmem:[%s148 + $0x100] sm:$0xff]
                %183 = vst [vmem:[%s149 + $0x80] sm:$0xff] %v182
                %v184 = vld [vmem:[%s148 + $0x108] sm:$0xff]
                %185 = vst [vmem:[%s149 + $0x88] sm:$0xff] %v184
                %v186 = vld [vmem:[%s148 + $0x110] sm:$0xff]
                %187 = vst [vmem:[%s149 + $0x90] sm:$0xff] %v186
                %v188 = vld [vmem:[%s148 + $0x118] sm:$0xff]
                %189 = vst [vmem:[%s149 + $0x98] sm:$0xff] %v188
                %v190 = vld [vmem:[%s148 + $0x120] sm:$0xff]
                %191 = vst [vmem:[%s149 + $0xa0] sm:$0xff] %v190
                %v192 = vld [vmem:[%s148 + $0x128] sm:$0xff]
                %193 = vst [vmem:[%s149 + $0xa8] sm:$0xff] %v192
                %v194 = vld [vmem:[%s148 + $0x130] sm:$0xff]
                %195 = vst [vmem:[%s149 + $0xb0] sm:$0xff] %v194
                %v196 = vld [vmem:[%s148 + $0x138] sm:$0xff]
                %197 = vst [vmem:[%s149 + $0xb8] sm:$0xff] %v196
                %v198 = vld [vmem:[%s148 + $0x180] sm:$0xff]
                %199 = vst [vmem:[%s149 + $0xc0] sm:$0xff] %v198
                %v200 = vld [vmem:[%s148 + $0x188] sm:$0xff]
                %201 = vst [vmem:[%s149 + $0xc8] sm:$0xff] %v200
                %v202 = vld [vmem:[%s148 + $0x190] sm:$0xff]
                %203 = vst [vmem:[%s149 + $0xd0] sm:$0xff] %v202
                %v204 = vld [vmem:[%s148 + $0x198] sm:$0xff]
                %205 = vst [vmem:[%s149 + $0xd8] sm:$0xff] %v204
                %v206 = vld [vmem:[%s148 + $0x1a0] sm:$0xff]
                %207 = vst [vmem:[%s149 + $0xe0] sm:$0xff] %v206
                %v208 = vld [vmem:[%s148 + $0x1a8] sm:$0xff]
                %209 = vst [vmem:[%s149 + $0xe8] sm:$0xff] %v208
                %v210 = vld [vmem:[%s148 + $0x1b0] sm:$0xff]
                %211 = vst [vmem:[%s149 + $0xf0] sm:$0xff] %v210
                %v212 = vld [vmem:[%s148 + $0x1b8] sm:$0xff]
                %213 = vst [vmem:[%s149 + $0xf8] sm:$0xff] %v212
                %v214 = vld [vmem:[%s148 + $0x200] sm:$0xff]
                %215 = vst [vmem:[%s149 + $0x100] sm:$0xff] %v214
                %v216 = vld [vmem:[%s148 + $0x208] sm:$0xff]
                %217 = vst [vmem:[%s149 + $0x108] sm:$0xff] %v216
                %v218 = vld [vmem:[%s148 + $0x210] sm:$0xff]
                %219 = vst [vmem:[%s149 + $0x110] sm:$0xff] %v218
                %v220 = vld [vmem:[%s148 + $0x218] sm:$0xff]
                %221 = vst [vmem:[%s149 + $0x118] sm:$0xff] %v220
                %v222 = vld [vmem:[%s148 + $0x220] sm:$0xff]
                %223 = vst [vmem:[%s149 + $0x120] sm:$0xff] %v222
                %v224 = vld [vmem:[%s148 + $0x228] sm:$0xff]
                %225 = vst [vmem:[%s149 + $0x128] sm:$0xff] %v224
                %v226 = vld [vmem:[%s148 + $0x230] sm:$0xff]
                %227 = vst [vmem:[%s149 + $0x130] sm:$0xff] %v226
                %v228 = vld [vmem:[%s148 + $0x238] sm:$0xff]
                %229 = vst [vmem:[%s149 + $0x138] sm:$0xff] %v228
                %v230 = vld [vmem:[%s148 + $0x280] sm:$0xff]
                %231 = vst [vmem:[%s149 + $0x140] sm:$0xff] %v230
                %v232 = vld [vmem:[%s148 + $0x288] sm:$0xff]
                %233 = vst [vmem:[%s149 + $0x148] sm:$0xff] %v232
                %v234 = vld [vmem:[%s148 + $0x290] sm:$0xff]
                %235 = vst [vmem:[%s149 + $0x150] sm:$0xff] %v234
                %v236 = vld [vmem:[%s148 + $0x298] sm:$0xff]
                %237 = vst [vmem:[%s149 + $0x158] sm:$0xff] %v236
                %v238 = vld [vmem:[%s148 + $0x2a0] sm:$0xff]
                %239 = vst [vmem:[%s149 + $0x160] sm:$0xff] %v238
                %v240 = vld [vmem:[%s148 + $0x2a8] sm:$0xff]
                %241 = vst [vmem:[%s149 + $0x168] sm:$0xff] %v240
                %v242 = vld [vmem:[%s148 + $0x2b0] sm:$0xff]
                %243 = vst [vmem:[%s149 + $0x170] sm:$0xff] %v242
                %v244 = vld [vmem:[%s148 + $0x2b8] sm:$0xff]
                %245 = vst [vmem:[%s149 + $0x178] sm:$0xff] %v244
                %v246 = vld [vmem:[%s148 + $0x300] sm:$0xff]
                %247 = vst [vmem:[%s149 + $0x180] sm:$0xff] %v246
                %v248 = vld [vmem:[%s148 + $0x308] sm:$0xff]
                %249 = vst [vmem:[%s149 + $0x188] sm:$0xff] %v248
                %v250 = vld [vmem:[%s148 + $0x310] sm:$0xff]
                %251 = vst [vmem:[%s149 + $0x190] sm:$0xff] %v250
                %v252 = vld [vmem:[%s148 + $0x318] sm:$0xff]
                %253 = vst [vmem:[%s149 + $0x198] sm:$0xff] %v252
                %v254 = vld [vmem:[%s148 + $0x320] sm:$0xff]
                %255 = vst [vmem:[%s149 + $0x1a0] sm:$0xff] %v254
                %v256 = vld [vmem:[%s148 + $0x328] sm:$0xff]
                %257 = vst [vmem:[%s149 + $0x1a8] sm:$0xff] %v256
                %v258 = vld [vmem:[%s148 + $0x330] sm:$0xff]
                %259 = vst [vmem:[%s149 + $0x1b0] sm:$0xff] %v258
                %v260 = vld [vmem:[%s148 + $0x338] sm:$0xff]
                %261 = vst [vmem:[%s149 + $0x1b8] sm:$0xff] %v260
                %v262 = vld [vmem:[%s148 + $0x380] sm:$0xff]
                %263 = vst [vmem:[%s149 + $0x1c0] sm:$0xff] %v262
                %v264 = vld [vmem:[%s148 + $0x388] sm:$0xff]
                %265 = vst [vmem:[%s149 + $0x1c8] sm:$0xff] %v264
                %v266 = vld [vmem:[%s148 + $0x390] sm:$0xff]
                %267 = vst [vmem:[%s149 + $0x1d0] sm:$0xff] %v266
                %v268 = vld [vmem:[%s148 + $0x398] sm:$0xff]
                %269 = vst [vmem:[%s149 + $0x1d8] sm:$0xff] %v268
                %v270 = vld [vmem:[%s148 + $0x3a0] sm:$0xff]
                %271 = vst [vmem:[%s149 + $0x1e0] sm:$0xff] %v270
                %v272 = vld [vmem:[%s148 + $0x3a8] sm:$0xff]
                %273 = vst [vmem:[%s149 + $0x1e8] sm:$0xff] %v272
                %v274 = vld [vmem:[%s148 + $0x3b0] sm:$0xff]
                %275 = vst [vmem:[%s149 + $0x1f0] sm:$0xff] %v274
                %v276 = vld [vmem:[%s148 + $0x3b8] sm:$0xff]
                %277 = vst [vmem:[%s149 + $0x1f8] sm:$0xff] %v276
              $region41: #{coon_forward.4} parent=35 // loop_footer
                %s147 = sadd.s32 1, %s143
              $region42: #{coon_forward.4} parent=35 // loop_footer_branch
                %142 = sbr.rel target = $region38
              $region43: #{coon_forward.4} parent=35 // loop_exit
                _
            $region36: #{coon_forward.4} parent=31 // pred_fallthru
              _
            // Predicated region
            $region44: #{coon_forward.4} parent=31 // pred_check
              _
            $region45: #{coon_forward.4} parent=31 // pred_check_branch
              %279 = sbr.rel target = $region47
            $region46: #{coon_forward.4} parent=31 // pred_region
              _
            $region47: #{coon_forward.4} parent=31 // pred_fallthru
              _
          $region32: #{coon_forward.4} parent=27 // pred_fallthru
            _
          %280 = vnop
        $region28: #{coon_forward.4} parent=23 // pred_fallthru
          _
      $region24: #{coon_forward.4} parent=5 // pred_fallthru
        _
      %p281 = scmp.le.s32.totalorder 1, %s9
      %p282 = scmp.lt.s32.totalorder %s9, 3
      %p283 = pnand %p281, %p282
      %p284 = pneg %p283
      // Predicated region
      $region48: #{coon_forward.4} parent=5 // pred_check
        _
      $region49: #{coon_forward.4} parent=5 // pred_check_branch
        %286 = sbr.rel (%p283) target = $region51
      $region50: #{coon_forward.4} parent=5 // pred_region
        %s287 = ssub.s32 %s9, 1
        %s288 = sand.u32 %s22, 1
        %s289 = sand.u32 %s22, 1
        %s290 = smul.addr %s289, 512
        %s291 = scalar_lea.vmem [#allocation2], %s290
        // Predicated region
        $region52: #{coon_forward.4} parent=50 // pred_check
          %p292 = pneg %p35
        $region53: #{coon_forward.4} parent=50 // pred_check_branch
          %294 = sbr.rel (%p292) target = $region55
        $region54: #{coon_forward.4} parent=50 // pred_region
          _
        $region55: #{coon_forward.4} parent=50 // pred_fallthru
          _
        %s295 = sand.u32 %s22, 1
        %s296 = sand.u32 %s22, 1
        %s297 = smul.addr %s296, 512
        %s298 = scalar_lea.vmem [#allocation2], %s297
        %p299 = pneg %p35
        %p300 = pneg %p32
        %p301 = pneg %p56
        %p302 = pneg %p53
        %p303 = pneg %p77
        %p304 = pneg %p74
        %p305 = pneg %p103
        %p306 = pneg %p100
        %s307 = smul.u32 16, %s14
        %p308 = scmp.lt.s32.totalorder %s307, 31
        %s309 = scalar_select %p308, %s307, 31
        %s310 = smul.addr %s309, 4
        %s311 = scalar_lea.vmem %s3, %s310
        %s312 = smul.u32 16, %s14
        %s313 = smul.u32 16, %s14
        %p314 = scmp.lt.s32.totalorder %s313, 31
        %s315 = scalar_select %p314, %s313, 31
        %s316 = smul.addr %s315, 4
        %s317 = scalar_lea.vmem %s3, %s316
        %s318 = smul.u32 16, %s14
        %v320 = vld [vmem:[%s1] sm:$0x7]
        %v321 = vld [vmem:[%s291] sm:$0xff]
        %v322 = vld [vmem:[%s291 + $0x8] sm:$0xff]
        %v323 = vld [vmem:[%s291 + $0x10] sm:$0xff]
        %v324 = vld [vmem:[%s291 + $0x18] sm:$0xff]
        %v325 = vld [vmem:[%s291 + $0x20] sm:$0xff]
        %v326 = vld [vmem:[%s291 + $0x28] sm:$0xff]
        %v327 = vld [vmem:[%s291 + $0x30] sm:$0xff]
        %v328 = vld [vmem:[%s291 + $0x38] sm:$0xff]
        %v329 = vld [vmem:[%s291 + $0x40] sm:$0x11]
        %v330 = vld [vmem:[%s291 + $0x48] sm:$0x11]
        %v331 = vld [vmem:[%s291 + $0x50] sm:$0x11]
        %v332 = vld [vmem:[%s291 + $0x58] sm:$0x11]
        %v333 = vld [vmem:[%s291 + $0x60] sm:$0x11]
        %v334 = vld [vmem:[%s291 + $0x68] sm:$0x11]
        %v335 = vld [vmem:[%s291 + $0x70] sm:$0x11]
        %v336 = vld [vmem:[%s291 + $0x78] sm:$0x11]
        %v353 = vunpack.c.l.b16 %v321
        %v354 = vunpack.c.h.b16 %v321
        %v355 = vunpack.c.l.b16 %v322
        %v356 = vunpack.c.h.b16 %v322
        %v357 = vunpack.c.l.b16 %v323
        %v358 = vunpack.c.h.b16 %v323
        %v359 = vunpack.c.l.b16 %v324
        %v360 = vunpack.c.h.b16 %v324
        %v361 = vunpack.c.l.b16 %v325
        %v362 = vunpack.c.h.b16 %v325
        %v363 = vunpack.c.l.b16 %v326
        %v364 = vunpack.c.h.b16 %v326
        %v365 = vunpack.c.l.b16 %v327
        %v366 = vunpack.c.h.b16 %v327
        %v367 = vunpack.c.l.b16 %v328
        %v368 = vunpack.c.h.b16 %v328
        %v369 = vunpack.c.l.b16 %v329
        %v370 = vunpack.c.h.b16 %v329
        %v371 = vunpack.c.l.b16 %v330
        %v372 = vunpack.c.h.b16 %v330
        %v373 = vunpack.c.l.b16 %v331
        %v374 = vunpack.c.h.b16 %v331
        %v375 = vunpack.c.l.b16 %v332
        %v376 = vunpack.c.h.b16 %v332
        %v377 = vunpack.c.l.b16 %v333
        %v378 = vunpack.c.h.b16 %v333
        %v379 = vunpack.c.l.b16 %v334
        %v380 = vunpack.c.h.b16 %v334
        %v381 = vunpack.c.l.b16 %v335
        %v382 = vunpack.c.h.b16 %v335
        %v383 = vunpack.c.l.b16 %v336
        %v384 = vunpack.c.h.b16 %v336
        %v385 = vpack.c.b16 %v369, %v353
        %v386 = vpack.c.b16 %v370, %v354
        %v387 = vpack.c.b16 %v371, %v355
        %v388 = vpack.c.b16 %v372, %v356
        %v389 = vpack.c.b16 %v373, %v357
        %v390 = vpack.c.b16 %v374, %v358
        %v391 = vpack.c.b16 %v375, %v359
        %v392 = vpack.c.b16 %v376, %v360
        %v393 = vpack.c.b16 %v377, %v361
        %v394 = vpack.c.b16 %v378, %v362
        %v395 = vpack.c.b16 %v379, %v363
        %v396 = vpack.c.b16 %v380, %v364
        %v397 = vpack.c.b16 %v381, %v365
        %v398 = vpack.c.b16 %v382, %v366
        %v399 = vpack.c.b16 %v383, %v367
        %v400 = vpack.c.b16 %v384, %v368
        %vm401 = vcmask 72704
        %v403 = vsel %vm401, %v320, 0
        %vm405 = vcmask 1043456
        %vm406 = vcmask 1044480
        %v407 = vsel %vm405, 4294967295, 65535
        %v408 = vsel %vm406, %v407, 0
        %v410 = vand.u32 %v385, %v408
        %v413 = vand.u32 %v386, %v408
        %v416 = vand.u32 %v387, %v408
        %v419 = vand.u32 %v388, %v408
        %v422 = vand.u32 %v389, %v408
        %v425 = vand.u32 %v390, %v408
        %v428 = vand.u32 %v391, %v408
        %v431 = vand.u32 %v392, %v408
        %v434 = vand.u32 %v393, %v408
        %v437 = vand.u32 %v394, %v408
        %v440 = vand.u32 %v395, %v408
        %v443 = vand.u32 %v396, %v408
        %v446 = vand.u32 %v397, %v408
        %v449 = vand.u32 %v398, %v408
        %v452 = vand.u32 %v399, %v408
        %v455 = vand.u32 %v400, %v408
        %457 = vmatprep.subr.bf16.mxu0 %v413
        %458 = vmatpush1.bf16.msra.mxu0 %v410
        %459 = vmatprep.subr.bf16.mxu0 0
        %460 = vmatpush1.bf16.msra.mxu0 0
        %461 = vmatprep.subr.bf16.mxu0 0
        %462 = vmatpush1.bf16.msra.mxu0 0
        %463 = vmatprep.subr.bf16.mxu0 0
        %464 = vmatpush1.bf16.msra.mxu0 0
        %465 = vmatprep.subr.bf16.mxu0 0
        %466 = vmatpush1.bf16.msra.mxu0 0
        %467 = vmatprep.subr.bf16.mxu0 0
        %468 = vmatpush1.bf16.msra.mxu0 0
        %469 = vmatprep.subr.bf16.mxu0 0
        %470 = vmatpush1.bf16.msra.mxu0 0
        %471 = vmatprep.subr.bf16.mxu0 0
        %472 = vmatpush1.bf16.msra.mxu0 0
        %473 = vmatprep.subr.bf16.mxu0 0
        %474 = vmatpush1.bf16.msra.mxu0 0
        %475 = vmatprep.subr.bf16.mxu0 0
        %476 = vmatpush1.bf16.msra.mxu0 0
        %477 = vmatprep.subr.bf16.mxu0 0
        %478 = vmatpush1.bf16.msra.mxu0 0
        %479 = vmatprep.subr.bf16.mxu0 0
        %480 = vmatpush1.bf16.msra.mxu0 0
        %481 = vmatprep.subr.bf16.mxu0 0
        %482 = vmatpush1.bf16.msra.mxu0 0
        %483 = vmatprep.subr.bf16.mxu0 0
        %484 = vmatpush1.bf16.msra.mxu0 0
        %485 = vmatprep.subr.bf16.mxu0 0
        %486 = vmatpush1.bf16.msra.mxu0 0
        %487 = vmatprep.subr.bf16.mxu0 0
        %488 = vmatpush1.bf16.msra.mxu0 0
        %489 = vmatprep.mubr.bf16.mxu0 0
        %490 = vmatmul.mubr.bf16.gmra.mrb[0].mxu0 %v403
        %v491 = vpop.f32.mrb[0].mxu0
        %v492 = vadd.f32 0.0, %v491
        %v493 = vpop.f32.mrb[0].mxu0
        %v494 = vadd.f32 0.0, %v493
        %v495 = vpop.f32.mrb[0].mxu0
        %v496 = vpop.f32.mrb[0].mxu0
        %497 = vdwg.mxu0
        %498 = vmatprep.subr.bf16.mxu0 %v419
        %499 = vmatpush1.bf16.msra.mxu0 %v416
        %500 = vmatprep.subr.bf16.mxu0 0
        %501 = vmatpush1.bf16.msra.mxu0 0
        %502 = vmatprep.subr.bf16.mxu0 0
        %503 = vmatpush1.bf16.msra.mxu0 0
        %504 = vmatprep.subr.bf16.mxu0 0
        %505 = vmatpush1.bf16.msra.mxu0 0
        %506 = vmatprep.subr.bf16.mxu0 0
        %507 = vmatpush1.bf16.msra.mxu0 0
        %508 = vmatprep.subr.bf16.mxu0 0
        %509 = vmatpush1.bf16.msra.mxu0 0
        %510 = vmatprep.subr.bf16.mxu0 0
        %511 = vmatpush1.bf16.msra.mxu0 0
        %512 = vmatprep.subr.bf16.mxu0 0
        %513 = vmatpush1.bf16.msra.mxu0 0
        %514 = vmatprep.subr.bf16.mxu0 0
        %515 = vmatpush1.bf16.msra.mxu0 0
        %516 = vmatprep.subr.bf16.mxu0 0
        %517 = vmatpush1.bf16.msra.mxu0 0
        %518 = vmatprep.subr.bf16.mxu0 0
        %519 = vmatpush1.bf16.msra.mxu0 0
        %520 = vmatprep.subr.bf16.mxu0 0
        %521 = vmatpush1.bf16.msra.mxu0 0
        %522 = vmatprep.subr.bf16.mxu0 0
        %523 = vmatpush1.bf16.msra.mxu0 0
        %524 = vmatprep.subr.bf16.mxu0 0
        %525 = vmatpush1.bf16.msra.mxu0 0
        %526 = vmatprep.subr.bf16.mxu0 0
        %527 = vmatpush1.bf16.msra.mxu0 0
        %528 = vmatprep.subr.bf16.mxu0 0
        %529 = vmatpush1.bf16.msra.mxu0 0
        %530 = vmatprep.mubr.bf16.mxu0 0
        %531 = vmatmul.mubr.bf16.gmra.mrb[0].mxu0 %v403
        %v532 = vpop.f32.mrb[0].mxu0
        %v533 = vadd.f32 0.0, %v532
        %v534 = vpop.f32.mrb[0].mxu0
        %v535 = vadd.f32 0.0, %v534
        %v536 = vpop.f32.mrb[0].mxu0
        %v537 = vpop.f32.mrb[0].mxu0
        %538 = vdwg.mxu0
        %539 = vmatprep.subr.bf16.mxu0 %v425
        %540 = vmatpush1.bf16.msra.mxu0 %v422
        %541 = vmatprep.subr.bf16.mxu0 0
        %542 = vmatpush1.bf16.msra.mxu0 0
        %543 = vmatprep.subr.bf16.mxu0 0
        %544 = vmatpush1.bf16.msra.mxu0 0
        %545 = vmatprep.subr.bf16.mxu0 0
        %546 = vmatpush1.bf16.msra.mxu0 0
        %547 = vmatprep.subr.bf16.mxu0 0
        %548 = vmatpush1.bf16.msra.mxu0 0
        %549 = vmatprep.subr.bf16.mxu0 0
        %550 = vmatpush1.bf16.msra.mxu0 0
        %551 = vmatprep.subr.bf16.mxu0 0
        %552 = vmatpush1.bf16.msra.mxu0 0
        %553 = vmatprep.subr.bf16.mxu0 0
        %554 = vmatpush1.bf16.msra.mxu0 0
        %555 = vmatprep.subr.bf16.mxu0 0
        %556 = vmatpush1.bf16.msra.mxu0 0
        %557 = vmatprep.subr.bf16.mxu0 0
        %558 = vmatpush1.bf16.msra.mxu0 0
        %559 = vmatprep.subr.bf16.mxu0 0
        %560 = vmatpush1.bf16.msra.mxu0 0
        %561 = vmatprep.subr.bf16.mxu0 0
        %562 = vmatpush1.bf16.msra.mxu0 0
        %563 = vmatprep.subr.bf16.mxu0 0
        %564 = vmatpush1.bf16.msra.mxu0 0
        %565 = vmatprep.subr.bf16.mxu0 0
        %566 = vmatpush1.bf16.msra.mxu0 0
        %567 = vmatprep.subr.bf16.mxu0 0
        %568 = vmatpush1.bf16.msra.mxu0 0
        %569 = vmatprep.subr.bf16.mxu0 0
        %570 = vmatpush1.bf16.msra.mxu0 0
        %571 = vmatprep.mubr.bf16.mxu0 0
        %572 = vmatmul.mubr.bf16.gmra.mrb[0].mxu0 %v403
        %v573 = vpop.f32.mrb[0].mxu0
        %v574 = vadd.f32 0.0, %v573
        %v575 = vpop.f32.mrb[0].mxu0
        %v576 = vadd.f32 0.0, %v575
        %v577 = vpop.f32.mrb[0].mxu0
        %v578 = vpop.f32.mrb[0].mxu0
        %579 = vdwg.mxu0
        %580 = vmatprep.subr.bf16.mxu0 %v431
        %581 = vmatpush1.bf16.msra.mxu0 %v428
        %582 = vmatprep.subr.bf16.mxu0 0
        %583 = vmatpush1.bf16.msra.mxu0 0
        %584 = vmatprep.subr.bf16.mxu0 0
        %585 = vmatpush1.bf16.msra.mxu0 0
        %586 = vmatprep.subr.bf16.mxu0 0
        %587 = vmatpush1.bf16.msra.mxu0 0
        %588 = vmatprep.subr.bf16.mxu0 0
        %589 = vmatpush1.bf16.msra.mxu0 0
        %590 = vmatprep.subr.bf16.mxu0 0
        %591 = vmatpush1.bf16.msra.mxu0 0
        %592 = vmatprep.subr.bf16.mxu0 0
        %593 = vmatpush1.bf16.msra.mxu0 0
        %594 = vmatprep.subr.bf16.mxu0 0
        %595 = vmatpush1.bf16.msra.mxu0 0
        %596 = vmatprep.subr.bf16.mxu0 0
        %597 = vmatpush1.bf16.msra.mxu0 0
        %598 = vmatprep.subr.bf16.mxu0 0
        %599 = vmatpush1.bf16.msra.mxu0 0
        %600 = vmatprep.subr.bf16.mxu0 0
        %601 = vmatpush1.bf16.msra.mxu0 0
        %602 = vmatprep.subr.bf16.mxu0 0
        %603 = vmatpush1.bf16.msra.mxu0 0
        %604 = vmatprep.subr.bf16.mxu0 0
        %605 = vmatpush1.bf16.msra.mxu0 0
        %606 = vmatprep.subr.bf16.mxu0 0
        %607 = vmatpush1.bf16.msra.mxu0 0
        %608 = vmatprep.subr.bf16.mxu0 0
        %609 = vmatpush1.bf16.msra.mxu0 0
        %610 = vmatprep.subr.bf16.mxu0 0
        %611 = vmatpush1.bf16.msra.mxu0 0
        %612 = vmatprep.mubr.bf16.mxu0 0
        %613 = vmatmul.mubr.bf16.gmra.mrb[0].mxu0 %v403
        %v614 = vpop.f32.mrb[0].mxu0
        %v615 = vadd.f32 0.0, %v614
        %v616 = vpop.f32.mrb[0].mxu0
        %v617 = vadd.f32 0.0, %v616
        %v618 = vpop.f32.mrb[0].mxu0
        %v619 = vpop.f32.mrb[0].mxu0
        %620 = vdwg.mxu0
        %621 = vmatprep.subr.bf16.mxu0 %v437
        %622 = vmatpush1.bf16.msra.mxu0 %v434
        %623 = vmatprep.subr.bf16.mxu0 0
        %624 = vmatpush1.bf16.msra.mxu0 0
        %625 = vmatprep.subr.bf16.mxu0 0
        %626 = vmatpush1.bf16.msra.mxu0 0
        %627 = vmatprep.subr.bf16.mxu0 0
        %628 = vmatpush1.bf16.msra.mxu0 0
        %629 = vmatprep.subr.bf16.mxu0 0
        %630 = vmatpush1.bf16.msra.mxu0 0
        %631 = vmatprep.subr.bf16.mxu0 0
        %632 = vmatpush1.bf16.msra.mxu0 0
        %633 = vmatprep.subr.bf16.mxu0 0
        %634 = vmatpush1.bf16.msra.mxu0 0
        %635 = vmatprep.subr.bf16.mxu0 0
        %636 = vmatpush1.bf16.msra.mxu0 0
        %637 = vmatprep.subr.bf16.mxu0 0
        %638 = vmatpush1.bf16.msra.mxu0 0
        %639 = vmatprep.subr.bf16.mxu0 0
        %640 = vmatpush1.bf16.msra.mxu0 0
        %641 = vmatprep.subr.bf16.mxu0 0
        %642 = vmatpush1.bf16.msra.mxu0 0
        %643 = vmatprep.subr.bf16.mxu0 0
        %644 = vmatpush1.bf16.msra.mxu0 0
        %645 = vmatprep.subr.bf16.mxu0 0
        %646 = vmatpush1.bf16.msra.mxu0 0
        %647 = vmatprep.subr.bf16.mxu0 0
        %648 = vmatpush1.bf16.msra.mxu0 0
        %649 = vmatprep.subr.bf16.mxu0 0
        %650 = vmatpush1.bf16.msra.mxu0 0
        %651 = vmatprep.subr.bf16.mxu0 0
        %652 = vmatpush1.bf16.msra.mxu0 0
        %653 = vmatprep.mubr.bf16.mxu0 0
        %654 = vmatmul.mubr.bf16.gmra.mrb[0].mxu0 %v403
        %v655 = vpop.f32.mrb[0].mxu0
        %v656 = vadd.f32 0.0, %v655
        %v657 = vpop.f32.mrb[0].mxu0
        %v658 = vadd.f32 0.0, %v657
        %v659 = vpop.f32.mrb[0].mxu0
        %v660 = vpop.f32.mrb[0].mxu0
        %661 = vdwg.mxu0
        %662 = vmatprep.subr.bf16.mxu0 %v443
        %663 = vmatpush1.bf16.msra.mxu0 %v440
        %664 = vmatprep.subr.bf16.mxu0 0
        %665 = vmatpush1.bf16.msra.mxu0 0
        %666 = vmatprep.subr.bf16.mxu0 0
        %667 = vmatpush1.bf16.msra.mxu0 0
        %668 = vmatprep.subr.bf16.mxu0 0
        %669 = vmatpush1.bf16.msra.mxu0 0
        %670 = vmatprep.subr.bf16.mxu0 0
        %671 = vmatpush1.bf16.msra.mxu0 0
        %672 = vmatprep.subr.bf16.mxu0 0
        %673 = vmatpush1.bf16.msra.mxu0 0
        %674 = vmatprep.subr.bf16.mxu0 0
        %675 = vmatpush1.bf16.msra.mxu0 0
        %676 = vmatprep.subr.bf16.mxu0 0
        %677 = vmatpush1.bf16.msra.mxu0 0
        %678 = vmatprep.subr.bf16.mxu0 0
        %679 = vmatpush1.bf16.msra.mxu0 0
        %680 = vmatprep.subr.bf16.mxu0 0
        %681 = vmatpush1.bf16.msra.mxu0 0
        %682 = vmatprep.subr.bf16.mxu0 0
        %683 = vmatpush1.bf16.msra.mxu0 0
        %684 = vmatprep.subr.bf16.mxu0 0
        %685 = vmatpush1.bf16.msra.mxu0 0
        %686 = vmatprep.subr.bf16.mxu0 0
        %687 = vmatpush1.bf16.msra.mxu0 0
        %688 = vmatprep.subr.bf16.mxu0 0
        %689 = vmatpush1.bf16.msra.mxu0 0
        %690 = vmatprep.subr.bf16.mxu0 0
        %691 = vmatpush1.bf16.msra.mxu0 0
        %692 = vmatprep.subr.bf16.mxu0 0
        %693 = vmatpush1.bf16.msra.mxu0 0
        %694 = vmatprep.mubr.bf16.mxu0 0
        %695 = vmatmul.mubr.bf16.gmra.mrb[0].mxu0 %v403
        %v696 = vpop.f32.mrb[0].mxu0
        %v697 = vadd.f32 0.0, %v696
        %v698 = vpop.f32.mrb[0].mxu0
        %v699 = vadd.f32 0.0, %v698
        %v700 = vpop.f32.mrb[0].mxu0
        %v701 = vpop.f32.mrb[0].mxu0
        %702 = vdwg.mxu0
        %703 = vmatprep.subr.bf16.mxu0 %v449
        %704 = vmatpush1.bf16.msra.mxu0 %v446
        %705 = vmatprep.subr.bf16.mxu0 0
        %706 = vmatpush1.bf16.msra.mxu0 0
        %707 = vmatprep.subr.bf16.mxu0 0
        %708 = vmatpush1.bf16.msra.mxu0 0
        %709 = vmatprep.subr.bf16.mxu0 0
        %710 = vmatpush1.bf16.msra.mxu0 0
        %711 = vmatprep.subr.bf16.mxu0 0
        %712 = vmatpush1.bf16.msra.mxu0 0
        %713 = vmatprep.subr.bf16.mxu0 0
        %714 = vmatpush1.bf16.msra.mxu0 0
        %715 = vmatprep.subr.bf16.mxu0 0
        %716 = vmatpush1.bf16.msra.mxu0 0
        %717 = vmatprep.subr.bf16.mxu0 0
        %718 = vmatpush1.bf16.msra.mxu0 0
        %719 = vmatprep.subr.bf16.mxu0 0
        %720 = vmatpush1.bf16.msra.mxu0 0
        %721 = vmatprep.subr.bf16.mxu0 0
        %722 = vmatpush1.bf16.msra.mxu0 0
        %723 = vmatprep.subr.bf16.mxu0 0
        %724 = vmatpush1.bf16.msra.mxu0 0
        %725 = vmatprep.subr.bf16.mxu0 0
        %726 = vmatpush1.bf16.msra.mxu0 0
        %727 = vmatprep.subr.bf16.mxu0 0
        %728 = vmatpush1.bf16.msra.mxu0 0
        %729 = vmatprep.subr.bf16.mxu0 0
        %730 = vmatpush1.bf16.msra.mxu0 0
        %731 = vmatprep.subr.bf16.mxu0 0
        %732 = vmatpush1.bf16.msra.mxu0 0
        %733 = vmatprep.subr.bf16.mxu0 0
        %734 = vmatpush1.bf16.msra.mxu0 0
        %735 = vmatprep.mubr.bf16.mxu0 0
        %736 = vmatmul.mubr.bf16.gmra.mrb[0].mxu0 %v403
        %v737 = vpop.f32.mrb[0].mxu0
        %v738 = vadd.f32 0.0, %v737
        %v739 = vpop.f32.mrb[0].mxu0
        %v740 = vadd.f32 0.0, %v739
        %v741 = vpop.f32.mrb[0].mxu0
        %v742 = vpop.f32.mrb[0].mxu0
        %743 = vdwg.mxu0
        %744 = vmatprep.subr.bf16.mxu0 %v455
        %745 = vmatpush1.bf16.msra.mxu0 %v452
        %746 = vmatprep.subr.bf16.mxu0 0
        %747 = vmatpush1.bf16.msra.mxu0 0
        %748 = vmatprep.subr.bf16.mxu0 0
        %749 = vmatpush1.bf16.msra.mxu0 0
        %750 = vmatprep.subr.bf16.mxu0 0
        %751 = vmatpush1.bf16.msra.mxu0 0
        %752 = vmatprep.subr.bf16.mxu0 0
        %753 = vmatpush1.bf16.msra.mxu0 0
        %754 = vmatprep.subr.bf16.mxu0 0
        %755 = vmatpush1.bf16.msra.mxu0 0
        %756 = vmatprep.subr.bf16.mxu0 0
        %757 = vmatpush1.bf16.msra.mxu0 0
        %758 = vmatprep.subr.bf16.mxu0 0
        %759 = vmatpush1.bf16.msra.mxu0 0
        %760 = vmatprep.subr.bf16.mxu0 0
        %761 = vmatpush1.bf16.msra.mxu0 0
        %762 = vmatprep.subr.bf16.mxu0 0
        %763 = vmatpush1.bf16.msra.mxu0 0
        %764 = vmatprep.subr.bf16.mxu0 0
        %765 = vmatpush1.bf16.msra.mxu0 0
        %766 = vmatprep.subr.bf16.mxu0 0
        %767 = vmatpush1.bf16.msra.mxu0 0
        %768 = vmatprep.subr.bf16.mxu0 0
        %769 = vmatpush1.bf16.msra.mxu0 0
        %770 = vmatprep.subr.bf16.mxu0 0
        %771 = vmatpush1.bf16.msra.mxu0 0
        %772 = vmatprep.subr.bf16.mxu0 0
        %773 = vmatpush1.bf16.msra.mxu0 0
        %774 = vmatprep.subr.bf16.mxu0 0
        %775 = vmatpush1.bf16.msra.mxu0 0
        %776 = vmatprep.mubr.bf16.mxu0 0
        %777 = vmatmul.mubr.bf16.gmra.mrb[0].mxu0 %v403
        %v778 = vpop.f32.mrb[0].mxu0
        %v779 = vadd.f32 0.0, %v778
        %v780 = vpop.f32.mrb[0].mxu0
        %v781 = vadd.f32 0.0, %v780
        %v782 = vpop.f32.mrb[0].mxu0
        %v783 = vpop.f32.mrb[0].mxu0
        %784 = vdwg.mxu0
        %s785 = scalar_lea.vmem %s291, 128 [#allocation2]
        %v786 = vld [vmem:[%s785] sm:$0xff]
        %v787 = vld [vmem:[%s785 + $0x8] sm:$0xff]
        %v788 = vld [vmem:[%s785 + $0x10] sm:$0xff]
        %v789 = vld [vmem:[%s785 + $0x18] sm:$0xff]
        %v790 = vld [vmem:[%s785 + $0x20] sm:$0xff]
        %v791 = vld [vmem:[%s785 + $0x28] sm:$0xff]
        %v792 = vld [vmem:[%s785 + $0x30] sm:$0xff]
        %v793 = vld [vmem:[%s785 + $0x38] sm:$0xff]
        %v794 = vld [vmem:[%s785 + $0x40] sm:$0x11]
        %v795 = vld [vmem:[%s785 + $0x48] sm:$0x11]
        %v796 = vld [vmem:[%s785 + $0x50] sm:$0x11]
        %v797 = vld [vmem:[%s785 + $0x58] sm:$0x11]
        %v798 = vld [vmem:[%s785 + $0x60] sm:$0x11]
        %v799 = vld [vmem:[%s785 + $0x68] sm:$0x11]
        %v800 = vld [vmem:[%s785 + $0x70] sm:$0x11]
        %v801 = vld [vmem:[%s785 + $0x78] sm:$0x11]
        %v818 = vunpack.c.l.b16 %v786
        %v819 = vunpack.c.h.b16 %v786
        %v820 = vunpack.c.l.b16 %v787
        %v821 = vunpack.c.h.b16 %v787
        %v822 = vunpack.c.l.b16 %v788
        %v823 = vunpack.c.h.b16 %v788
        %v824 = vunpack.c.l.b16 %v789
        %v825 = vunpack.c.h.b16 %v789
        %v826 = vunpack.c.l.b16 %v790
        %v827 = vunpack.c.h.b16 %v790
        %v828 = vunpack.c.l.b16 %v791
        %v829 = vunpack.c.h.b16 %v791
        %v830 = vunpack.c.l.b16 %v792
        %v831 = vunpack.c.h.b16 %v792
        %v832 = vunpack.c.l.b16 %v793
        %v833 = vunpack.c.h.b16 %v793
        %v834 = vunpack.c.l.b16 %v794
        %v835 = vunpack.c.h.b16 %v794
        %v836 = vunpack.c.l.b16 %v795
        %v837 = vunpack.c.h.b16 %v795
        %v838 = vunpack.c.l.b16 %v796
        %v839 = vunpack.c.h.b16 %v796
        %v840 = vunpack.c.l.b16 %v797
        %v841 = vunpack.c.h.b16 %v797
        %v842 = vunpack.c.l.b16 %v798
        %v843 = vunpack.c.h.b16 %v798
        %v844 = vunpack.c.l.b16 %v799
        %v845 = vunpack.c.h.b16 %v799
        %v846 = vunpack.c.l.b16 %v800
        %v847 = vunpack.c.h.b16 %v800
        %v848 = vunpack.c.l.b16 %v801
        %v849 = vunpack.c.h.b16 %v801
        %v850 = vpack.c.b16 %v834, %v818
        %v851 = vpack.c.b16 %v835, %v819
        %v852 = vpack.c.b16 %v836, %v820
        %v853 = vpack.c.b16 %v837, %v821
        %v854 = vpack.c.b16 %v838, %v822
        %v855 = vpack.c.b16 %v839, %v823
        %v856 = vpack.c.b16 %v840, %v824
        %v857 = vpack.c.b16 %v841, %v825
        %v858 = vpack.c.b16 %v842, %v826
        %v859 = vpack.c.b16 %v843, %v827
        %v860 = vpack.c.b16 %v844, %v828
        %v861 = vpack.c.b16 %v845, %v829
        %v862 = vpack.c.b16 %v846, %v830
        %v863 = vpack.c.b16 %v847, %v831
        %v864 = vpack.c.b16 %v848, %v832
        %v865 = vpack.c.b16 %v849, %v833
        %v867 = vand.u32 %v850, %v408
        %v870 = vand.u32 %v851, %v408
        %v873 = vand.u32 %v852, %v408
        %v876 = vand.u32 %v853, %v408
        %v879 = vand.u32 %v854, %v408
        %v882 = vand.u32 %v855, %v408
        %v885 = vand.u32 %v856, %v408
        %v888 = vand.u32 %v857, %v408
        %v891 = vand.u32 %v858, %v408
        %v894 = vand.u32 %v859, %v408
        %v897 = vand.u32 %v860, %v408
        %v900 = vand.u32 %v861, %v408
        %v903 = vand.u32 %v862, %v408
        %v906 = vand.u32 %v863, %v408
        %v909 = vand.u32 %v864, %v408
        %v912 = vand.u32 %v865, %v408
        %914 = vmatprep.subr.bf16.mxu0 %v870
        %915 = vmatpush1.bf16.msra.mxu0 %v867
        %916 = vmatprep.subr.bf16.mxu0 0
        %917 = vmatpush1.bf16.msra.mxu0 0
        %918 = vmatprep.subr.bf16.mxu0 0
        %919 = vmatpush1.bf16.msra.mxu0 0
        %920 = vmatprep.subr.bf16.mxu0 0
        %921 = vmatpush1.bf16.msra.mxu0 0
        %922 = vmatprep.subr.bf16.mxu0 0
        %923 = vmatpush1.bf16.msra.mxu0 0
        %924 = vmatprep.subr.bf16.mxu0 0
        %925 = vmatpush1.bf16.msra.mxu0 0
        %926 = vmatprep.subr.bf16.mxu0 0
        %927 = vmatpush1.bf16.msra.mxu0 0
        %928 = vmatprep.subr.bf16.mxu0 0
        %929 = vmatpush1.bf16.msra.mxu0 0
        %930 = vmatprep.subr.bf16.mxu0 0
        %931 = vmatpush1.bf16.msra.mxu0 0
        %932 = vmatprep.subr.bf16.mxu0 0
        %933 = vmatpush1.bf16.msra.mxu0 0
        %934 = vmatprep.subr.bf16.mxu0 0
        %935 = vmatpush1.bf16.msra.mxu0 0
        %936 = vmatprep.subr.bf16.mxu0 0
        %937 = vmatpush1.bf16.msra.mxu0 0
        %938 = vmatprep.subr.bf16.mxu0 0
        %939 = vmatpush1.bf16.msra.mxu0 0
        %940 = vmatprep.subr.bf16.mxu0 0
        %941 = vmatpush1.bf16.msra.mxu0 0
        %942 = vmatprep.subr.bf16.mxu0 0
        %943 = vmatpush1.bf16.msra.mxu0 0
        %944 = vmatprep.subr.bf16.mxu0 0
        %945 = vmatpush1.bf16.msra.mxu0 0
        %946 = vmatprep.mubr.bf16.mxu0 0
        %947 = vmatmul.mubr.bf16.gmra.mrb[0].mxu0 %v403
        %v948 = vpop.f32.mrb[0].mxu0
        %v949 = vadd.f32 0.0, %v948
        %v950 = vpop.f32.mrb[0].mxu0
        %v951 = vadd.f32 0.0, %v950
        %v952 = vpop.f32.mrb[0].mxu0
        %v953 = vpop.f32.mrb[0].mxu0
        %954 = vdwg.mxu0
        %955 = vmatprep.subr.bf16.mxu0 %v876
        %956 = vmatpush1.bf16.msra.mxu0 %v873
        %957 = vmatprep.subr.bf16.mxu0 0
        %958 = vmatpush1.bf16.msra.mxu0 0
        %959 = vmatprep.subr.bf16.mxu0 0
        %960 = vmatpush1.bf16.msra.mxu0 0
        %961 = vmatprep.subr.bf16.mxu0 0
        %962 = vmatpush1.bf16.msra.mxu0 0
        %963 = vmatprep.subr.bf16.mxu0 0
        %964 = vmatpush1.bf16.msra.mxu0 0
        %965 = vmatprep.subr.bf16.mxu0 0
        %966 = vmatpush1.bf16.msra.mxu0 0
        %967 = vmatprep.subr.bf16.mxu0 0
        %968 = vmatpush1.bf16.msra.mxu0 0
        %969 = vmatprep.subr.bf16.mxu0 0
        %970 = vmatpush1.bf16.msra.mxu0 0
        %971 = vmatprep.subr.bf16.mxu0 0
        %972 = vmatpush1.bf16.msra.mxu0 0
        %973 = vmatprep.subr.bf16.mxu0 0
        %974 = vmatpush1.bf16.msra.mxu0 0
        %975 = vmatprep.subr.bf16.mxu0 0
        %976 = vmatpush1.bf16.msra.mxu0 0
        %977 = vmatprep.subr.bf16.mxu0 0
        %978 = vmatpush1.bf16.msra.mxu0 0
        %979 = vmatprep.subr.bf16.mxu0 0
        %980 = vmatpush1.bf16.msra.mxu0 0
        %981 = vmatprep.subr.bf16.mxu0 0
        %982 = vmatpush1.bf16.msra.mxu0 0
        %983 = vmatprep.subr.bf16.mxu0 0
        %984 = vmatpush1.bf16.msra.mxu0 0
        %985 = vmatprep.subr.bf16.mxu0 0
        %986 = vmatpush1.bf16.msra.mxu0 0
        %987 = vmatprep.mubr.bf16.mxu0 0
        %988 = vmatmul.mubr.bf16.gmra.mrb[0].mxu0 %v403
        %v989 = vpop.f32.mrb[0].mxu0
        %v990 = vadd.f32 0.0, %v989
        %v991 = vpop.f32.mrb[0].mxu0
        %v992 = vadd.f32 0.0, %v991
        %v993 = vpop.f32.mrb[0].mxu0
        %v994 = vpop.f32.mrb[0].mxu0
        %995 = vdwg.mxu0
        %996 = vmatprep.subr.bf16.mxu0 %v882
        %997 = vmatpush1.bf16.msra.mxu0 %v879
        %998 = vmatprep.subr.bf16.mxu0 0
        %999 = vmatpush1.bf16.msra.mxu0 0
        %1000 = vmatprep.subr.bf16.mxu0 0
        %1001 = vmatpush1.bf16.msra.mxu0 0
        %1002 = vmatprep.subr.bf16.mxu0 0
        %1003 = vmatpush1.bf16.msra.mxu0 0
        %1004 = vmatprep.subr.bf16.mxu0 0
        %1005 = vmatpush1.bf16.msra.mxu0 0
        %1006 = vmatprep.subr.bf16.mxu0 0
        %1007 = vmatpush1.bf16.msra.mxu0 0
        %1008 = vmatprep.subr.bf16.mxu0 0
        %1009 = vmatpush1.bf16.msra.mxu0 0
        %1010 = vmatprep.subr.bf16.mxu0 0
        %1011 = vmatpush1.bf16.msra.mxu0 0
        %1012 = vmatprep.subr.bf16.mxu0 0
        %1013 = vmatpush1.bf16.msra.mxu0 0
        %1014 = vmatprep.subr.bf16.mxu0 0
        %1015 = vmatpush1.bf16.msra.mxu0 0
        %1016 = vmatprep.subr.bf16.mxu0 0
        %1017 = vmatpush1.bf16.msra.mxu0 0
        %1018 = vmatprep.subr.bf16.mxu0 0
        %1019 = vmatpush1.bf16.msra.mxu0 0
        %1020 = vmatprep.subr.bf16.mxu0 0
        %1021 = vmatpush1.bf16.msra.mxu0 0
        %1022 = vmatprep.subr.bf16.mxu0 0
        %1023 = vmatpush1.bf16.msra.mxu0 0
        %1024 = vmatprep.subr.bf16.mxu0 0
        %1025 = vmatpush1.bf16.msra.mxu0 0
        %1026 = vmatprep.subr.bf16.mxu0 0
        %1027 = vmatpush1.bf16.msra.mxu0 0
        %1028 = vmatprep.mubr.bf16.mxu0 0
        %1029 = vmatmul.mubr.bf16.gmra.mrb[0].mxu0 %v403
        %v1030 = vpop.f32.mrb[0].mxu0
        %v1031 = vadd.f32 0.0, %v1030
        %v1032 = vpop.f32.mrb[0].mxu0
        %v1033 = vadd.f32 0.0, %v1032
        %v1034 = vpop.f32.mrb[0].mxu0
        %v1035 = vpop.f32.mrb[0].mxu0
        %1036 = vdwg.mxu0
        %1037 = vmatprep.subr.bf16.mxu0 %v888
        %1038 = vmatpush1.bf16.msra.mxu0 %v885
        %1039 = vmatprep.subr.bf16.mxu0 0
        %1040 = vmatpush1.bf16.msra.mxu0 0
        %1041 = vmatprep.subr.bf16.mxu0 0
        %1042 = vmatpush1.bf16.msra.mxu0 0
        %1043 = vmatprep.subr.bf16.mxu0 0
        %1044 = vmatpush1.bf16.msra.mxu0 0
        %1045 = vmatprep.subr.bf16.mxu0 0
        %1046 = vmatpush1.bf16.msra.mxu0 0
        %1047 = vmatprep.subr.bf16.mxu0 0
        %1048 = vmatpush1.bf16.msra.mxu0 0
        %1049 = vmatprep.subr.bf16.mxu0 0
        %1050 = vmatpush1.bf16.msra.mxu0 0
        %1051 = vmatprep.subr.bf16.mxu0 0
        %1052 = vmatpush1.bf16.msra.mxu0 0
        %1053 = vmatprep.subr.bf16.mxu0 0
        %1054 = vmatpush1.bf16.msra.mxu0 0
        %1055 = vmatprep.subr.bf16.mxu0 0
        %1056 = vmatpush1.bf16.msra.mxu0 0
        %1057 = vmatprep.subr.bf16.mxu0 0
        %1058 = vmatpush1.bf16.msra.mxu0 0
        %1059 = vmatprep.subr.bf16.mxu0 0
        %1060 = vmatpush1.bf16.msra.mxu0 0
        %1061 = vmatprep.subr.bf16.mxu0 0
        %1062 = vmatpush1.bf16.msra.mxu0 0
        %1063 = vmatprep.subr.bf16.mxu0 0
        %1064 = vmatpush1.bf16.msra.mxu0 0
        %1065 = vmatprep.subr.bf16.mxu0 0
        %1066 = vmatpush1.bf16.msra.mxu0 0
        %1067 = vmatprep.subr.bf16.mxu0 0
        %1068 = vmatpush1.bf16.msra.mxu0 0
        %1069 = vmatprep.mubr.bf16.mxu0 0
        %1070 = vmatmul.mubr.bf16.gmra.mrb[0].mxu0 %v403
        %v1071 = vpop.f32.mrb[0].mxu0
        %v1072 = vadd.f32 0.0, %v1071
        %v1073 = vpop.f32.mrb[0].mxu0
        %v1074 = vadd.f32 0.0, %v1073
        %v1075 = vpop.f32.mrb[0].mxu0
        %v1076 = vpop.f32.mrb[0].mxu0
        %1077 = vdwg.mxu0
        %1078 = vmatprep.subr.bf16.mxu0 %v894
        %1079 = vmatpush1.bf16.msra.mxu0 %v891
        %1080 = vmatprep.subr.bf16.mxu0 0
        %1081 = vmatpush1.bf16.msra.mxu0 0
        %1082 = vmatprep.subr.bf16.mxu0 0
        %1083 = vmatpush1.bf16.msra.mxu0 0
        %1084 = vmatprep.subr.bf16.mxu0 0
        %1085 = vmatpush1.bf16.msra.mxu0 0
        %1086 = vmatprep.subr.bf16.mxu0 0
        %1087 = vmatpush1.bf16.msra.mxu0 0
        %1088 = vmatprep.subr.bf16.mxu0 0
        %1089 = vmatpush1.bf16.msra.mxu0 0
        %1090 = vmatprep.subr.bf16.mxu0 0
        %1091 = vmatpush1.bf16.msra.mxu0 0
        %1092 = vmatprep.subr.bf16.mxu0 0
        %1093 = vmatpush1.bf16.msra.mxu0 0
        %1094 = vmatprep.subr.bf16.mxu0 0
        %1095 = vmatpush1.bf16.msra.mxu0 0
        %1096 = vmatprep.subr.bf16.mxu0 0
        %1097 = vmatpush1.bf16.msra.mxu0 0
        %1098 = vmatprep.subr.bf16.mxu0 0
        %1099 = vmatpush1.bf16.msra.mxu0 0
        %1100 = vmatprep.subr.bf16.mxu0 0
        %1101 = vmatpush1.bf16.msra.mxu0 0
        %1102 = vmatprep.subr.bf16.mxu0 0
        %1103 = vmatpush1.bf16.msra.mxu0 0
        %1104 = vmatprep.subr.bf16.mxu0 0
        %1105 = vmatpush1.bf16.msra.mxu0 0
        %1106 = vmatprep.subr.bf16.mxu0 0
        %1107 = vmatpush1.bf16.msra.mxu0 0
        %1108 = vmatprep.subr.bf16.mxu0 0
        %1109 = vmatpush1.bf16.msra.mxu0 0
        %1110 = vmatprep.mubr.bf16.mxu0 0
        %1111 = vmatmul.mubr.bf16.gmra.mrb[0].mxu0 %v403
        %v1112 = vpop.f32.mrb[0].mxu0
        %v1113 = vadd.f32 0.0, %v1112
        %v1114 = vpop.f32.mrb[0].mxu0
        %v1115 = vadd.f32 0.0, %v1114
        %v1116 = vpop.f32.mrb[0].mxu0
        %v1117 = vpop.f32.mrb[0].mxu0
        %1118 = vdwg.mxu0
        %1119 = vmatprep.subr.bf16.mxu0 %v900
        %1120 = vmatpush1.bf16.msra.mxu0 %v897
        %1121 = vmatprep.subr.bf16.mxu0 0
        %1122 = vmatpush1.bf16.msra.mxu0 0
        %1123 = vmatprep.subr.bf16.mxu0 0
        %1124 = vmatpush1.bf16.msra.mxu0 0
        %1125 = vmatprep.subr.bf16.mxu0 0
        %1126 = vmatpush1.bf16.msra.mxu0 0
        %1127 = vmatprep.subr.bf16.mxu0 0
        %1128 = vmatpush1.bf16.msra.mxu0 0
        %1129 = vmatprep.subr.bf16.mxu0 0
        %1130 = vmatpush1.bf16.msra.mxu0 0
        %1131 = vmatprep.subr.bf16.mxu0 0
        %1132 = vmatpush1.bf16.msra.mxu0 0
        %1133 = vmatprep.subr.bf16.mxu0 0
        %1134 = vmatpush1.bf16.msra.mxu0 0
        %1135 = vmatprep.subr.bf16.mxu0 0
        %1136 = vmatpush1.bf16.msra.mxu0 0
        %1137 = vmatprep.subr.bf16.mxu0 0
        %1138 = vmatpush1.bf16.msra.mxu0 0
        %1139 = vmatprep.subr.bf16.mxu0 0
        %1140 = vmatpush1.bf16.msra.mxu0 0
        %1141 = vmatprep.subr.bf16.mxu0 0
        %1142 = vmatpush1.bf16.msra.mxu0 0
        %1143 = vmatprep.subr.bf16.mxu0 0
        %1144 = vmatpush1.bf16.msra.mxu0 0
        %1145 = vmatprep.subr.bf16.mxu0 0
        %1146 = vmatpush1.bf16.msra.mxu0 0
        %1147 = vmatprep.subr.bf16.mxu0 0
        %1148 = vmatpush1.bf16.msra.mxu0 0
        %1149 = vmatprep.subr.bf16.mxu0 0
        %1150 = vmatpush1.bf16.msra.mxu0 0
        %1151 = vmatprep.mubr.bf16.mxu0 0
        %1152 = vmatmul.mubr.bf16.gmra.mrb[0].mxu0 %v403
        %v1153 = vpop.f32.mrb[0].mxu0
        %v1154 = vadd.f32 0.0, %v1153
        %v1155 = vpop.f32.mrb[0].mxu0
        %v1156 = vadd.f32 0.0, %v1155
        %v1157 = vpop.f32.mrb[0].mxu0
        %v1158 = vpop.f32.mrb[0].mxu0
        %1159 = vdwg.mxu0
        %1160 = vmatprep.subr.bf16.mxu0 %v906
        %1161 = vmatpush1.bf16.msra.mxu0 %v903
        %1162 = vmatprep.subr.bf16.mxu0 0
        %1163 = vmatpush1.bf16.msra.mxu0 0
        %1164 = vmatprep.subr.bf16.mxu0 0
        %1165 = vmatpush1.bf16.msra.mxu0 0
        %1166 = vmatprep.subr.bf16.mxu0 0
        %1167 = vmatpush1.bf16.msra.mxu0 0
        %1168 = vmatprep.subr.bf16.mxu0 0
        %1169 = vmatpush1.bf16.msra.mxu0 0
        %1170 = vmatprep.subr.bf16.mxu0 0
        %1171 = vmatpush1.bf16.msra.mxu0 0
        %1172 = vmatprep.subr.bf16.mxu0 0
        %1173 = vmatpush1.bf16.msra.mxu0 0
        %1174 = vmatprep.subr.bf16.mxu0 0
        %1175 = vmatpush1.bf16.msra.mxu0 0
        %1176 = vmatprep.subr.bf16.mxu0 0
        %1177 = vmatpush1.bf16.msra.mxu0 0
        %1178 = vmatprep.subr.bf16.mxu0 0
        %1179 = vmatpush1.bf16.msra.mxu0 0
        %1180 = vmatprep.subr.bf16.mxu0 0
        %1181 = vmatpush1.bf16.msra.mxu0 0
        %1182 = vmatprep.subr.bf16.mxu0 0
        %1183 = vmatpush1.bf16.msra.mxu0 0
        %1184 = vmatprep.subr.bf16.mxu0 0
        %1185 = vmatpush1.bf16.msra.mxu0 0
        %1186 = vmatprep.subr.bf16.mxu0 0
        %1187 = vmatpush1.bf16.msra.mxu0 0
        %1188 = vmatprep.subr.bf16.mxu0 0
        %1189 = vmatpush1.bf16.msra.mxu0 0
        %1190 = vmatprep.subr.bf16.mxu0 0
        %1191 = vmatpush1.bf16.msra.mxu0 0
        %1192 = vmatprep.mubr.bf16.mxu0 0
        %1193 = vmatmul.mubr.bf16.gmra.mrb[0].mxu0 %v403
        %v1194 = vpop.f32.mrb[0].mxu0
        %v1195 = vadd.f32 0.0, %v1194
        %v1196 = vpop.f32.mrb[0].mxu0
        %v1197 = vadd.f32 0.0, %v1196
        %v1198 = vpop.f32.mrb[0].mxu0
        %v1199 = vpop.f32.mrb[0].mxu0
        %1200 = vdwg.mxu0
        %1201 = vmatprep.subr.bf16.mxu0 %v912
        %1202 = vmatpush1.bf16.msra.mxu0 %v909
        %1203 = vmatprep.subr.bf16.mxu0 0
        %1204 = vmatpush1.bf16.msra.mxu0 0
        %1205 = vmatprep.subr.bf16.mxu0 0
        %1206 = vmatpush1.bf16.msra.mxu0 0
        %1207 = vmatprep.subr.bf16.mxu0 0
        %1208 = vmatpush1.bf16.msra.mxu0 0
        %1209 = vmatprep.subr.bf16.mxu0 0
        %1210 = vmatpush1.bf16.msra.mxu0 0
        %1211 = vmatprep.subr.bf16.mxu0 0
        %1212 = vmatpush1.bf16.msra.mxu0 0
        %1213 = vmatprep.subr.bf16.mxu0 0
        %1214 = vmatpush1.bf16.msra.mxu0 0
        %1215 = vmatprep.subr.bf16.mxu0 0
        %1216 = vmatpush1.bf16.msra.mxu0 0
        %1217 = vmatprep.subr.bf16.mxu0 0
        %1218 = vmatpush1.bf16.msra.mxu0 0
        %1219 = vmatprep.subr.bf16.mxu0 0
        %1220 = vmatpush1.bf16.msra.mxu0 0
        %1221 = vmatprep.subr.bf16.mxu0 0
        %1222 = vmatpush1.bf16.msra.mxu0 0
        %1223 = vmatprep.subr.bf16.mxu0 0
        %1224 = vmatpush1.bf16.msra.mxu0 0
        %1225 = vmatprep.subr.bf16.mxu0 0
        %1226 = vmatpush1.bf16.msra.mxu0 0
        %1227 = vmatprep.subr.bf16.mxu0 0
        %1228 = vmatpush1.bf16.msra.mxu0 0
        %1229 = vmatprep.subr.bf16.mxu0 0
        %1230 = vmatpush1.bf16.msra.mxu0 0
        %1231 = vmatprep.subr.bf16.mxu0 0
        %1232 = vmatpush1.bf16.msra.mxu0 0
        %1233 = vmatprep.mubr.bf16.mxu0 0
        %1234 = vmatmul.mubr.bf16.gmra.mrb[0].mxu0 %v403
        %v1235 = vpop.f32.mrb[0].mxu0
        %v1236 = vadd.f32 0.0, %v1235
        %v1237 = vpop.f32.mrb[0].mxu0
        %v1238 = vadd.f32 0.0, %v1237
        %v1239 = vpop.f32.mrb[0].mxu0
        %v1240 = vpop.f32.mrb[0].mxu0
        %1241 = vdwg.mxu0
        %v1242 = vmax.f32 %v492, %v949
        %v1243 = vmax.f32 %v494, %v951
        %v1244 = vmax.f32 %v533, %v990
        %v1245 = vmax.f32 %v535, %v992
        %v1246 = vmax.f32 %v574, %v1031
        %v1247 = vmax.f32 %v576, %v1033
        %v1248 = vmax.f32 %v615, %v1072
        %v1249 = vmax.f32 %v617, %v1074
        %v1250 = vmax.f32 %v656, %v1113
        %v1251 = vmax.f32 %v658, %v1115
        %v1252 = vmax.f32 %v697, %v1154
        %v1253 = vmax.f32 %v699, %v1156
        %v1254 = vmax.f32 %v738, %v1195
        %v1255 = vmax.f32 %v740, %v1197
        %v1256 = vmax.f32 %v779, %v1236
        %v1257 = vmax.f32 %v781, %v1238
        %s1258 = scalar_lea.vmem %s291, 256 [#allocation2]
        %v1259 = vld [vmem:[%s1258] sm:$0xff]
        %v1260 = vld [vmem:[%s1258 + $0x8] sm:$0xff]
        %v1261 = vld [vmem:[%s1258 + $0x10] sm:$0xff]
        %v1262 = vld [vmem:[%s1258 + $0x18] sm:$0xff]
        %v1263 = vld [vmem:[%s1258 + $0x20] sm:$0xff]
        %v1264 = vld [vmem:[%s1258 + $0x28] sm:$0xff]
        %v1265 = vld [vmem:[%s1258 + $0x30] sm:$0xff]
        %v1266 = vld [vmem:[%s1258 + $0x38] sm:$0xff]
        %v1267 = vld [vmem:[%s1258 + $0x40] sm:$0x11]
        %v1268 = vld [vmem:[%s1258 + $0x48] sm:$0x11]
        %v1269 = vld [vmem:[%s1258 + $0x50] sm:$0x11]
        %v1270 = vld [vmem:[%s1258 + $0x58] sm:$0x11]
        %v1271 = vld [vmem:[%s1258 + $0x60] sm:$0x11]
        %v1272 = vld [vmem:[%s1258 + $0x68] sm:$0x11]
        %v1273 = vld [vmem:[%s1258 + $0x70] sm:$0x11]
        %v1274 = vld [vmem:[%s1258 + $0x78] sm:$0x11]
        %v1291 = vunpack.c.l.b16 %v1259
        %v1292 = vunpack.c.h.b16 %v1259
        %v1293 = vunpack.c.l.b16 %v1260
        %v1294 = vunpack.c.h.b16 %v1260
        %v1295 = vunpack.c.l.b16 %v1261
        %v1296 = vunpack.c.h.b16 %v1261
        %v1297 = vunpack.c.l.b16 %v1262
        %v1298 = vunpack.c.h.b16 %v1262
        %v1299 = vunpack.c.l.b16 %v1263
        %v1300 = vunpack.c.h.b16 %v1263
        %v1301 = vunpack.c.l.b16 %v1264
        %v1302 = vunpack.c.h.b16 %v1264
        %v1303 = vunpack.c.l.b16 %v1265
        %v1304 = vunpack.c.h.b16 %v1265
        %v1305 = vunpack.c.l.b16 %v1266
        %v1306 = vunpack.c.h.b16 %v1266
        %v1307 = vunpack.c.l.b16 %v1267
        %v1308 = vunpack.c.h.b16 %v1267
        %v1309 = vunpack.c.l.b16 %v1268
        %v1310 = vunpack.c.h.b16 %v1268
        %v1311 = vunpack.c.l.b16 %v1269
        %v1312 = vunpack.c.h.b16 %v1269
        %v1313 = vunpack.c.l.b16 %v1270
        %v1314 = vunpack.c.h.b16 %v1270
        %v1315 = vunpack.c.l.b16 %v1271
        %v1316 = vunpack.c.h.b16 %v1271
        %v1317 = vunpack.c.l.b16 %v1272
        %v1318 = vunpack.c.h.b16 %v1272
        %v1319 = vunpack.c.l.b16 %v1273
        %v1320 = vunpack.c.h.b16 %v1273
        %v1321 = vunpack.c.l.b16 %v1274
        %v1322 = vunpack.c.h.b16 %v1274
        %v1323 = vpack.c.b16 %v1307, %v1291
        %v1324 = vpack.c.b16 %v1308, %v1292
        %v1325 = vpack.c.b16 %v1309, %v1293
        %v1326 = vpack.c.b16 %v1310, %v1294
        %v1327 = vpack.c.b16 %v1311, %v1295
        %v1328 = vpack.c.b16 %v1312, %v1296
        %v1329 = vpack.c.b16 %v1313, %v1297
        %v1330 = vpack.c.b16 %v1314, %v1298
        %v1331 = vpack.c.b16 %v1315, %v1299
        %v1332 = vpack.c.b16 %v1316, %v1300
        %v1333 = vpack.c.b16 %v1317, %v1301
        %v1334 = vpack.c.b16 %v1318, %v1302
        %v1335 = vpack.c.b16 %v1319, %v1303
        %v1336 = vpack.c.b16 %v1320, %v1304
        %v1337 = vpack.c.b16 %v1321, %v1305
        %v1338 = vpack.c.b16 %v1322, %v1306
        %v1340 = vand.u32 %v1323, %v408
        %v1343 = vand.u32 %v1324, %v408
        %v1346 = vand.u32 %v1325, %v408
        %v1349 = vand.u32 %v1326, %v408
        %v1352 = vand.u32 %v1327, %v408
        %v1355 = vand.u32 %v1328, %v408
        %v1358 = vand.u32 %v1329, %v408
        %v1361 = vand.u32 %v1330, %v408
        %v1364 = vand.u32 %v1331, %v408
        %v1367 = vand.u32 %v1332, %v408
        %v1370 = vand.u32 %v1333, %v408
        %v1373 = vand.u32 %v1334, %v408
        %v1376 = vand.u32 %v1335, %v408
        %v1379 = vand.u32 %v1336, %v408
        %v1382 = vand.u32 %v1337, %v408
        %v1385 = vand.u32 %v1338, %v408
        %1387 = vmatprep.subr.bf16.mxu0 %v1343
        %1388 = vmatpush1.bf16.msra.mxu0 %v1340
        %1389 = vmatprep.subr.bf16.mxu0 0
        %1390 = vmatpush1.bf16.msra.mxu0 0
        %1391 = vmatprep.subr.bf16.mxu0 0
        %1392 = vmatpush1.bf16.msra.mxu0 0
        %1393 = vmatprep.subr.bf16.mxu0 0
        %1394 = vmatpush1.bf16.msra.mxu0 0
        %1395 = vmatprep.subr.bf16.mxu0 0
        %1396 = vmatpush1.bf16.msra.mxu0 0
        %1397 = vmatprep.subr.bf16.mxu0 0
        %1398 = vmatpush1.bf16.msra.mxu0 0
        %1399 = vmatprep.subr.bf16.mxu0 0
        %1400 = vmatpush1.bf16.msra.mxu0 0
        %1401 = vmatprep.subr.bf16.mxu0 0
        %1402 = vmatpush1.bf16.msra.mxu0 0
        %1403 = vmatprep.subr.bf16.mxu0 0
        %1404 = vmatpush1.bf16.msra.mxu0 0
        %1405 = vmatprep.subr.bf16.mxu0 0
        %1406 = vmatpush1.bf16.msra.mxu0 0
        %1407 = vmatprep.subr.bf16.mxu0 0
        %1408 = vmatpush1.bf16.msra.mxu0 0
        %1409 = vmatprep.subr.bf16.mxu0 0
        %1410 = vmatpush1.bf16.msra.mxu0 0
        %1411 = vmatprep.subr.bf16.mxu0 0
        %1412 = vmatpush1.bf16.msra.mxu0 0
        %1413 = vmatprep.subr.bf16.mxu0 0
        %1414 = vmatpush1.bf16.msra.mxu0 0
        %1415 = vmatprep.subr.bf16.mxu0 0
        %1416 = vmatpush1.bf16.msra.mxu0 0
        %1417 = vmatprep.subr.bf16.mxu0 0
        %1418 = vmatpush1.bf16.msra.mxu0 0
        %1419 = vmatprep.mubr.bf16.mxu0 0
        %1420 = vmatmul.mubr.bf16.gmra.mrb[0].mxu0 %v403
        %v1421 = vpop.f32.mrb[0].mxu0
        %v1422 = vadd.f32 0.0, %v1421
        %v1423 = vpop.f32.mrb[0].mxu0
        %v1424 = vadd.f32 0.0, %v1423
        %v1425 = vpop.f32.mrb[0].mxu0
        %v1426 = vpop.f32.mrb[0].mxu0
        %1427 = vdwg.mxu0
        %1428 = vmatprep.subr.bf16.mxu0 %v1349
        %1429 = vmatpush1.bf16.msra.mxu0 %v1346
        %1430 = vmatprep.subr.bf16.mxu0 0
        %1431 = vmatpush1.bf16.msra.mxu0 0
        %1432 = vmatprep.subr.bf16.mxu0 0
        %1433 = vmatpush1.bf16.msra.mxu0 0
        %1434 = vmatprep.subr.bf16.mxu0 0
        %1435 = vmatpush1.bf16.msra.mxu0 0
        %1436 = vmatprep.subr.bf16.mxu0 0
        %1437 = vmatpush1.bf16.msra.mxu0 0
        %1438 = vmatprep.subr.bf16.mxu0 0
        %1439 = vmatpush1.bf16.msra.mxu0 0
        %1440 = vmatprep.subr.bf16.mxu0 0
        %1441 = vmatpush1.bf16.msra.mxu0 0
        %1442 = vmatprep.subr.bf16.mxu0 0
        %1443 = vmatpush1.bf16.msra.mxu0 0
        %1444 = vmatprep.subr.bf16.mxu0 0
        %1445 = vmatpush1.bf16.msra.mxu0 0
        %1446 = vmatprep.subr.bf16.mxu0 0
        %1447 = vmatpush1.bf16.msra.mxu0 0
        %1448 = vmatprep.subr.bf16.mxu0 0
        %1449 = vmatpush1.bf16.msra.mxu0 0
        %1450 = vmatprep.subr.bf16.mxu0 0
        %1451 = vmatpush1.bf16.msra.mxu0 0
        %1452 = vmatprep.subr.bf16.mxu0 0
        %1453 = vmatpush1.bf16.msra.mxu0 0
        %1454 = vmatprep.subr.bf16.mxu0 0
        %1455 = vmatpush1.bf16.msra.mxu0 0
        %1456 = vmatprep.subr.bf16.mxu0 0
        %1457 = vmatpush1.bf16.msra.mxu0 0
        %1458 = vmatprep.subr.bf16.mxu0 0
        %1459 = vmatpush1.bf16.msra.mxu0 0
        %1460 = vmatprep.mubr.bf16.mxu0 0
        %1461 = vmatmul.mubr.bf16.gmra.mrb[0].mxu0 %v403
        %v1462 = vpop.f32.mrb[0].mxu0
        %v1463 = vadd.f32 0.0, %v1462
        %v1464 = vpop.f32.mrb[0].mxu0
        %v1465 = vadd.f32 0.0, %v1464
        %v1466 = vpop.f32.mrb[0].mxu0
        %v1467 = vpop.f32.mrb[0].mxu0
        %1468 = vdwg.mxu0
        %1469 = vmatprep.subr.bf16.mxu0 %v1355
        %1470 = vmatpush1.bf16.msra.mxu0 %v1352
        %1471 = vmatprep.subr.bf16.mxu0 0
        %1472 = vmatpush1.bf16.msra.mxu0 0
        %1473 = vmatprep.subr.bf16.mxu0 0
        %1474 = vmatpush1.bf16.msra.mxu0 0
        %1475 = vmatprep.subr.bf16.mxu0 0
        %1476 = vmatpush1.bf16.msra.mxu0 0
        %1477 = vmatprep.subr.bf16.mxu0 0
        %1478 = vmatpush1.bf16.msra.mxu0 0
        %1479 = vmatprep.subr.bf16.mxu0 0
        %1480 = vmatpush1.bf16.msra.mxu0 0
        %1481 = vmatprep.subr.bf16.mxu0 0
        %1482 = vmatpush1.bf16.msra.mxu0 0
        %1483 = vmatprep.subr.bf16.mxu0 0
        %1484 = vmatpush1.bf16.msra.mxu0 0
        %1485 = vmatprep.subr.bf16.mxu0 0
        %1486 = vmatpush1.bf16.msra.mxu0 0
        %1487 = vmatprep.subr.bf16.mxu0 0
        %1488 = vmatpush1.bf16.msra.mxu0 0
        %1489 = vmatprep.subr.bf16.mxu0 0
        %1490 = vmatpush1.bf16.msra.mxu0 0
        %1491 = vmatprep.subr.bf16.mxu0 0
        %1492 = vmatpush1.bf16.msra.mxu0 0
        %1493 = vmatprep.subr.bf16.mxu0 0
        %1494 = vmatpush1.bf16.msra.mxu0 0
        %1495 = vmatprep.subr.bf16.mxu0 0
        %1496 = vmatpush1.bf16.msra.mxu0 0
        %1497 = vmatprep.subr.bf16.mxu0 0
        %1498 = vmatpush1.bf16.msra.mxu0 0
        %1499 = vmatprep.subr.bf16.mxu0 0
        %1500 = vmatpush1.bf16.msra.mxu0 0
        %1501 = vmatprep.mubr.bf16.mxu0 0
        %1502 = vmatmul.mubr.bf16.gmra.mrb[0].mxu0 %v403
        %v1503 = vpop.f32.mrb[0].mxu0
        %v1504 = vadd.f32 0.0, %v1503
        %v1505 = vpop.f32.mrb[0].mxu0
        %v1506 = vadd.f32 0.0, %v1505
        %v1507 = vpop.f32.mrb[0].mxu0
        %v1508 = vpop.f32.mrb[0].mxu0
        %1509 = vdwg.mxu0
        %1510 = vmatprep.subr.bf16.mxu0 %v1361
        %1511 = vmatpush1.bf16.msra.mxu0 %v1358
        %1512 = vmatprep.subr.bf16.mxu0 0
        %1513 = vmatpush1.bf16.msra.mxu0 0
        %1514 = vmatprep.subr.bf16.mxu0 0
        %1515 = vmatpush1.bf16.msra.mxu0 0
        %1516 = vmatprep.subr.bf16.mxu0 0
        %1517 = vmatpush1.bf16.msra.mxu0 0
        %1518 = vmatprep.subr.bf16.mxu0 0
        %1519 = vmatpush1.bf16.msra.mxu0 0
        %1520 = vmatprep.subr.bf16.mxu0 0
        %1521 = vmatpush1.bf16.msra.mxu0 0
        %1522 = vmatprep.subr.bf16.mxu0 0
        %1523 = vmatpush1.bf16.msra.mxu0 0
        %1524 = vmatprep.subr.bf16.mxu0 0
        %1525 = vmatpush1.bf16.msra.mxu0 0
        %1526 = vmatprep.subr.bf16.mxu0 0
        %1527 = vmatpush1.bf16.msra.mxu0 0
        %1528 = vmatprep.subr.bf16.mxu0 0
        %1529 = vmatpush1.bf16.msra.mxu0 0
        %1530 = vmatprep.subr.bf16.mxu0 0
        %1531 = vmatpush1.bf16.msra.mxu0 0
        %1532 = vmatprep.subr.bf16.mxu0 0
        %1533 = vmatpush1.bf16.msra.mxu0 0
        %1534 = vmatprep.subr.bf16.mxu0 0
        %1535 = vmatpush1.bf16.msra.mxu0 0
        %1536 = vmatprep.subr.bf16.mxu0 0
        %1537 = vmatpush1.bf16.msra.mxu0 0
        %1538 = vmatprep.subr.bf16.mxu0 0
        %1539 = vmatpush1.bf16.msra.mxu0 0
        %1540 = vmatprep.subr.bf16.mxu0 0
        %1541 = vmatpush1.bf16.msra.mxu0 0
        %1542 = vmatprep.mubr.bf16.mxu0 0
        %1543 = vmatmul.mubr.bf16.gmra.mrb[0].mxu0 %v403
        %v1544 = vpop.f32.mrb[0].mxu0
        %v1545 = vadd.f32 0.0, %v1544
        %v1546 = vpop.f32.mrb[0].mxu0
        %v1547 = vadd.f32 0.0, %v1546
        %v1548 = vpop.f32.mrb[0].mxu0
        %v1549 = vpop.f32.mrb[0].mxu0
        %1550 = vdwg.mxu0
        %1551 = vmatprep.subr.bf16.mxu0 %v1367
        %1552 = vmatpush1.bf16.msra.mxu0 %v1364
        %1553 = vmatprep.subr.bf16.mxu0 0
        %1554 = vmatpush1.bf16.msra.mxu0 0
        %1555 = vmatprep.subr.bf16.mxu0 0
        %1556 = vmatpush1.bf16.msra.mxu0 0
        %1557 = vmatprep.subr.bf16.mxu0 0
        %1558 = vmatpush1.bf16.msra.mxu0 0
        %1559 = vmatprep.subr.bf16.mxu0 0
        %1560 = vmatpush1.bf16.msra.mxu0 0
        %1561 = vmatprep.subr.bf16.mxu0 0
        %1562 = vmatpush1.bf16.msra.mxu0 0
        %1563 = vmatprep.subr.bf16.mxu0 0
        %1564 = vmatpush1.bf16.msra.mxu0 0
        %1565 = vmatprep.subr.bf16.mxu0 0
        %1566 = vmatpush1.bf16.msra.mxu0 0
        %1567 = vmatprep.subr.bf16.mxu0 0
        %1568 = vmatpush1.bf16.msra.mxu0 0
        %1569 = vmatprep.subr.bf16.mxu0 0
        %1570 = vmatpush1.bf16.msra.mxu0 0
        %1571 = vmatprep.subr.bf16.mxu0 0
        %1572 = vmatpush1.bf16.msra.mxu0 0
        %1573 = vmatprep.subr.bf16.mxu0 0
        %1574 = vmatpush1.bf16.msra.mxu0 0
        %1575 = vmatprep.subr.bf16.mxu0 0
        %1576 = vmatpush1.bf16.msra.mxu0 0
        %1577 = vmatprep.subr.bf16.mxu0 0
        %1578 = vmatpush1.bf16.msra.mxu0 0
        %1579 = vmatprep.subr.bf16.mxu0 0
        %1580 = vmatpush1.bf16.msra.mxu0 0
        %1581 = vmatprep.subr.bf16.mxu0 0
        %1582 = vmatpush1.bf16.msra.mxu0 0
        %1583 = vmatprep.mubr.bf16.mxu0 0
        %1584 = vmatmul.mubr.bf16.gmra.mrb[0].mxu0 %v403
        %v1585 = vpop.f32.mrb[0].mxu0
        %v1586 = vadd.f32 0.0, %v1585
        %v1587 = vpop.f32.mrb[0].mxu0
        %v1588 = vadd.f32 0.0, %v1587
        %v1589 = vpop.f32.mrb[0].mxu0
        %v1590 = vpop.f32.mrb[0].mxu0
        %1591 = vdwg.mxu0
        %1592 = vmatprep.subr.bf16.mxu0 %v1373
        %1593 = vmatpush1.bf16.msra.mxu0 %v1370
        %1594 = vmatprep.subr.bf16.mxu0 0
        %1595 = vmatpush1.bf16.msra.mxu0 0
        %1596 = vmatprep.subr.bf16.mxu0 0
        %1597 = vmatpush1.bf16.msra.mxu0 0
        %1598 = vmatprep.subr.bf16.mxu0 0
        %1599 = vmatpush1.bf16.msra.mxu0 0
        %1600 = vmatprep.subr.bf16.mxu0 0
        %1601 = vmatpush1.bf16.msra.mxu0 0
        %1602 = vmatprep.subr.bf16.mxu0 0
        %1603 = vmatpush1.bf16.msra.mxu0 0
        %1604 = vmatprep.subr.bf16.mxu0 0
        %1605 = vmatpush1.bf16.msra.mxu0 0
        %1606 = vmatprep.subr.bf16.mxu0 0
        %1607 = vmatpush1.bf16.msra.mxu0 0
        %1608 = vmatprep.subr.bf16.mxu0 0
        %1609 = vmatpush1.bf16.msra.mxu0 0
        %1610 = vmatprep.subr.bf16.mxu0 0
        %1611 = vmatpush1.bf16.msra.mxu0 0
        %1612 = vmatprep.subr.bf16.mxu0 0
        %1613 = vmatpush1.bf16.msra.mxu0 0
        %1614 = vmatprep.subr.bf16.mxu0 0
        %1615 = vmatpush1.bf16.msra.mxu0 0
        %1616 = vmatprep.subr.bf16.mxu0 0
        %1617 = vmatpush1.bf16.msra.mxu0 0
        %1618 = vmatprep.subr.bf16.mxu0 0
        %1619 = vmatpush1.bf16.msra.mxu0 0
        %1620 = vmatprep.subr.bf16.mxu0 0
        %1621 = vmatpush1.bf16.msra.mxu0 0
        %1622 = vmatprep.subr.bf16.mxu0 0
        %1623 = vmatpush1.bf16.msra.mxu0 0
        %1624 = vmatprep.mubr.bf16.mxu0 0
        %1625 = vmatmul.mubr.bf16.gmra.mrb[0].mxu0 %v403
        %v1626 = vpop.f32.mrb[0].mxu0
        %v1627 = vadd.f32 0.0, %v1626
        %v1628 = vpop.f32.mrb[0].mxu0
        %v1629 = vadd.f32 0.0, %v1628
        %v1630 = vpop.f32.mrb[0].mxu0
        %v1631 = vpop.f32.mrb[0].mxu0
        %1632 = vdwg.mxu0
        %1633 = vmatprep.subr.bf16.mxu0 %v1379
        %1634 = vmatpush1.bf16.msra.mxu0 %v1376
        %1635 = vmatprep.subr.bf16.mxu0 0
        %1636 = vmatpush1.bf16.msra.mxu0 0
        %1637 = vmatprep.subr.bf16.mxu0 0
        %1638 = vmatpush1.bf16.msra.mxu0 0
        %1639 = vmatprep.subr.bf16.mxu0 0
        %1640 = vmatpush1.bf16.msra.mxu0 0
        %1641 = vmatprep.subr.bf16.mxu0 0
        %1642 = vmatpush1.bf16.msra.mxu0 0
        %1643 = vmatprep.subr.bf16.mxu0 0
        %1644 = vmatpush1.bf16.msra.mxu0 0
        %1645 = vmatprep.subr.bf16.mxu0 0
        %1646 = vmatpush1.bf16.msra.mxu0 0
        %1647 = vmatprep.subr.bf16.mxu0 0
        %1648 = vmatpush1.bf16.msra.mxu0 0
        %1649 = vmatprep.subr.bf16.mxu0 0
        %1650 = vmatpush1.bf16.msra.mxu0 0
        %1651 = vmatprep.subr.bf16.mxu0 0
        %1652 = vmatpush1.bf16.msra.mxu0 0
        %1653 = vmatprep.subr.bf16.mxu0 0
        %1654 = vmatpush1.bf16.msra.mxu0 0
        %1655 = vmatprep.subr.bf16.mxu0 0
        %1656 = vmatpush1.bf16.msra.mxu0 0
        %1657 = vmatprep.subr.bf16.mxu0 0
        %1658 = vmatpush1.bf16.msra.mxu0 0
        %1659 = vmatprep.subr.bf16.mxu0 0
        %1660 = vmatpush1.bf16.msra.mxu0 0
        %1661 = vmatprep.subr.bf16.mxu0 0
        %1662 = vmatpush1.bf16.msra.mxu0 0
        %1663 = vmatprep.subr.bf16.mxu0 0
        %1664 = vmatpush1.bf16.msra.mxu0 0
        %1665 = vmatprep.mubr.bf16.mxu0 0
        %1666 = vmatmul.mubr.bf16.gmra.mrb[0].mxu0 %v403
        %v1667 = vpop.f32.mrb[0].mxu0
        %v1668 = vadd.f32 0.0, %v1667
        %v1669 = vpop.f32.mrb[0].mxu0
        %v1670 = vadd.f32 0.0, %v1669
        %v1671 = vpop.f32.mrb[0].mxu0
        %v1672 = vpop.f32.mrb[0].mxu0
        %1673 = vdwg.mxu0
        %1674 = vmatprep.subr.bf16.mxu0 %v1385
        %1675 = vmatpush1.bf16.msra.mxu0 %v1382
        %1676 = vmatprep.subr.bf16.mxu0 0
        %1677 = vmatpush1.bf16.msra.mxu0 0
        %1678 = vmatprep.subr.bf16.mxu0 0
        %1679 = vmatpush1.bf16.msra.mxu0 0
        %1680 = vmatprep.subr.bf16.mxu0 0
        %1681 = vmatpush1.bf16.msra.mxu0 0
        %1682 = vmatprep.subr.bf16.mxu0 0
        %1683 = vmatpush1.bf16.msra.mxu0 0
        %1684 = vmatprep.subr.bf16.mxu0 0
        %1685 = vmatpush1.bf16.msra.mxu0 0
        %1686 = vmatprep.subr.bf16.mxu0 0
        %1687 = vmatpush1.bf16.msra.mxu0 0
        %1688 = vmatprep.subr.bf16.mxu0 0
        %1689 = vmatpush1.bf16.msra.mxu0 0
        %1690 = vmatprep.subr.bf16.mxu0 0
        %1691 = vmatpush1.bf16.msra.mxu0 0
        %1692 = vmatprep.subr.bf16.mxu0 0
        %1693 = vmatpush1.bf16.msra.mxu0 0
        %1694 = vmatprep.subr.bf16.mxu0 0
        %1695 = vmatpush1.bf16.msra.mxu0 0
        %1696 = vmatprep.subr.bf16.mxu0 0
        %1697 = vmatpush1.bf16.msra.mxu0 0
        %1698 = vmatprep.subr.bf16.mxu0 0
        %1699 = vmatpush1.bf16.msra.mxu0 0
        %1700 = vmatprep.subr.bf16.mxu0 0
        %1701 = vmatpush1.bf16.msra.mxu0 0
        %1702 = vmatprep.subr.bf16.mxu0 0
        %1703 = vmatpush1.bf16.msra.mxu0 0
        %1704 = vmatprep.subr.bf16.mxu0 0
        %1705 = vmatpush1.bf16.msra.mxu0 0
        %1706 = vmatprep.mubr.bf16.mxu0 0
        %1707 = vmatmul.mubr.bf16.gmra.mrb[0].mxu0 %v403
        %v1708 = vpop.f32.mrb[0].mxu0
        %v1709 = vadd.f32 0.0, %v1708
        %v1710 = vpop.f32.mrb[0].mxu0
        %v1711 = vadd.f32 0.0, %v1710
        %v1712 = vpop.f32.mrb[0].mxu0
        %v1713 = vpop.f32.mrb[0].mxu0
        %1714 = vdwg.mxu0
        %v1715 = vmax.f32 %v1242, %v1422
        %v1716 = vmax.f32 %v1243, %v1424
        %v1717 = vmax.f32 %v1244, %v1463
        %v1718 = vmax.f32 %v1245, %v1465
        %v1719 = vmax.f32 %v1246, %v1504
        %v1720 = vmax.f32 %v1247, %v1506
        %v1721 = vmax.f32 %v1248, %v1545
        %v1722 = vmax.f32 %v1249, %v1547
        %v1723 = vmax.f32 %v1250, %v1586
        %v1724 = vmax.f32 %v1251, %v1588
        %v1725 = vmax.f32 %v1252, %v1627
        %v1726 = vmax.f32 %v1253, %v1629
        %v1727 = vmax.f32 %v1254, %v1668
        %v1728 = vmax.f32 %v1255, %v1670
        %v1729 = vmax.f32 %v1256, %v1709
        %v1730 = vmax.f32 %v1257, %v1711
        %s1731 = scalar_lea.vmem %s291, 384 [#allocation2]
        %v1732 = vld [vmem:[%s1731] sm:$0xff]
        %v1733 = vld [vmem:[%s1731 + $0x8] sm:$0xff]
        %v1734 = vld [vmem:[%s1731 + $0x10] sm:$0xff]
        %v1735 = vld [vmem:[%s1731 + $0x18] sm:$0xff]
        %v1736 = vld [vmem:[%s1731 + $0x20] sm:$0xff]
        %v1737 = vld [vmem:[%s1731 + $0x28] sm:$0xff]
        %v1738 = vld [vmem:[%s1731 + $0x30] sm:$0xff]
        %v1739 = vld [vmem:[%s1731 + $0x38] sm:$0xff]
        %v1740 = vld [vmem:[%s1731 + $0x40] sm:$0x11]
        %v1741 = vld [vmem:[%s1731 + $0x48] sm:$0x11]
        %v1742 = vld [vmem:[%s1731 + $0x50] sm:$0x11]
        %v1743 = vld [vmem:[%s1731 + $0x58] sm:$0x11]
        %v1744 = vld [vmem:[%s1731 + $0x60] sm:$0x11]
        %v1745 = vld [vmem:[%s1731 + $0x68] sm:$0x11]
        %v1746 = vld [vmem:[%s1731 + $0x70] sm:$0x11]
        %v1747 = vld [vmem:[%s1731 + $0x78] sm:$0x11]
        %v1764 = vunpack.c.l.b16 %v1732
        %v1765 = vunpack.c.h.b16 %v1732
        %v1766 = vunpack.c.l.b16 %v1733
        %v1767 = vunpack.c.h.b16 %v1733
        %v1768 = vunpack.c.l.b16 %v1734
        %v1769 = vunpack.c.h.b16 %v1734
        %v1770 = vunpack.c.l.b16 %v1735
        %v1771 = vunpack.c.h.b16 %v1735
        %v1772 = vunpack.c.l.b16 %v1736
        %v1773 = vunpack.c.h.b16 %v1736
        %v1774 = vunpack.c.l.b16 %v1737
        %v1775 = vunpack.c.h.b16 %v1737
        %v1776 = vunpack.c.l.b16 %v1738
        %v1777 = vunpack.c.h.b16 %v1738
        %v1778 = vunpack.c.l.b16 %v1739
        %v1779 = vunpack.c.h.b16 %v1739
        %v1780 = vunpack.c.l.b16 %v1740
        %v1781 = vunpack.c.h.b16 %v1740
        %v1782 = vunpack.c.l.b16 %v1741
        %v1783 = vunpack.c.h.b16 %v1741
        %v1784 = vunpack.c.l.b16 %v1742
        %v1785 = vunpack.c.h.b16 %v1742
        %v1786 = vunpack.c.l.b16 %v1743
        %v1787 = vunpack.c.h.b16 %v1743
        %v1788 = vunpack.c.l.b16 %v1744
        %v1789 = vunpack.c.h.b16 %v1744
        %v1790 = vunpack.c.l.b16 %v1745
        %v1791 = vunpack.c.h.b16 %v1745
        %v1792 = vunpack.c.l.b16 %v1746
        %v1793 = vunpack.c.h.b16 %v1746
        %v1794 = vunpack.c.l.b16 %v1747
        %v1795 = vunpack.c.h.b16 %v1747
        %v1796 = vpack.c.b16 %v1780, %v1764
        %v1797 = vpack.c.b16 %v1781, %v1765
        %v1798 = vpack.c.b16 %v1782, %v1766
        %v1799 = vpack.c.b16 %v1783, %v1767
        %v1800 = vpack.c.b16 %v1784, %v1768
        %v1801 = vpack.c.b16 %v1785, %v1769
        %v1802 = vpack.c.b16 %v1786, %v1770
        %v1803 = vpack.c.b16 %v1787, %v1771
        %v1804 = vpack.c.b16 %v1788, %v1772
        %v1805 = vpack.c.b16 %v1789, %v1773
        %v1806 = vpack.c.b16 %v1790, %v1774
        %v1807 = vpack.c.b16 %v1791, %v1775
        %v1808 = vpack.c.b16 %v1792, %v1776
        %v1809 = vpack.c.b16 %v1793, %v1777
        %v1810 = vpack.c.b16 %v1794, %v1778
        %v1811 = vpack.c.b16 %v1795, %v1779
        %v1813 = vand.u32 %v1796, %v408
        %v1816 = vand.u32 %v1797, %v408
        %v1819 = vand.u32 %v1798, %v408
        %v1822 = vand.u32 %v1799, %v408
        %v1825 = vand.u32 %v1800, %v408
        %v1828 = vand.u32 %v1801, %v408
        %v1831 = vand.u32 %v1802, %v408
        %v1834 = vand.u32 %v1803, %v408
        %v1837 = vand.u32 %v1804, %v408
        %v1840 = vand.u32 %v1805, %v408
        %v1843 = vand.u32 %v1806, %v408
        %v1846 = vand.u32 %v1807, %v408
        %v1849 = vand.u32 %v1808, %v408
        %v1852 = vand.u32 %v1809, %v408
        %v1855 = vand.u32 %v1810, %v408
        %v1858 = vand.u32 %v1811, %v408
        %1860 = vmatprep.subr.bf16.mxu0 %v1816
        %1861 = vmatpush1.bf16.msra.mxu0 %v1813
        %1862 = vmatprep.subr.bf16.mxu0 0
        %1863 = vmatpush1.bf16.msra.mxu0 0
        %1864 = vmatprep.subr.bf16.mxu0 0
        %1865 = vmatpush1.bf16.msra.mxu0 0
        %1866 = vmatprep.subr.bf16.mxu0 0
        %1867 = vmatpush1.bf16.msra.mxu0 0
        %1868 = vmatprep.subr.bf16.mxu0 0
        %1869 = vmatpush1.bf16.msra.mxu0 0
        %1870 = vmatprep.subr.bf16.mxu0 0
        %1871 = vmatpush1.bf16.msra.mxu0 0
        %1872 = vmatprep.subr.bf16.mxu0 0
        %1873 = vmatpush1.bf16.msra.mxu0 0
        %1874 = vmatprep.subr.bf16.mxu0 0
        %1875 = vmatpush1.bf16.msra.mxu0 0
        %1876 = vmatprep.subr.bf16.mxu0 0
        %1877 = vmatpush1.bf16.msra.mxu0 0
        %1878 = vmatprep.subr.bf16.mxu0 0
        %1879 = vmatpush1.bf16.msra.mxu0 0
        %1880 = vmatprep.subr.bf16.mxu0 0
        %1881 = vmatpush1.bf16.msra.mxu0 0
        %1882 = vmatprep.subr.bf16.mxu0 0
        %1883 = vmatpush1.bf16.msra.mxu0 0
        %1884 = vmatprep.subr.bf16.mxu0 0
        %1885 = vmatpush1.bf16.msra.mxu0 0
        %1886 = vmatprep.subr.bf16.mxu0 0
        %1887 = vmatpush1.bf16.msra.mxu0 0
        %1888 = vmatprep.subr.bf16.mxu0 0
        %1889 = vmatpush1.bf16.msra.mxu0 0
        %1890 = vmatprep.subr.bf16.mxu0 0
        %1891 = vmatpush1.bf16.msra.mxu0 0
        %1892 = vmatprep.mubr.bf16.mxu0 0
        %1893 = vmatmul.mubr.bf16.gmra.mrb[0].mxu0 %v403
        %v1894 = vpop.f32.mrb[0].mxu0
        %v1895 = vadd.f32 0.0, %v1894
        %v1896 = vpop.f32.mrb[0].mxu0
        %v1897 = vadd.f32 0.0, %v1896
        %v1898 = vpop.f32.mrb[0].mxu0
        %v1899 = vpop.f32.mrb[0].mxu0
        %1900 = vdwg.mxu0
        %1901 = vmatprep.subr.bf16.mxu0 %v1822
        %1902 = vmatpush1.bf16.msra.mxu0 %v1819
        %1903 = vmatprep.subr.bf16.mxu0 0
        %1904 = vmatpush1.bf16.msra.mxu0 0
        %1905 = vmatprep.subr.bf16.mxu0 0
        %1906 = vmatpush1.bf16.msra.mxu0 0
        %1907 = vmatprep.subr.bf16.mxu0 0
        %1908 = vmatpush1.bf16.msra.mxu0 0
        %1909 = vmatprep.subr.bf16.mxu0 0
        %1910 = vmatpush1.bf16.msra.mxu0 0
        %1911 = vmatprep.subr.bf16.mxu0 0
        %1912 = vmatpush1.bf16.msra.mxu0 0
        %1913 = vmatprep.subr.bf16.mxu0 0
        %1914 = vmatpush1.bf16.msra.mxu0 0
        %1915 = vmatprep.subr.bf16.mxu0 0
        %1916 = vmatpush1.bf16.msra.mxu0 0
        %1917 = vmatprep.subr.bf16.mxu0 0
        %1918 = vmatpush1.bf16.msra.mxu0 0
        %1919 = vmatprep.subr.bf16.mxu0 0
        %1920 = vmatpush1.bf16.msra.mxu0 0
        %1921 = vmatprep.subr.bf16.mxu0 0
        %1922 = vmatpush1.bf16.msra.mxu0 0
        %1923 = vmatprep.subr.bf16.mxu0 0
        %1924 = vmatpush1.bf16.msra.mxu0 0
        %1925 = vmatprep.subr.bf16.mxu0 0
        %1926 = vmatpush1.bf16.msra.mxu0 0
        %1927 = vmatprep.subr.bf16.mxu0 0
        %1928 = vmatpush1.bf16.msra.mxu0 0
        %1929 = vmatprep.subr.bf16.mxu0 0
        %1930 = vmatpush1.bf16.msra.mxu0 0
        %1931 = vmatprep.subr.bf16.mxu0 0
        %1932 = vmatpush1.bf16.msra.mxu0 0
        %1933 = vmatprep.mubr.bf16.mxu0 0
        %1934 = vmatmul.mubr.bf16.gmra.mrb[0].mxu0 %v403
        %v1935 = vpop.f32.mrb[0].mxu0
        %v1936 = vadd.f32 0.0, %v1935
        %v1937 = vpop.f32.mrb[0].mxu0
        %v1938 = vadd.f32 0.0, %v1937
        %v1939 = vpop.f32.mrb[0].mxu0
        %v1940 = vpop.f32.mrb[0].mxu0
        %1941 = vdwg.mxu0
        %1942 = vmatprep.subr.bf16.mxu0 %v1828
        %1943 = vmatpush1.bf16.msra.mxu0 %v1825
        %1944 = vmatprep.subr.bf16.mxu0 0
        %1945 = vmatpush1.bf16.msra.mxu0 0
        %1946 = vmatprep.subr.bf16.mxu0 0
        %1947 = vmatpush1.bf16.msra.mxu0 0
        %1948 = vmatprep.subr.bf16.mxu0 0
        %1949 = vmatpush1.bf16.msra.mxu0 0
        %1950 = vmatprep.subr.bf16.mxu0 0
        %1951 = vmatpush1.bf16.msra.mxu0 0
        %1952 = vmatprep.subr.bf16.mxu0 0
        %1953 = vmatpush1.bf16.msra.mxu0 0
        %1954 = vmatprep.subr.bf16.mxu0 0
        %1955 = vmatpush1.bf16.msra.mxu0 0
        %1956 = vmatprep.subr.bf16.mxu0 0
        %1957 = vmatpush1.bf16.msra.mxu0 0
        %1958 = vmatprep.subr.bf16.mxu0 0
        %1959 = vmatpush1.bf16.msra.mxu0 0
        %1960 = vmatprep.subr.bf16.mxu0 0
        %1961 = vmatpush1.bf16.msra.mxu0 0
        %1962 = vmatprep.subr.bf16.mxu0 0
        %1963 = vmatpush1.bf16.msra.mxu0 0
        %1964 = vmatprep.subr.bf16.mxu0 0
        %1965 = vmatpush1.bf16.msra.mxu0 0
        %1966 = vmatprep.subr.bf16.mxu0 0
        %1967 = vmatpush1.bf16.msra.mxu0 0
        %1968 = vmatprep.subr.bf16.mxu0 0
        %1969 = vmatpush1.bf16.msra.mxu0 0
        %1970 = vmatprep.subr.bf16.mxu0 0
        %1971 = vmatpush1.bf16.msra.mxu0 0
        %1972 = vmatprep.subr.bf16.mxu0 0
        %1973 = vmatpush1.bf16.msra.mxu0 0
        %1974 = vmatprep.mubr.bf16.mxu0 0
        %1975 = vmatmul.mubr.bf16.gmra.mrb[0].mxu0 %v403
        %v1976 = vpop.f32.mrb[0].mxu0
        %v1977 = vadd.f32 0.0, %v1976
        %v1978 = vpop.f32.mrb[0].mxu0
        %v1979 = vadd.f32 0.0, %v1978
        %v1980 = vpop.f32.mrb[0].mxu0
        %v1981 = vpop.f32.mrb[0].mxu0
        %1982 = vdwg.mxu0
        %1983 = vmatprep.subr.bf16.mxu0 %v1834
        %1984 = vmatpush1.bf16.msra.mxu0 %v1831
        %1985 = vmatprep.subr.bf16.mxu0 0
        %1986 = vmatpush1.bf16.msra.mxu0 0
        %1987 = vmatprep.subr.bf16.mxu0 0
        %1988 = vmatpush1.bf16.msra.mxu0 0
        %1989 = vmatprep.subr.bf16.mxu0 0
        %1990 = vmatpush1.bf16.msra.mxu0 0
        %1991 = vmatprep.subr.bf16.mxu0 0
        %1992 = vmatpush1.bf16.msra.mxu0 0
        %1993 = vmatprep.subr.bf16.mxu0 0
        %1994 = vmatpush1.bf16.msra.mxu0 0
        %1995 = vmatprep.subr.bf16.mxu0 0
        %1996 = vmatpush1.bf16.msra.mxu0 0
        %1997 = vmatprep.subr.bf16.mxu0 0
        %1998 = vmatpush1.bf16.msra.mxu0 0
        %1999 = vmatprep.subr.bf16.mxu0 0
        %2000 = vmatpush1.bf16.msra.mxu0 0
        %2001 = vmatprep.subr.bf16.mxu0 0
        %2002 = vmatpush1.bf16.msra.mxu0 0
        %2003 = vmatprep.subr.bf16.mxu0 0
        %2004 = vmatpush1.bf16.msra.mxu0 0
        %2005 = vmatprep.subr.bf16.mxu0 0
        %2006 = vmatpush1.bf16.msra.mxu0 0
        %2007 = vmatprep.subr.bf16.mxu0 0
        %2008 = vmatpush1.bf16.msra.mxu0 0
        %2009 = vmatprep.subr.bf16.mxu0 0
        %2010 = vmatpush1.bf16.msra.mxu0 0
        %2011 = vmatprep.subr.bf16.mxu0 0
        %2012 = vmatpush1.bf16.msra.mxu0 0
        %2013 = vmatprep.subr.bf16.mxu0 0
        %2014 = vmatpush1.bf16.msra.mxu0 0
        %2015 = vmatprep.mubr.bf16.mxu0 0
        %2016 = vmatmul.mubr.bf16.gmra.mrb[0].mxu0 %v403
        %v2017 = vpop.f32.mrb[0].mxu0
        %v2018 = vadd.f32 0.0, %v2017
        %v2019 = vpop.f32.mrb[0].mxu0
        %v2020 = vadd.f32 0.0, %v2019
        %v2021 = vpop.f32.mrb[0].mxu0
        %v2022 = vpop.f32.mrb[0].mxu0
        %2023 = vdwg.mxu0
        %2024 = vmatprep.subr.bf16.mxu0 %v1840
        %2025 = vmatpush1.bf16.msra.mxu0 %v1837
        %2026 = vmatprep.subr.bf16.mxu0 0
        %2027 = vmatpush1.bf16.msra.mxu0 0
        %2028 = vmatprep.subr.bf16.mxu0 0
        %2029 = vmatpush1.bf16.msra.mxu0 0
        %2030 = vmatprep.subr.bf16.mxu0 0
        %2031 = vmatpush1.bf16.msra.mxu0 0
        %2032 = vmatprep.subr.bf16.mxu0 0
        %2033 = vmatpush1.bf16.msra.mxu0 0
        %2034 = vmatprep.subr.bf16.mxu0 0
        %2035 = vmatpush1.bf16.msra.mxu0 0
        %2036 = vmatprep.subr.bf16.mxu0 0
        %2037 = vmatpush1.bf16.msra.mxu0 0
        %2038 = vmatprep.subr.bf16.mxu0 0
        %2039 = vmatpush1.bf16.msra.mxu0 0
        %2040 = vmatprep.subr.bf16.mxu0 0
        %2041 = vmatpush1.bf16.msra.mxu0 0
        %2042 = vmatprep.subr.bf16.mxu0 0
        %2043 = vmatpush1.bf16.msra.mxu0 0
        %2044 = vmatprep.subr.bf16.mxu0 0
        %2045 = vmatpush1.bf16.msra.mxu0 0
        %2046 = vmatprep.subr.bf16.mxu0 0
        %2047 = vmatpush1.bf16.msra.mxu0 0
        %2048 = vmatprep.subr.bf16.mxu0 0
        %2049 = vmatpush1.bf16.msra.mxu0 0
        %2050 = vmatprep.subr.bf16.mxu0 0
        %2051 = vmatpush1.bf16.msra.mxu0 0
        %2052 = vmatprep.subr.bf16.mxu0 0
        %2053 = vmatpush1.bf16.msra.mxu0 0
        %2054 = vmatprep.subr.bf16.mxu0 0
        %2055 = vmatpush1.bf16.msra.mxu0 0
        %2056 = vmatprep.mubr.bf16.mxu0 0
        %2057 = vmatmul.mubr.bf16.gmra.mrb[0].mxu0 %v403
        %v2058 = vpop.f32.mrb[0].mxu0
        %v2059 = vadd.f32 0.0, %v2058
        %v2060 = vpop.f32.mrb[0].mxu0
        %v2061 = vadd.f32 0.0, %v2060
        %v2062 = vpop.f32.mrb[0].mxu0
        %v2063 = vpop.f32.mrb[0].mxu0
        %2064 = vdwg.mxu0
        %2065 = vmatprep.subr.bf16.mxu0 %v1846
        %2066 = vmatpush1.bf16.msra.mxu0 %v1843
        %2067 = vmatprep.subr.bf16.mxu0 0
        %2068 = vmatpush1.bf16.msra.mxu0 0
        %2069 = vmatprep.subr.bf16.mxu0 0
        %2070 = vmatpush1.bf16.msra.mxu0 0
        %2071 = vmatprep.subr.bf16.mxu0 0
        %2072 = vmatpush1.bf16.msra.mxu0 0
        %2073 = vmatprep.subr.bf16.mxu0 0
        %2074 = vmatpush1.bf16.msra.mxu0 0
        %2075 = vmatprep.subr.bf16.mxu0 0
        %2076 = vmatpush1.bf16.msra.mxu0 0
        %2077 = vmatprep.subr.bf16.mxu0 0
        %2078 = vmatpush1.bf16.msra.mxu0 0
        %2079 = vmatprep.subr.bf16.mxu0 0
        %2080 = vmatpush1.bf16.msra.mxu0 0
        %2081 = vmatprep.subr.bf16.mxu0 0
        %2082 = vmatpush1.bf16.msra.mxu0 0
        %2083 = vmatprep.subr.bf16.mxu0 0
        %2084 = vmatpush1.bf16.msra.mxu0 0
        %2085 = vmatprep.subr.bf16.mxu0 0
        %2086 = vmatpush1.bf16.msra.mxu0 0
        %2087 = vmatprep.subr.bf16.mxu0 0
        %2088 = vmatpush1.bf16.msra.mxu0 0
        %2089 = vmatprep.subr.bf16.mxu0 0
        %2090 = vmatpush1.bf16.msra.mxu0 0
        %2091 = vmatprep.subr.bf16.mxu0 0
        %2092 = vmatpush1.bf16.msra.mxu0 0
        %2093 = vmatprep.subr.bf16.mxu0 0
        %2094 = vmatpush1.bf16.msra.mxu0 0
        %2095 = vmatprep.subr.bf16.mxu0 0
        %2096 = vmatpush1.bf16.msra.mxu0 0
        %2097 = vmatprep.mubr.bf16.mxu0 0
        %2098 = vmatmul.mubr.bf16.gmra.mrb[0].mxu0 %v403
        %v2099 = vpop.f32.mrb[0].mxu0
        %v2100 = vadd.f32 0.0, %v2099
        %v2101 = vpop.f32.mrb[0].mxu0
        %v2102 = vadd.f32 0.0, %v2101
        %v2103 = vpop.f32.mrb[0].mxu0
        %v2104 = vpop.f32.mrb[0].mxu0
        %2105 = vdwg.mxu0
        %2106 = vmatprep.subr.bf16.mxu0 %v1852
        %2107 = vmatpush1.bf16.msra.mxu0 %v1849
        %2108 = vmatprep.subr.bf16.mxu0 0
        %2109 = vmatpush1.bf16.msra.mxu0 0
        %2110 = vmatprep.subr.bf16.mxu0 0
        %2111 = vmatpush1.bf16.msra.mxu0 0
        %2112 = vmatprep.subr.bf16.mxu0 0
        %2113 = vmatpush1.bf16.msra.mxu0 0
        %2114 = vmatprep.subr.bf16.mxu0 0
        %2115 = vmatpush1.bf16.msra.mxu0 0
        %2116 = vmatprep.subr.bf16.mxu0 0
        %2117 = vmatpush1.bf16.msra.mxu0 0
        %2118 = vmatprep.subr.bf16.mxu0 0
        %2119 = vmatpush1.bf16.msra.mxu0 0
        %2120 = vmatprep.subr.bf16.mxu0 0
        %2121 = vmatpush1.bf16.msra.mxu0 0
        %2122 = vmatprep.subr.bf16.mxu0 0
        %2123 = vmatpush1.bf16.msra.mxu0 0
        %2124 = vmatprep.subr.bf16.mxu0 0
        %2125 = vmatpush1.bf16.msra.mxu0 0
        %2126 = vmatprep.subr.bf16.mxu0 0
        %2127 = vmatpush1.bf16.msra.mxu0 0
        %2128 = vmatprep.subr.bf16.mxu0 0
        %2129 = vmatpush1.bf16.msra.mxu0 0
        %2130 = vmatprep.subr.bf16.mxu0 0
        %2131 = vmatpush1.bf16.msra.mxu0 0
        %2132 = vmatprep.subr.bf16.mxu0 0
        %2133 = vmatpush1.bf16.msra.mxu0 0
        %2134 = vmatprep.subr.bf16.mxu0 0
        %2135 = vmatpush1.bf16.msra.mxu0 0
        %2136 = vmatprep.subr.bf16.mxu0 0
        %2137 = vmatpush1.bf16.msra.mxu0 0
        %2138 = vmatprep.mubr.bf16.mxu0 0
        %2139 = vmatmul.mubr.bf16.gmra.mrb[0].mxu0 %v403
        %v2140 = vpop.f32.mrb[0].mxu0
        %v2141 = vadd.f32 0.0, %v2140
        %v2142 = vpop.f32.mrb[0].mxu0
        %v2143 = vadd.f32 0.0, %v2142
        %v2144 = vpop.f32.mrb[0].mxu0
        %v2145 = vpop.f32.mrb[0].mxu0
        %2146 = vdwg.mxu0
        %2147 = vmatprep.subr.bf16.mxu0 %v1858
        %2148 = vmatpush1.bf16.msra.mxu0 %v1855
        %2149 = vmatprep.subr.bf16.mxu0 0
        %2150 = vmatpush1.bf16.msra.mxu0 0
        %2151 = vmatprep.subr.bf16.mxu0 0
        %2152 = vmatpush1.bf16.msra.mxu0 0
        %2153 = vmatprep.subr.bf16.mxu0 0
        %2154 = vmatpush1.bf16.msra.mxu0 0
        %2155 = vmatprep.subr.bf16.mxu0 0
        %2156 = vmatpush1.bf16.msra.mxu0 0
        %2157 = vmatprep.subr.bf16.mxu0 0
        %2158 = vmatpush1.bf16.msra.mxu0 0
        %2159 = vmatprep.subr.bf16.mxu0 0
        %2160 = vmatpush1.bf16.msra.mxu0 0
        %2161 = vmatprep.subr.bf16.mxu0 0
        %2162 = vmatpush1.bf16.msra.mxu0 0
        %2163 = vmatprep.subr.bf16.mxu0 0
        %2164 = vmatpush1.bf16.msra.mxu0 0
        %2165 = vmatprep.subr.bf16.mxu0 0
        %2166 = vmatpush1.bf16.msra.mxu0 0
        %2167 = vmatprep.subr.bf16.mxu0 0
        %2168 = vmatpush1.bf16.msra.mxu0 0
        %2169 = vmatprep.subr.bf16.mxu0 0
        %2170 = vmatpush1.bf16.msra.mxu0 0
        %2171 = vmatprep.subr.bf16.mxu0 0
        %2172 = vmatpush1.bf16.msra.mxu0 0
        %2173 = vmatprep.subr.bf16.mxu0 0
        %2174 = vmatpush1.bf16.msra.mxu0 0
        %2175 = vmatprep.subr.bf16.mxu0 0
        %2176 = vmatpush1.bf16.msra.mxu0 0
        %2177 = vmatprep.subr.bf16.mxu0 0
        %2178 = vmatpush1.bf16.msra.mxu0 0
        %2179 = vmatprep.mubr.bf16.mxu0 0
        %2180 = vmatmul.mubr.bf16.gmra.mrb[0].mxu0 %v403
        %v2181 = vpop.f32.mrb[0].mxu0
        %v2182 = vadd.f32 0.0, %v2181
        %v2183 = vpop.f32.mrb[0].mxu0
        %v2184 = vadd.f32 0.0, %v2183
        %v2185 = vpop.f32.mrb[0].mxu0
        %v2186 = vpop.f32.mrb[0].mxu0
        %2187 = vdwg.mxu0
        %v2188 = vmax.f32 %v1715, %v1895
        %v2189 = vmax.f32 %v1716, %v1897
        %v2190 = vmax.f32 %v1717, %v1936
        %v2191 = vmax.f32 %v1718, %v1938
        %v2192 = vmax.f32 %v1719, %v1977
        %v2193 = vmax.f32 %v1720, %v1979
        %v2194 = vmax.f32 %v1721, %v2018
        %v2195 = vmax.f32 %v1722, %v2020
        %v2196 = vmax.f32 %v1723, %v2059
        %v2197 = vmax.f32 %v1724, %v2061
        %v2198 = vmax.f32 %v1725, %v2100
        %v2199 = vmax.f32 %v1726, %v2102
        %v2200 = vmax.f32 %v1727, %v2141
        %v2201 = vmax.f32 %v1728, %v2143
        %v2202 = vmax.f32 %v1729, %v2182
        %v2203 = vmax.f32 %v1730, %v2184
        %v2204 = vld [vmem:[%s2] sm:$0x3f]
        %2206 = vset.pattern.permute.xlu0 0
        %2207 = vperm.xlu0 %2206, %v2204
        %v2208 = vpop.permute.xlu0 %2207
        %v2210 = vadd.f32 %v2188, %v2208
        %v2211 = vadd.f32 %v2189, %v2208
        %v2212 = vadd.f32 %v2190, %v2208
        %v2213 = vadd.f32 %v2191, %v2208
        %v2214 = vadd.f32 %v2192, %v2208
        %v2215 = vadd.f32 %v2193, %v2208
        %v2216 = vadd.f32 %v2194, %v2208
        %v2217 = vadd.f32 %v2195, %v2208
        %v2218 = vadd.f32 %v2196, %v2208
        %v2219 = vadd.f32 %v2197, %v2208
        %v2220 = vadd.f32 %v2198, %v2208
        %v2221 = vadd.f32 %v2199, %v2208
        %v2222 = vadd.f32 %v2200, %v2208
        %v2223 = vadd.f32 %v2201, %v2208
        %v2224 = vadd.f32 %v2202, %v2208
        %v2225 = vadd.f32 %v2203, %v2208
        %v2226 = vmax.f32 %v2210, 0.0
        %v2227 = vmax.f32 %v2211, 0.0
        %v2228 = vmax.f32 %v2212, 0.0
        %v2229 = vmax.f32 %v2213, 0.0
        %v2230 = vmax.f32 %v2214, 0.0
        %v2231 = vmax.f32 %v2215, 0.0
        %v2232 = vmax.f32 %v2216, 0.0
        %v2233 = vmax.f32 %v2217, 0.0
        %v2234 = vmax.f32 %v2218, 0.0
        %v2235 = vmax.f32 %v2219, 0.0
        %v2236 = vmax.f32 %v2220, 0.0
        %v2237 = vmax.f32 %v2221, 0.0
        %v2238 = vmax.f32 %v2222, 0.0
        %v2239 = vmax.f32 %v2223, 0.0
        %v2240 = vmax.f32 %v2224, 0.0
        %v2241 = vmax.f32 %v2225, 0.0
        %v2242 = vpack.c.bf16 %v2226, %v2226
        %v2243 = vpack.c.bf16 %v2227, %v2227
        %v2244 = vpack.c.bf16 %v2228, %v2228
        %v2245 = vpack.c.bf16 %v2229, %v2229
        %v2246 = vpack.c.bf16 %v2230, %v2230
        %v2247 = vpack.c.bf16 %v2231, %v2231
        %v2248 = vpack.c.bf16 %v2232, %v2232
        %v2249 = vpack.c.bf16 %v2233, %v2233
        %v2250 = vpack.c.bf16 %v2234, %v2234
        %v2251 = vpack.c.bf16 %v2235, %v2235
        %v2252 = vpack.c.bf16 %v2236, %v2236
        %v2253 = vpack.c.bf16 %v2237, %v2237
        %v2254 = vpack.c.bf16 %v2238, %v2238
        %v2255 = vpack.c.bf16 %v2239, %v2239
        %v2256 = vpack.c.bf16 %v2240, %v2240
        %v2257 = vpack.c.bf16 %v2241, %v2241
        %v2274 = vunpack.c.l.b16 %v2242
        %v2275 = vunpack.c.l.b16 %v2243
        %v2276 = vunpack.c.l.b16 %v2244
        %v2277 = vunpack.c.l.b16 %v2245
        %v2278 = vunpack.c.l.b16 %v2246
        %v2279 = vunpack.c.l.b16 %v2247
        %v2280 = vunpack.c.l.b16 %v2248
        %v2281 = vunpack.c.l.b16 %v2249
        %v2282 = vunpack.c.l.b16 %v2250
        %v2283 = vunpack.c.l.b16 %v2251
        %v2284 = vunpack.c.l.b16 %v2252
        %v2285 = vunpack.c.l.b16 %v2253
        %v2286 = vunpack.c.l.b16 %v2254
        %v2287 = vunpack.c.l.b16 %v2255
        %v2288 = vunpack.c.l.b16 %v2256
        %v2289 = vunpack.c.l.b16 %v2257
        %v2290 = vpack.c.b16 %v2275, %v2274
        %v2291 = vpack.c.b16 %v2277, %v2276
        %v2292 = vpack.c.b16 %v2279, %v2278
        %v2293 = vpack.c.b16 %v2281, %v2280
        %v2294 = vpack.c.b16 %v2283, %v2282
        %v2295 = vpack.c.b16 %v2285, %v2284
        %v2296 = vpack.c.b16 %v2287, %v2286
        %v2297 = vpack.c.b16 %v2289, %v2288
        %2306 = vst [vmem:[%s317] sm:$0x77] %v2290
        %2307 = vst [vmem:[%s317 + $0x8] sm:$0x77] %v2291
        %2308 = vst [vmem:[%s317 + $0x10] sm:$0x77] %v2292
        %2309 = vst [vmem:[%s317 + $0x18] sm:$0x77] %v2293
        %2310 = vst [vmem:[%s317 + $0x20] sm:$0x77] %v2294
        %2311 = vst [vmem:[%s317 + $0x28] sm:$0x77] %v2295
        %2312 = vst [vmem:[%s317 + $0x30] sm:$0x77] %v2296
        %2313 = vst [vmem:[%s317 + $0x38] sm:$0x77] %v2297
        %s2314 = smul.u32 16, %s14
        %p2315 = scmp.lt.s32.totalorder %s2314, 31
        %s2316 = scalar_select %p2315, %s2314, 31
        %s2317 = smul.addr %s2316, 4
        %s2318 = scalar_lea.vmem %s3, %s2317
        // Predicated region
        $region56: #{coon_forward.4} parent=50 // pred_check
          %p2319 = pneg %p100
        $region57: #{coon_forward.4} parent=50 // pred_check_branch
          %2321 = sbr.rel (%p2319) target = $region59
        $region58: #{coon_forward.4} parent=50 // pred_region
          %s2322 = smul.u32 16, %s14
        $region59: #{coon_forward.4} parent=50 // pred_fallthru
          _
      $region51: #{coon_forward.4} parent=5 // pred_fallthru
        _
      %p2323 = scmp.le.s32.totalorder 2, %s9
      // Predicated region
      $region60: #{coon_forward.4} parent=5 // pred_check
        %p2324 = pneg %p2323
      $region61: #{coon_forward.4} parent=5 // pred_check_branch
        %2326 = sbr.rel (%p2324) target = $region63
      $region62: #{coon_forward.4} parent=5 // pred_region
        %s2327 = ssub.s32 %s9, 2
        // Predicated region
        $region64: #{coon_forward.4} parent=62 // pred_check
          %p2328 = pneg %p106
        $region65: #{coon_forward.4} parent=62 // pred_check_branch
          %2330 = sbr.rel (%p2328) target = $region67
        $region66: #{coon_forward.4} parent=62 // pred_region
          %s2331 = smul.u32 16, %s15
          %p2332 = scmp.lt.s32.totalorder %s2331, 31
          %s2333 = scalar_select %p2332, %s2331, 31
          %s2334 = smul.addr %s2333, 4
          %s2335 = scalar_lea.vmem %s3, %s2334
        $region67: #{coon_forward.4} parent=62 // pred_fallthru
          _
      $region63: #{coon_forward.4} parent=5 // pred_fallthru
        _
    $region6: #{coon_forward.4} parent=1 // loop_footer
      %s13 = sadd.s32 1, %s9
    $region7: #{coon_forward.4} parent=1 // loop_footer_branch
      %8 = sbr.rel target = $region3
    $region8: #{coon_forward.4} parent=1 // loop_exit
      _

// kernel: coon_forward.5
$region0: #{coon_forward.5}
  #allocation0 [shape = 'u32[]', space=smem, size = 0x4, offset = 0x4, fixed_abs, tag = 'smem constant byte address 0x4 - core index']
  #allocation1 [shape = 'u32[144,128]{1,0:T(1,128)}', space=vmem, size = 0x12000, scoped, tag = 'internal scratch']
  %s0 = inlined_call_operand.vmem [shape: bf16[4,54,896], index: 0, kind: input, shape index: {}]
  %s1 = inlined_call_operand.vmem [shape: bf16[6,54], index: 1, kind: input, shape index: {}]
  %s2 = inlined_call_operand.vmem [shape: f32[6,1], index: 2, kind: input, shape index: {}]
  %s3 = inlined_call_operand.vmem [shape: bf16[6,896], index: 3, kind: output, shape index: {}]
  %s4 = sld [smem:[#allocation0]]
  $region22: #{coon_forward.5} parent=0
    _
  %s6 = ssub.s32 1, %s4
  %s7 = scalar_select 0, %s6, %s4
  // Predicated region
  $region2: #{coon_forward.5} parent=0 // pred_check
    _
  $region3: #{coon_forward.5} parent=0 // pred_check_branch
    %9 = sbr.rel (0) target = $region5
  $region4: #{coon_forward.5} parent=0 // pred_region
    _
  $region5: #{coon_forward.5} parent=0 // pred_fallthru
    _
  // Predicated region
  $region6: #{coon_forward.5} parent=0 // pred_check
    _
  $region7: #{coon_forward.5} parent=0 // pred_check_branch
    %11 = sbr.rel (0) target = $region9
  $region8: #{coon_forward.5} parent=0 // pred_region
    _
  $region9: #{coon_forward.5} parent=0 // pred_fallthru
    _
  // Predicated region
  $region10: #{coon_forward.5} parent=0 // pred_check
    _
  $region11: #{coon_forward.5} parent=0 // pred_check_branch
    %13 = sbr.rel (0) target = $region13
  $region12: #{coon_forward.5} parent=0 // pred_region
    _
  $region13: #{coon_forward.5} parent=0 // pred_fallthru
    _
  %v15 = vld [vmem:[%s1] sm:$0x7]
  %v16 = vld [vmem:[%s0] sm:$0xff]
  %v17 = vld [vmem:[%s0 + $0x8] sm:$0xff]
  %v18 = vld [vmem:[%s0 + $0x10] sm:$0xff]
  %v19 = vld [vmem:[%s0 + $0x18] sm:$0xf]
  %v20 = vld [vmem:[%s0 + $0x1c] sm:$0xff]
  %v21 = vld [vmem:[%s0 + $0x24] sm:$0xff]
  %v22 = vld [vmem:[%s0 + $0x2c] sm:$0xff]
  %v23 = vld [vmem:[%s0 + $0x34] sm:$0xf]
  %v24 = vld [vmem:[%s0 + $0x38] sm:$0xff]
  %v25 = vld [vmem:[%s0 + $0x40] sm:$0xff]
  %v26 = vld [vmem:[%s0 + $0x48] sm:$0xff]
  %v27 = vld [vmem:[%s0 + $0x50] sm:$0xf]
  %v28 = vld [vmem:[%s0 + $0x54] sm:$0xff]
  %v29 = vld [vmem:[%s0 + $0x5c] sm:$0xff]
  %v30 = vld [vmem:[%s0 + $0x64] sm:$0xff]
  %v31 = vld [vmem:[%s0 + $0x6c] sm:$0xf]
  %v32 = vld [vmem:[%s0 + $0x70] sm:$0xff]
  %v33 = vld [vmem:[%s0 + $0x78] sm:$0xff]
  %v34 = vld [vmem:[%s0 + $0x80] sm:$0xff]
  %v35 = vld [vmem:[%s0 + $0x88] sm:$0xf]
  %v36 = vld [vmem:[%s0 + $0x8c] sm:$0xff]
  %v37 = vld [vmem:[%s0 + $0x94] sm:$0xff]
  %v38 = vld [vmem:[%s0 + $0x9c] sm:$0xff]
  %v39 = vld [vmem:[%s0 + $0xa4] sm:$0xf]
  %v40 = vld [vmem:[%s0 + $0xa8] sm:$0x77]
  %v41 = vld [vmem:[%s0 + $0xb0] sm:$0x77]
  %v42 = vld [vmem:[%s0 + $0xb8] sm:$0x77]
  %v43 = vld [vmem:[%s0 + $0xc0] sm:$0x7]
  %v72 = vunpack.c.l.b16 %v16
  %v73 = vunpack.c.h.b16 %v16
  %v74 = vunpack.c.l.b16 %v17
  %v75 = vunpack.c.h.b16 %v17
  %v76 = vunpack.c.l.b16 %v18
  %v77 = vunpack.c.h.b16 %v18
  %v78 = vunpack.c.l.b16 %v19
  %v79 = vunpack.c.l.b16 %v20
  %v80 = vunpack.c.h.b16 %v20
  %v81 = vunpack.c.l.b16 %v21
  %v82 = vunpack.c.h.b16 %v21
  %v83 = vunpack.c.l.b16 %v22
  %v84 = vunpack.c.h.b16 %v22
  %v85 = vunpack.c.l.b16 %v23
  %v86 = vunpack.c.l.b16 %v24
  %v87 = vunpack.c.h.b16 %v24
  %v88 = vunpack.c.l.b16 %v25
  %v89 = vunpack.c.h.b16 %v25
  %v90 = vunpack.c.l.b16 %v26
  %v91 = vunpack.c.h.b16 %v26
  %v92 = vunpack.c.l.b16 %v27
  %v93 = vunpack.c.l.b16 %v28
  %v94 = vunpack.c.h.b16 %v28
  %v95 = vunpack.c.l.b16 %v29
  %v96 = vunpack.c.h.b16 %v29
  %v97 = vunpack.c.l.b16 %v30
  %v98 = vunpack.c.h.b16 %v30
  %v99 = vunpack.c.l.b16 %v31
  %v100 = vunpack.c.l.b16 %v32
  %v101 = vunpack.c.h.b16 %v32
  %v102 = vunpack.c.l.b16 %v33
  %v103 = vunpack.c.h.b16 %v33
  %v104 = vunpack.c.l.b16 %v34
  %v105 = vunpack.c.h.b16 %v34
  %v106 = vunpack.c.l.b16 %v35
  %v107 = vunpack.c.l.b16 %v36
  %v108 = vunpack.c.h.b16 %v36
  %v109 = vunpack.c.l.b16 %v37
  %v110 = vunpack.c.h.b16 %v37
  %v111 = vunpack.c.l.b16 %v38
  %v112 = vunpack.c.h.b16 %v38
  %v113 = vunpack.c.l.b16 %v39
  %v114 = vunpack.c.l.b16 %v40
  %v115 = vunpack.c.h.b16 %v40
  %v116 = vunpack.c.l.b16 %v41
  %v117 = vunpack.c.h.b16 %v41
  %v118 = vunpack.c.l.b16 %v42
  %v119 = vunpack.c.h.b16 %v42
  %v120 = vunpack.c.l.b16 %v43
  %v121 = vpack.c.b16 %v79, %v72
  %v122 = vpack.c.b16 %v80, %v73
  %v123 = vpack.c.b16 %v81, %v74
  %v124 = vpack.c.b16 %v82, %v75
  %v125 = vpack.c.b16 %v83, %v76
  %v126 = vpack.c.b16 %v84, %v77
  %v127 = vpack.c.b16 %v85, %v78
  %v128 = vpack.c.b16 %v93, %v86
  %v129 = vpack.c.b16 %v94, %v87
  %v130 = vpack.c.b16 %v95, %v88
  %v131 = vpack.c.b16 %v96, %v89
  %v132 = vpack.c.b16 %v97, %v90
  %v133 = vpack.c.b16 %v98, %v91
  %v134 = vpack.c.b16 %v99, %v92
  %v135 = vpack.c.b16 %v107, %v100
  %v136 = vpack.c.b16 %v108, %v101
  %v137 = vpack.c.b16 %v109, %v102
  %v138 = vpack.c.b16 %v110, %v103
  %v139 = vpack.c.b16 %v111, %v104
  %v140 = vpack.c.b16 %v112, %v105
  %v141 = vpack.c.b16 %v113, %v106
  %v142 = vpack.c.b16 %v114, %v114
  %v143 = vpack.c.b16 %v115, %v115
  %v144 = vpack.c.b16 %v116, %v116
  %v145 = vpack.c.b16 %v117, %v117
  %v146 = vpack.c.b16 %v118, %v118
  %v147 = vpack.c.b16 %v119, %v119
  %v148 = vpack.c.b16 %v120, %v120
  %vm170 = vcmask 441344
  %v172 = vsel %vm170, %v15, 0
  %vm174 = vcmask 1042432
  %v176 = vsel %vm174, %v142, 0
  %v179 = vsel %vm174, %v143, 0
  %v182 = vsel %vm174, %v144, 0
  %v185 = vsel %vm174, %v145, 0
  %v188 = vsel %vm174, %v146, 0
  %v191 = vsel %vm174, %v147, 0
  %v194 = vsel %vm174, %v148, 0
  %196 = vmatprep.subr.bf16.mxu0 %v122
  %197 = vmatpush1.bf16.msra.mxu0 %v121
  %198 = vmatprep.subr.bf16.mxu0 %v129
  %199 = vmatpush1.bf16.msra.mxu0 %v128
  %200 = vmatprep.subr.bf16.mxu0 %v136
  %201 = vmatpush1.bf16.msra.mxu0 %v135
  %202 = vmatprep.subr.bf16.mxu0 %v179
  %203 = vmatpush1.bf16.msra.mxu0 %v176
  %204 = vmatprep.subr.bf16.mxu0 0
  %205 = vmatpush1.bf16.msra.mxu0 0
  %206 = vmatprep.subr.bf16.mxu0 0
  %207 = vmatpush1.bf16.msra.mxu0 0
  %208 = vmatprep.subr.bf16.mxu0 0
  %209 = vmatpush1.bf16.msra.mxu0 0
  %210 = vmatprep.subr.bf16.mxu0 0
  %211 = vmatpush1.bf16.msra.mxu0 0
  %212 = vmatprep.subr.bf16.mxu0 0
  %213 = vmatpush1.bf16.msra.mxu0 0
  %214 = vmatprep.subr.bf16.mxu0 0
  %215 = vmatpush1.bf16.msra.mxu0 0
  %216 = vmatprep.subr.bf16.mxu0 0
  %217 = vmatpush1.bf16.msra.mxu0 0
  %218 = vmatprep.subr.bf16.mxu0 0
  %219 = vmatpush1.bf16.msra.mxu0 0
  %220 = vmatprep.subr.bf16.mxu0 0
  %221 = vmatpush1.bf16.msra.mxu0 0
  %222 = vmatprep.subr.bf16.mxu0 0
  %223 = vmatpush1.bf16.msra.mxu0 0
  %224 = vmatprep.subr.bf16.mxu0 0
  %225 = vmatpush1.bf16.msra.mxu0 0
  %226 = vmatprep.subr.bf16.mxu0 0
  %227 = vmatpush1.bf16.msra.mxu0 0
  %228 = vmatprep.mubr.bf16.mxu0 0
  %229 = vmatmul.mubr.bf16.gmra.mrb[0].mxu0 %v172
  %v230 = vpop.f32.mrb[0].mxu0
  %v231 = vadd.f32 0.0, %v230
  %v232 = vpop.f32.mrb[0].mxu0
  %v233 = vadd.f32 0.0, %v232
  %v234 = vpop.f32.mrb[0].mxu0
  %v235 = vpop.f32.mrb[0].mxu0
  %236 = vdwg.mxu0
  %237 = vmatprep.subr.bf16.mxu0 %v124
  %238 = vmatpush1.bf16.msra.mxu0 %v123
  %239 = vmatprep.subr.bf16.mxu0 %v131
  %240 = vmatpush1.bf16.msra.mxu0 %v130
  %241 = vmatprep.subr.bf16.mxu0 %v138
  %242 = vmatpush1.bf16.msra.mxu0 %v137
  %243 = vmatprep.subr.bf16.mxu0 %v185
  %244 = vmatpush1.bf16.msra.mxu0 %v182
  %245 = vmatprep.subr.bf16.mxu0 0
  %246 = vmatpush1.bf16.msra.mxu0 0
  %247 = vmatprep.subr.bf16.mxu0 0
  %248 = vmatpush1.bf16.msra.mxu0 0
  %249 = vmatprep.subr.bf16.mxu0 0
  %250 = vmatpush1.bf16.msra.mxu0 0
  %251 = vmatprep.subr.bf16.mxu0 0
  %252 = vmatpush1.bf16.msra.mxu0 0
  %253 = vmatprep.subr.bf16.mxu0 0
  %254 = vmatpush1.bf16.msra.mxu0 0
  %255 = vmatprep.subr.bf16.mxu0 0
  %256 = vmatpush1.bf16.msra.mxu0 0
  %257 = vmatprep.subr.bf16.mxu0 0
  %258 = vmatpush1.bf16.msra.mxu0 0
  %259 = vmatprep.subr.bf16.mxu0 0
  %260 = vmatpush1.bf16.msra.mxu0 0
  %261 = vmatprep.subr.bf16.mxu0 0
  %262 = vmatpush1.bf16.msra.mxu0 0
  %263 = vmatprep.subr.bf16.mxu0 0
  %264 = vmatpush1.bf16.msra.mxu0 0
  %265 = vmatprep.subr.bf16.mxu0 0
  %266 = vmatpush1.bf16.msra.mxu0 0
  %267 = vmatprep.subr.bf16.mxu0 0
  %268 = vmatpush1.bf16.msra.mxu0 0
  %269 = vmatprep.mubr.bf16.mxu0 0
  %270 = vmatmul.mubr.bf16.gmra.mrb[0].mxu0 %v172
  %v271 = vpop.f32.mrb[0].mxu0
  %v272 = vadd.f32 0.0, %v271
  %v273 = vpop.f32.mrb[0].mxu0
  %v274 = vadd.f32 0.0, %v273
  %v275 = vpop.f32.mrb[0].mxu0
  %v276 = vpop.f32.mrb[0].mxu0
  %277 = vdwg.mxu0
  %278 = vmatprep.subr.bf16.mxu0 %v126
  %279 = vmatpush1.bf16.msra.mxu0 %v125
  %280 = vmatprep.subr.bf16.mxu0 %v133
  %281 = vmatpush1.bf16.msra.mxu0 %v132
  %282 = vmatprep.subr.bf16.mxu0 %v140
  %283 = vmatpush1.bf16.msra.mxu0 %v139
  %284 = vmatprep.subr.bf16.mxu0 %v191
  %285 = vmatpush1.bf16.msra.mxu0 %v188
  %286 = vmatprep.subr.bf16.mxu0 0
  %287 = vmatpush1.bf16.msra.mxu0 0
  %288 = vmatprep.subr.bf16.mxu0 0
  %289 = vmatpush1.bf16.msra.mxu0 0
  %290 = vmatprep.subr.bf16.mxu0 0
  %291 = vmatpush1.bf16.msra.mxu0 0
  %292 = vmatprep.subr.bf16.mxu0 0
  %293 = vmatpush1.bf16.msra.mxu0 0
  %294 = vmatprep.subr.bf16.mxu0 0
  %295 = vmatpush1.bf16.msra.mxu0 0
  %296 = vmatprep.subr.bf16.mxu0 0
  %297 = vmatpush1.bf16.msra.mxu0 0
  %298 = vmatprep.subr.bf16.mxu0 0
  %299 = vmatpush1.bf16.msra.mxu0 0
  %300 = vmatprep.subr.bf16.mxu0 0
  %301 = vmatpush1.bf16.msra.mxu0 0
  %302 = vmatprep.subr.bf16.mxu0 0
  %303 = vmatpush1.bf16.msra.mxu0 0
  %304 = vmatprep.subr.bf16.mxu0 0
  %305 = vmatpush1.bf16.msra.mxu0 0
  %306 = vmatprep.subr.bf16.mxu0 0
  %307 = vmatpush1.bf16.msra.mxu0 0
  %308 = vmatprep.subr.bf16.mxu0 0
  %309 = vmatpush1.bf16.msra.mxu0 0
  %310 = vmatprep.mubr.bf16.mxu0 0
  %311 = vmatmul.mubr.bf16.gmra.mrb[0].mxu0 %v172
  %v312 = vpop.f32.mrb[0].mxu0
  %v313 = vadd.f32 0.0, %v312
  %v314 = vpop.f32.mrb[0].mxu0
  %v315 = vadd.f32 0.0, %v314
  %v316 = vpop.f32.mrb[0].mxu0
  %v317 = vpop.f32.mrb[0].mxu0
  %318 = vdwg.mxu0
  %319 = vmatprep.subr.bf16.mxu0 0
  %320 = vmatpush1.bf16.msra.mxu0 %v127
  %321 = vmatprep.subr.bf16.mxu0 0
  %322 = vmatpush1.bf16.msra.mxu0 %v134
  %323 = vmatprep.subr.bf16.mxu0 0
  %324 = vmatpush1.bf16.msra.mxu0 %v141
  %325 = vmatprep.subr.bf16.mxu0 0
  %326 = vmatpush1.bf16.msra.mxu0 %v194
  %327 = vmatprep.subr.bf16.mxu0 0
  %328 = vmatpush1.bf16.msra.mxu0 0
  %329 = vmatprep.subr.bf16.mxu0 0
  %330 = vmatpush1.bf16.msra.mxu0 0
  %331 = vmatprep.subr.bf16.mxu0 0
  %332 = vmatpush1.bf16.msra.mxu0 0
  %333 = vmatprep.subr.bf16.mxu0 0
  %334 = vmatpush1.bf16.msra.mxu0 0
  %335 = vmatprep.subr.bf16.mxu0 0
  %336 = vmatpush1.bf16.msra.mxu0 0
  %337 = vmatprep.subr.bf16.mxu0 0
  %338 = vmatpush1.bf16.msra.mxu0 0
  %339 = vmatprep.subr.bf16.mxu0 0
  %340 = vmatpush1.bf16.msra.mxu0 0
  %341 = vmatprep.subr.bf16.mxu0 0
  %342 = vmatpush1.bf16.msra.mxu0 0
  %343 = vmatprep.subr.bf16.mxu0 0
  %344 = vmatpush1.bf16.msra.mxu0 0
  %345 = vmatprep.subr.bf16.mxu0 0
  %346 = vmatpush1.bf16.msra.mxu0 0
  %347 = vmatprep.subr.bf16.mxu0 0
  %348 = vmatpush1.bf16.msra.mxu0 0
  %349 = vmatprep.subr.bf16.mxu0 0
  %350 = vmatpush1.bf16.msra.mxu0 0
  %351 = vmatprep.mubr.bf16.mxu0 0
  %352 = vmatmul.mubr.bf16.gmra.mrb[0].mxu0 %v172
  %v353 = vpop.f32.mrb[0].mxu0
  %v354 = vadd.f32 0.0, %v353
  %v355 = vpop.f32.mrb[0].mxu0
  %v356 = vpop.f32.mrb[0].mxu0
  %v357 = vpop.f32.mrb[0].mxu0
  %358 = vdwg.mxu0
  %s359 = scalar_lea.vmem %s0, 196
  %v360 = vld [vmem:[%s359] sm:$0xff]
  %v361 = vld [vmem:[%s359 + $0x8] sm:$0xff]
  %v362 = vld [vmem:[%s359 + $0x10] sm:$0xff]
  %v363 = vld [vmem:[%s359 + $0x18] sm:$0xf]
  %v364 = vld [vmem:[%s359 + $0x1c] sm:$0xff]
  %v365 = vld [vmem:[%s359 + $0x24] sm:$0xff]
  %v366 = vld [vmem:[%s359 + $0x2c] sm:$0xff]
  %v367 = vld [vmem:[%s359 + $0x34] sm:$0xf]
  %v368 = vld [vmem:[%s359 + $0x38] sm:$0xff]
  %v369 = vld [vmem:[%s359 + $0x40] sm:$0xff]
  %v370 = vld [vmem:[%s359 + $0x48] sm:$0xff]
  %v371 = vld [vmem:[%s359 + $0x50] sm:$0xf]
  %v372 = vld [vmem:[%s359 + $0x54] sm:$0xff]
  %v373 = vld [vmem:[%s359 + $0x5c] sm:$0xff]
  %v374 = vld [vmem:[%s359 + $0x64] sm:$0xff]
  %v375 = vld [vmem:[%s359 + $0x6c] sm:$0xf]
  %v376 = vld [vmem:[%s359 + $0x70] sm:$0xff]
  %v377 = vld [vmem:[%s359 + $0x78] sm:$0xff]
  %v378 = vld [vmem:[%s359 + $0x80] sm:$0xff]
  %v379 = vld [vmem:[%s359 + $0x88] sm:$0xf]
  %v380 = vld [vmem:[%s359 + $0x8c] sm:$0xff]
  %v381 = vld [vmem:[%s359 + $0x94] sm:$0xff]
  %v382 = vld [vmem:[%s359 + $0x9c] sm:$0xff]
  %v383 = vld [vmem:[%s359 + $0xa4] sm:$0xf]
  %v384 = vld [vmem:[%s359 + $0xa8] sm:$0x77]
  %v385 = vld [vmem:[%s359 + $0xb0] sm:$0x77]
  %v386 = vld [vmem:[%s359 + $0xb8] sm:$0x77]
  %v387 = vld [vmem:[%s359 + $0xc0] sm:$0x7]
  %v416 = vunpack.c.l.b16 %v360
  %v417 = vunpack.c.h.b16 %v360
  %v418 = vunpack.c.l.b16 %v361
  %v419 = vunpack.c.h.b16 %v361
  %v420 = vunpack.c.l.b16 %v362
  %v421 = vunpack.c.h.b16 %v362
  %v422 = vunpack.c.l.b16 %v363
  %v423 = vunpack.c.l.b16 %v364
  %v424 = vunpack.c.h.b16 %v364
  %v425 = vunpack.c.l.b16 %v365
  %v426 = vunpack.c.h.b16 %v365
  %v427 = vunpack.c.l.b16 %v366
  %v428 = vunpack.c.h.b16 %v366
  %v429 = vunpack.c.l.b16 %v367
  %v430 = vunpack.c.l.b16 %v368
  %v431 = vunpack.c.h.b16 %v368
  %v432 = vunpack.c.l.b16 %v369
  %v433 = vunpack.c.h.b16 %v369
  %v434 = vunpack.c.l.b16 %v370
  %v435 = vunpack.c.h.b16 %v370
  %v436 = vunpack.c.l.b16 %v371
  %v437 = vunpack.c.l.b16 %v372
  %v438 = vunpack.c.h.b16 %v372
  %v439 = vunpack.c.l.b16 %v373
  %v440 = vunpack.c.h.b16 %v373
  %v441 = vunpack.c.l.b16 %v374
  %v442 = vunpack.c.h.b16 %v374
  %v443 = vunpack.c.l.b16 %v375
  %v444 = vunpack.c.l.b16 %v376
  %v445 = vunpack.c.h.b16 %v376
  %v446 = vunpack.c.l.b16 %v377
  %v447 = vunpack.c.h.b16 %v377
  %v448 = vunpack.c.l.b16 %v378
  %v449 = vunpack.c.h.b16 %v378
  %v450 = vunpack.c.l.b16 %v379
  %v451 = vunpack.c.l.b16 %v380
  %v452 = vunpack.c.h.b16 %v380
  %v453 = vunpack.c.l.b16 %v381
  %v454 = vunpack.c.h.b16 %v381
  %v455 = vunpack.c.l.b16 %v382
  %v456 = vunpack.c.h.b16 %v382
  %v457 = vunpack.c.l.b16 %v383
  %v458 = vunpack.c.l.b16 %v384
  %v459 = vunpack.c.h.b16 %v384
  %v460 = vunpack.c.l.b16 %v385
  %v461 = vunpack.c.h.b16 %v385
  %v462 = vunpack.c.l.b16 %v386
  %v463 = vunpack.c.h.b16 %v386
  %v464 = vunpack.c.l.b16 %v387
  %v465 = vpack.c.b16 %v423, %v416
  %v466 = vpack.c.b16 %v424, %v417
  %v467 = vpack.c.b16 %v425, %v418
  %v468 = vpack.c.b16 %v426, %v419
  %v469 = vpack.c.b16 %v427, %v420
  %v470 = vpack.c.b16 %v428, %v421
  %v471 = vpack.c.b16 %v429, %v422
  %v472 = vpack.c.b16 %v437, %v430
  %v473 = vpack.c.b16 %v438, %v431
  %v474 = vpack.c.b16 %v439, %v432
  %v475 = vpack.c.b16 %v440, %v433
  %v476 = vpack.c.b16 %v441, %v434
  %v477 = vpack.c.b16 %v442, %v435
  %v478 = vpack.c.b16 %v443, %v436
  %v479 = vpack.c.b16 %v451, %v444
  %v480 = vpack.c.b16 %v452, %v445
  %v481 = vpack.c.b16 %v453, %v446
  %v482 = vpack.c.b16 %v454, %v447
  %v483 = vpack.c.b16 %v455, %v448
  %v484 = vpack.c.b16 %v456, %v449
  %v485 = vpack.c.b16 %v457, %v450
  %v486 = vpack.c.b16 %v458, %v458
  %v487 = vpack.c.b16 %v459, %v459
  %v488 = vpack.c.b16 %v460, %v460
  %v489 = vpack.c.b16 %v461, %v461
  %v490 = vpack.c.b16 %v462, %v462
  %v491 = vpack.c.b16 %v463, %v463
  %v492 = vpack.c.b16 %v464, %v464
  %v515 = vsel %vm174, %v486, 0
  %v518 = vsel %vm174, %v487, 0
  %v521 = vsel %vm174, %v488, 0
  %v524 = vsel %vm174, %v489, 0
  %v527 = vsel %vm174, %v490, 0
  %v530 = vsel %vm174, %v491, 0
  %v533 = vsel %vm174, %v492, 0
  %535 = vmatprep.subr.bf16.mxu0 %v466
  %536 = vmatpush1.bf16.msra.mxu0 %v465
  %537 = vmatprep.subr.bf16.mxu0 %v473
  %538 = vmatpush1.bf16.msra.mxu0 %v472
  %539 = vmatprep.subr.bf16.mxu0 %v480
  %540 = vmatpush1.bf16.msra.mxu0 %v479
  %541 = vmatprep.subr.bf16.mxu0 %v518
  %542 = vmatpush1.bf16.msra.mxu0 %v515
  %543 = vmatprep.subr.bf16.mxu0 0
  %544 = vmatpush1.bf16.msra.mxu0 0
  %545 = vmatprep.subr.bf16.mxu0 0
  %546 = vmatpush1.bf16.msra.mxu0 0
  %547 = vmatprep.subr.bf16.mxu0 0
  %548 = vmatpush1.bf16.msra.mxu0 0
  %549 = vmatprep.subr.bf16.mxu0 0
  %550 = vmatpush1.bf16.msra.mxu0 0
  %551 = vmatprep.subr.bf16.mxu0 0
  %552 = vmatpush1.bf16.msra.mxu0 0
  %553 = vmatprep.subr.bf16.mxu0 0
  %554 = vmatpush1.bf16.msra.mxu0 0
  %555 = vmatprep.subr.bf16.mxu0 0
  %556 = vmatpush1.bf16.msra.mxu0 0
  %557 = vmatprep.subr.bf16.mxu0 0
  %558 = vmatpush1.bf16.msra.mxu0 0
  %559 = vmatprep.subr.bf16.mxu0 0
  %560 = vmatpush1.bf16.msra.mxu0 0
  %561 = vmatprep.subr.bf16.mxu0 0
  %562 = vmatpush1.bf16.msra.mxu0 0
  %563 = vmatprep.subr.bf16.mxu0 0
  %564 = vmatpush1.bf16.msra.mxu0 0
  %565 = vmatprep.subr.bf16.mxu0 0
  %566 = vmatpush1.bf16.msra.mxu0 0
  %567 = vmatprep.mubr.bf16.mxu0 0
  %568 = vmatmul.mubr.bf16.gmra.mrb[0].mxu0 %v172
  %v569 = vpop.f32.mrb[0].mxu0
  %v570 = vadd.f32 0.0, %v569
  %v571 = vpop.f32.mrb[0].mxu0
  %v572 = vadd.f32 0.0, %v571
  %v573 = vpop.f32.mrb[0].mxu0
  %v574 = vpop.f32.mrb[0].mxu0
  %575 = vdwg.mxu0
  %576 = vmatprep.subr.bf16.mxu0 %v468
  %577 = vmatpush1.bf16.msra.mxu0 %v467
  %578 = vmatprep.subr.bf16.mxu0 %v475
  %579 = vmatpush1.bf16.msra.mxu0 %v474
  %580 = vmatprep.subr.bf16.mxu0 %v482
  %581 = vmatpush1.bf16.msra.mxu0 %v481
  %582 = vmatprep.subr.bf16.mxu0 %v524
  %583 = vmatpush1.bf16.msra.mxu0 %v521
  %584 = vmatprep.subr.bf16.mxu0 0
  %585 = vmatpush1.bf16.msra.mxu0 0
  %586 = vmatprep.subr.bf16.mxu0 0
  %587 = vmatpush1.bf16.msra.mxu0 0
  %588 = vmatprep.subr.bf16.mxu0 0
  %589 = vmatpush1.bf16.msra.mxu0 0
  %590 = vmatprep.subr.bf16.mxu0 0
  %591 = vmatpush1.bf16.msra.mxu0 0
  %592 = vmatprep.subr.bf16.mxu0 0
  %593 = vmatpush1.bf16.msra.mxu0 0
  %594 = vmatprep.subr.bf16.mxu0 0
  %595 = vmatpush1.bf16.msra.mxu0 0
  %596 = vmatprep.subr.bf16.mxu0 0
  %597 = vmatpush1.bf16.msra.mxu0 0
  %598 = vmatprep.subr.bf16.mxu0 0
  %599 = vmatpush1.bf16.msra.mxu0 0
  %600 = vmatprep.subr.bf16.mxu0 0
  %601 = vmatpush1.bf16.msra.mxu0 0
  %602 = vmatprep.subr.bf16.mxu0 0
  %603 = vmatpush1.bf16.msra.mxu0 0
  %604 = vmatprep.subr.bf16.mxu0 0
  %605 = vmatpush1.bf16.msra.mxu0 0
  %606 = vmatprep.subr.bf16.mxu0 0
  %607 = vmatpush1.bf16.msra.mxu0 0
  %608 = vmatprep.mubr.bf16.mxu0 0
  %609 = vmatmul.mubr.bf16.gmra.mrb[0].mxu0 %v172
  %v610 = vpop.f32.mrb[0].mxu0
  %v611 = vadd.f32 0.0, %v610
  %v612 = vpop.f32.mrb[0].mxu0
  %v613 = vadd.f32 0.0, %v612
  %v614 = vpop.f32.mrb[0].mxu0
  %v615 = vpop.f32.mrb[0].mxu0
  %616 = vdwg.mxu0
  %617 = vmatprep.subr.bf16.mxu0 %v470
  %618 = vmatpush1.bf16.msra.mxu0 %v469
  %619 = vmatprep.subr.bf16.mxu0 %v477
  %620 = vmatpush1.bf16.msra.mxu0 %v476
  %621 = vmatprep.subr.bf16.mxu0 %v484
  %622 = vmatpush1.bf16.msra.mxu0 %v483
  %623 = vmatprep.subr.bf16.mxu0 %v530
  %624 = vmatpush1.bf16.msra.mxu0 %v527
  %625 = vmatprep.subr.bf16.mxu0 0
  %626 = vmatpush1.bf16.msra.mxu0 0
  %627 = vmatprep.subr.bf16.mxu0 0
  %628 = vmatpush1.bf16.msra.mxu0 0
  %629 = vmatprep.subr.bf16.mxu0 0
  %630 = vmatpush1.bf16.msra.mxu0 0
  %631 = vmatprep.subr.bf16.mxu0 0
  %632 = vmatpush1.bf16.msra.mxu0 0
  %633 = vmatprep.subr.bf16.mxu0 0
  %634 = vmatpush1.bf16.msra.mxu0 0
  %635 = vmatprep.subr.bf16.mxu0 0
  %636 = vmatpush1.bf16.msra.mxu0 0
  %637 = vmatprep.subr.bf16.mxu0 0
  %638 = vmatpush1.bf16.msra.mxu0 0
  %639 = vmatprep.subr.bf16.mxu0 0
  %640 = vmatpush1.bf16.msra.mxu0 0
  %641 = vmatprep.subr.bf16.mxu0 0
  %642 = vmatpush1.bf16.msra.mxu0 0
  %643 = vmatprep.subr.bf16.mxu0 0
  %644 = vmatpush1.bf16.msra.mxu0 0
  %645 = vmatprep.subr.bf16.mxu0 0
  %646 = vmatpush1.bf16.msra.mxu0 0
  %647 = vmatprep.subr.bf16.mxu0 0
  %648 = vmatpush1.bf16.msra.mxu0 0
  %649 = vmatprep.mubr.bf16.mxu0 0
  %650 = vmatmul.mubr.bf16.gmra.mrb[0].mxu0 %v172
  %v651 = vpop.f32.mrb[0].mxu0
  %v652 = vadd.f32 0.0, %v651
  %v653 = vpop.f32.mrb[0].mxu0
  %v654 = vadd.f32 0.0, %v653
  %v655 = vpop.f32.mrb[0].mxu0
  %v656 = vpop.f32.mrb[0].mxu0
  %657 = vdwg.mxu0
  %658 = vmatprep.subr.bf16.mxu0 0
  %659 = vmatpush1.bf16.msra.mxu0 %v471
  %660 = vmatprep.subr.bf16.mxu0 0
  %661 = vmatpush1.bf16.msra.mxu0 %v478
  %662 = vmatprep.subr.bf16.mxu0 0
  %663 = vmatpush1.bf16.msra.mxu0 %v485
  %664 = vmatprep.subr.bf16.mxu0 0
  %665 = vmatpush1.bf16.msra.mxu0 %v533
  %666 = vmatprep.subr.bf16.mxu0 0
  %667 = vmatpush1.bf16.msra.mxu0 0
  %668 = vmatprep.subr.bf16.mxu0 0
  %669 = vmatpush1.bf16.msra.mxu0 0
  %670 = vmatprep.subr.bf16.mxu0 0
  %671 = vmatpush1.bf16.msra.mxu0 0
  %672 = vmatprep.subr.bf16.mxu0 0
  %673 = vmatpush1.bf16.msra.mxu0 0
  %674 = vmatprep.subr.bf16.mxu0 0
  %675 = vmatpush1.bf16.msra.mxu0 0
  %676 = vmatprep.subr.bf16.mxu0 0
  %677 = vmatpush1.bf16.msra.mxu0 0
  %678 = vmatprep.subr.bf16.mxu0 0
  %679 = vmatpush1.bf16.msra.mxu0 0
  %680 = vmatprep.subr.bf16.mxu0 0
  %681 = vmatpush1.bf16.msra.mxu0 0
  %682 = vmatprep.subr.bf16.mxu0 0
  %683 = vmatpush1.bf16.msra.mxu0 0
  %684 = vmatprep.subr.bf16.mxu0 0
  %685 = vmatpush1.bf16.msra.mxu0 0
  %686 = vmatprep.subr.bf16.mxu0 0
  %687 = vmatpush1.bf16.msra.mxu0 0
  %688 = vmatprep.subr.bf16.mxu0 0
  %689 = vmatpush1.bf16.msra.mxu0 0
  %690 = vmatprep.mubr.bf16.mxu0 0
  %691 = vmatmul.mubr.bf16.gmra.mrb[0].mxu0 %v172
  %v692 = vpop.f32.mrb[0].mxu0
  %v693 = vadd.f32 0.0, %v692
  %v694 = vpop.f32.mrb[0].mxu0
  %v695 = vpop.f32.mrb[0].mxu0
  %v696 = vpop.f32.mrb[0].mxu0
  %697 = vdwg.mxu0
  %v698 = vmax.f32 %v231, %v570
  %v699 = vmax.f32 %v233, %v572
  %v700 = vmax.f32 %v272, %v611
  %v701 = vmax.f32 %v274, %v613
  %v702 = vmax.f32 %v313, %v652
  %v703 = vmax.f32 %v315, %v654
  %v704 = vmax.f32 %v354, %v693
  %s705 = scalar_lea.vmem %s0, 392
  %v706 = vld [vmem:[%s705] sm:$0xff]
  %v707 = vld [vmem:[%s705 + $0x8] sm:$0xff]
  %v708 = vld [vmem:[%s705 + $0x10] sm:$0xff]
  %v709 = vld [vmem:[%s705 + $0x18] sm:$0xf]
  %v710 = vld [vmem:[%s705 + $0x1c] sm:$0xff]
  %v711 = vld [vmem:[%s705 + $0x24] sm:$0xff]
  %v712 = vld [vmem:[%s705 + $0x2c] sm:$0xff]
  %v713 = vld [vmem:[%s705 + $0x34] sm:$0xf]
  %v714 = vld [vmem:[%s705 + $0x38] sm:$0xff]
  %v715 = vld [vmem:[%s705 + $0x40] sm:$0xff]
  %v716 = vld [vmem:[%s705 + $0x48] sm:$0xff]
  %v717 = vld [vmem:[%s705 + $0x50] sm:$0xf]
  %v718 = vld [vmem:[%s705 + $0x54] sm:$0xff]
  %v719 = vld [vmem:[%s705 + $0x5c] sm:$0xff]
  %v720 = vld [vmem:[%s705 + $0x64] sm:$0xff]
  %v721 = vld [vmem:[%s705 + $0x6c] sm:$0xf]
  %v722 = vld [vmem:[%s705 + $0x70] sm:$0xff]
  %v723 = vld [vmem:[%s705 + $0x78] sm:$0xff]
  %v724 = vld [vmem:[%s705 + $0x80] sm:$0xff]
  %v725 = vld [vmem:[%s705 + $0x88] sm:$0xf]
  %v726 = vld [vmem:[%s705 + $0x8c] sm:$0xff]
  %v727 = vld [vmem:[%s705 + $0x94] sm:$0xff]
  %v728 = vld [vmem:[%s705 + $0x9c] sm:$0xff]
  %v729 = vld [vmem:[%s705 + $0xa4] sm:$0xf]
  %v730 = vld [vmem:[%s705 + $0xa8] sm:$0x77]
  %v731 = vld [vmem:[%s705 + $0xb0] sm:$0x77]
  %v732 = vld [vmem:[%s705 + $0xb8] sm:$0x77]
  %v733 = vld [vmem:[%s705 + $0xc0] sm:$0x7]
  %v762 = vunpack.c.l.b16 %v706
  %v763 = vunpack.c.h.b16 %v706
  %v764 = vunpack.c.l.b16 %v707
  %v765 = vunpack.c.h.b16 %v707
  %v766 = vunpack.c.l.b16 %v708
  %v767 = vunpack.c.h.b16 %v708
  %v768 = vunpack.c.l.b16 %v709
  %v769 = vunpack.c.l.b16 %v710
  %v770 = vunpack.c.h.b16 %v710
  %v771 = vunpack.c.l.b16 %v711
  %v772 = vunpack.c.h.b16 %v711
  %v773 = vunpack.c.l.b16 %v712
  %v774 = vunpack.c.h.b16 %v712
  %v775 = vunpack.c.l.b16 %v713
  %v776 = vunpack.c.l.b16 %v714
  %v777 = vunpack.c.h.b16 %v714
  %v778 = vunpack.c.l.b16 %v715
  %v779 = vunpack.c.h.b16 %v715
  %v780 = vunpack.c.l.b16 %v716
  %v781 = vunpack.c.h.b16 %v716
  %v782 = vunpack.c.l.b16 %v717
  %v783 = vunpack.c.l.b16 %v718
  %v784 = vunpack.c.h.b16 %v718
  %v785 = vunpack.c.l.b16 %v719
  %v786 = vunpack.c.h.b16 %v719
  %v787 = vunpack.c.l.b16 %v720
  %v788 = vunpack.c.h.b16 %v720
  %v789 = vunpack.c.l.b16 %v721
  %v790 = vunpack.c.l.b16 %v722
  %v791 = vunpack.c.h.b16 %v722
  %v792 = vunpack.c.l.b16 %v723
  %v793 = vunpack.c.h.b16 %v723
  %v794 = vunpack.c.l.b16 %v724
  %v795 = vunpack.c.h.b16 %v724
  %v796 = vunpack.c.l.b16 %v725
  %v797 = vunpack.c.l.b16 %v726
  %v798 = vunpack.c.h.b16 %v726
  %v799 = vunpack.c.l.b16 %v727
  %v800 = vunpack.c.h.b16 %v727
  %v801 = vunpack.c.l.b16 %v728
  %v802 = vunpack.c.h.b16 %v728
  %v803 = vunpack.c.l.b16 %v729
  %v804 = vunpack.c.l.b16 %v730
  %v805 = vunpack.c.h.b16 %v730
  %v806 = vunpack.c.l.b16 %v731
  %v807 = vunpack.c.h.b16 %v731
  %v808 = vunpack.c.l.b16 %v732
  %v809 = vunpack.c.h.b16 %v732
  %v810 = vunpack.c.l.b16 %v733
  %v811 = vpack.c.b16 %v769, %v762
  %v812 = vpack.c.b16 %v770, %v763
  %v813 = vpack.c.b16 %v771, %v764
  %v814 = vpack.c.b16 %v772, %v765
  %v815 = vpack.c.b16 %v773, %v766
  %v816 = vpack.c.b16 %v774, %v767
  %v817 = vpack.c.b16 %v775, %v768
  %v818 = vpack.c.b16 %v783, %v776
  %v819 = vpack.c.b16 %v784, %v777
  %v820 = vpack.c.b16 %v785, %v778
  %v821 = vpack.c.b16 %v786, %v779
  %v822 = vpack.c.b16 %v787, %v780
  %v823 = vpack.c.b16 %v788, %v781
  %v824 = vpack.c.b16 %v789, %v782
  %v825 = vpack.c.b16 %v797, %v790
  %v826 = vpack.c.b16 %v798, %v791
  %v827 = vpack.c.b16 %v799, %v792
  %v828 = vpack.c.b16 %v800, %v793
  %v829 = vpack.c.b16 %v801, %v794
  %v830 = vpack.c.b16 %v802, %v795
  %v831 = vpack.c.b16 %v803, %v796
  %v832 = vpack.c.b16 %v804, %v804
  %v833 = vpack.c.b16 %v805, %v805
  %v834 = vpack.c.b16 %v806, %v806
  %v835 = vpack.c.b16 %v807, %v807
  %v836 = vpack.c.b16 %v808, %v808
  %v837 = vpack.c.b16 %v809, %v809
  %v838 = vpack.c.b16 %v810, %v810
  %v861 = vsel %vm174, %v832, 0
  %v864 = vsel %vm174, %v833, 0
  %v867 = vsel %vm174, %v834, 0
  %v870 = vsel %vm174, %v835, 0
  %v873 = vsel %vm174, %v836, 0
  %v876 = vsel %vm174, %v837, 0
  %v879 = vsel %vm174, %v838, 0
  %881 = vmatprep.subr.bf16.mxu0 %v812
  %882 = vmatpush1.bf16.msra.mxu0 %v811
  %883 = vmatprep.subr.bf16.mxu0 %v819
  %884 = vmatpush1.bf16.msra.mxu0 %v818
  %885 = vmatprep.subr.bf16.mxu0 %v826
  %886 = vmatpush1.bf16.msra.mxu0 %v825
  %887 = vmatprep.subr.bf16.mxu0 %v864
  %888 = vmatpush1.bf16.msra.mxu0 %v861
  %889 = vmatprep.subr.bf16.mxu0 0
  %890 = vmatpush1.bf16.msra.mxu0 0
  %891 = vmatprep.subr.bf16.mxu0 0
  %892 = vmatpush1.bf16.msra.mxu0 0
  %893 = vmatprep.subr.bf16.mxu0 0
  %894 = vmatpush1.bf16.msra.mxu0 0
  %895 = vmatprep.subr.bf16.mxu0 0
  %896 = vmatpush1.bf16.msra.mxu0 0
  %897 = vmatprep.subr.bf16.mxu0 0
  %898 = vmatpush1.bf16.msra.mxu0 0
  %899 = vmatprep.subr.bf16.mxu0 0
  %900 = vmatpush1.bf16.msra.mxu0 0
  %901 = vmatprep.subr.bf16.mxu0 0
  %902 = vmatpush1.bf16.msra.mxu0 0
  %903 = vmatprep.subr.bf16.mxu0 0
  %904 = vmatpush1.bf16.msra.mxu0 0
  %905 = vmatprep.subr.bf16.mxu0 0
  %906 = vmatpush1.bf16.msra.mxu0 0
  %907 = vmatprep.subr.bf16.mxu0 0
  %908 = vmatpush1.bf16.msra.mxu0 0
  %909 = vmatprep.subr.bf16.mxu0 0
  %910 = vmatpush1.bf16.msra.mxu0 0
  %911 = vmatprep.subr.bf16.mxu0 0
  %912 = vmatpush1.bf16.msra.mxu0 0
  %913 = vmatprep.mubr.bf16.mxu0 0
  %914 = vmatmul.mubr.bf16.gmra.mrb[0].mxu0 %v172
  %v915 = vpop.f32.mrb[0].mxu0
  %v916 = vadd.f32 0.0, %v915
  %v917 = vpop.f32.mrb[0].mxu0
  %v918 = vadd.f32 0.0, %v917
  %v919 = vpop.f32.mrb[0].mxu0
  %v920 = vpop.f32.mrb[0].mxu0
  %921 = vdwg.mxu0
  %922 = vmatprep.subr.bf16.mxu0 %v814
  %923 = vmatpush1.bf16.msra.mxu0 %v813
  %924 = vmatprep.subr.bf16.mxu0 %v821
  %925 = vmatpush1.bf16.msra.mxu0 %v820
  %926 = vmatprep.subr.bf16.mxu0 %v828
  %927 = vmatpush1.bf16.msra.mxu0 %v827
  %928 = vmatprep.subr.bf16.mxu0 %v870
  %929 = vmatpush1.bf16.msra.mxu0 %v867
  %930 = vmatprep.subr.bf16.mxu0 0
  %931 = vmatpush1.bf16.msra.mxu0 0
  %932 = vmatprep.subr.bf16.mxu0 0
  %933 = vmatpush1.bf16.msra.mxu0 0
  %934 = vmatprep.subr.bf16.mxu0 0
  %935 = vmatpush1.bf16.msra.mxu0 0
  %936 = vmatprep.subr.bf16.mxu0 0
  %937 = vmatpush1.bf16.msra.mxu0 0
  %938 = vmatprep.subr.bf16.mxu0 0
  %939 = vmatpush1.bf16.msra.mxu0 0
  %940 = vmatprep.subr.bf16.mxu0 0
  %941 = vmatpush1.bf16.msra.mxu0 0
  %942 = vmatprep.subr.bf16.mxu0 0
  %943 = vmatpush1.bf16.msra.mxu0 0
  %944 = vmatprep.subr.bf16.mxu0 0
  %945 = vmatpush1.bf16.msra.mxu0 0
  %946 = vmatprep.subr.bf16.mxu0 0
  %947 = vmatpush1.bf16.msra.mxu0 0
  %948 = vmatprep.subr.bf16.mxu0 0
  %949 = vmatpush1.bf16.msra.mxu0 0
  %950 = vmatprep.subr.bf16.mxu0 0
  %951 = vmatpush1.bf16.msra.mxu0 0
  %952 = vmatprep.subr.bf16.mxu0 0
  %953 = vmatpush1.bf16.msra.mxu0 0
  %954 = vmatprep.mubr.bf16.mxu0 0
  %955 = vmatmul.mubr.bf16.gmra.mrb[0].mxu0 %v172
  %v956 = vpop.f32.mrb[0].mxu0
  %v957 = vadd.f32 0.0, %v956
  %v958 = vpop.f32.mrb[0].mxu0
  %v959 = vadd.f32 0.0, %v958
  %v960 = vpop.f32.mrb[0].mxu0
  %v961 = vpop.f32.mrb[0].mxu0
  %962 = vdwg.mxu0
  %963 = vmatprep.subr.bf16.mxu0 %v816
  %964 = vmatpush1.bf16.msra.mxu0 %v815
  %965 = vmatprep.subr.bf16.mxu0 %v823
  %966 = vmatpush1.bf16.msra.mxu0 %v822
  %967 = vmatprep.subr.bf16.mxu0 %v830
  %968 = vmatpush1.bf16.msra.mxu0 %v829
  %969 = vmatprep.subr.bf16.mxu0 %v876
  %970 = vmatpush1.bf16.msra.mxu0 %v873
  %971 = vmatprep.subr.bf16.mxu0 0
  %972 = vmatpush1.bf16.msra.mxu0 0
  %973 = vmatprep.subr.bf16.mxu0 0
  %974 = vmatpush1.bf16.msra.mxu0 0
  %975 = vmatprep.subr.bf16.mxu0 0
  %976 = vmatpush1.bf16.msra.mxu0 0
  %977 = vmatprep.subr.bf16.mxu0 0
  %978 = vmatpush1.bf16.msra.mxu0 0
  %979 = vmatprep.subr.bf16.mxu0 0
  %980 = vmatpush1.bf16.msra.mxu0 0
  %981 = vmatprep.subr.bf16.mxu0 0
  %982 = vmatpush1.bf16.msra.mxu0 0
  %983 = vmatprep.subr.bf16.mxu0 0
  %984 = vmatpush1.bf16.msra.mxu0 0
  %985 = vmatprep.subr.bf16.mxu0 0
  %986 = vmatpush1.bf16.msra.mxu0 0
  %987 = vmatprep.subr.bf16.mxu0 0
  %988 = vmatpush1.bf16.msra.mxu0 0
  %989 = vmatprep.subr.bf16.mxu0 0
  %990 = vmatpush1.bf16.msra.mxu0 0
  %991 = vmatprep.subr.bf16.mxu0 0
  %992 = vmatpush1.bf16.msra.mxu0 0
  %993 = vmatprep.subr.bf16.mxu0 0
  %994 = vmatpush1.bf16.msra.mxu0 0
  %995 = vmatprep.mubr.bf16.mxu0 0
  %996 = vmatmul.mubr.bf16.gmra.mrb[0].mxu0 %v172
  %v997 = vpop.f32.mrb[0].mxu0
  %v998 = vadd.f32 0.0, %v997
  %v999 = vpop.f32.mrb[0].mxu0
  %v1000 = vadd.f32 0.0, %v999
  %v1001 = vpop.f32.mrb[0].mxu0
  %v1002 = vpop.f32.mrb[0].mxu0
  %1003 = vdwg.mxu0
  %1004 = vmatprep.subr.bf16.mxu0 0
  %1005 = vmatpush1.bf16.msra.mxu0 %v817
  %1006 = vmatprep.subr.bf16.mxu0 0
  %1007 = vmatpush1.bf16.msra.mxu0 %v824
  %1008 = vmatprep.subr.bf16.mxu0 0
  %1009 = vmatpush1.bf16.msra.mxu0 %v831
  %1010 = vmatprep.subr.bf16.mxu0 0
  %1011 = vmatpush1.bf16.msra.mxu0 %v879
  %1012 = vmatprep.subr.bf16.mxu0 0
  %1013 = vmatpush1.bf16.msra.mxu0 0
  %1014 = vmatprep.subr.bf16.mxu0 0
  %1015 = vmatpush1.bf16.msra.mxu0 0
  %1016 = vmatprep.subr.bf16.mxu0 0
  %1017 = vmatpush1.bf16.msra.mxu0 0
  %1018 = vmatprep.subr.bf16.mxu0 0
  %1019 = vmatpush1.bf16.msra.mxu0 0
  %1020 = vmatprep.subr.bf16.mxu0 0
  %1021 = vmatpush1.bf16.msra.mxu0 0
  %1022 = vmatprep.subr.bf16.mxu0 0
  %1023 = vmatpush1.bf16.msra.mxu0 0
  %1024 = vmatprep.subr.bf16.mxu0 0
  %1025 = vmatpush1.bf16.msra.mxu0 0
  %1026 = vmatprep.subr.bf16.mxu0 0
  %1027 = vmatpush1.bf16.msra.mxu0 0
  %1028 = vmatprep.subr.bf16.mxu0 0
  %1029 = vmatpush1.bf16.msra.mxu0 0
  %1030 = vmatprep.subr.bf16.mxu0 0
  %1031 = vmatpush1.bf16.msra.mxu0 0
  %1032 = vmatprep.subr.bf16.mxu0 0
  %1033 = vmatpush1.bf16.msra.mxu0 0
  %1034 = vmatprep.subr.bf16.mxu0 0
  %1035 = vmatpush1.bf16.msra.mxu0 0
  %1036 = vmatprep.mubr.bf16.mxu0 0
  %1037 = vmatmul.mubr.bf16.gmra.mrb[0].mxu0 %v172
  %v1038 = vpop.f32.mrb[0].mxu0
  %v1039 = vadd.f32 0.0, %v1038
  %v1040 = vpop.f32.mrb[0].mxu0
  %v1041 = vpop.f32.mrb[0].mxu0
  %v1042 = vpop.f32.mrb[0].mxu0
  %1043 = vdwg.mxu0
  %v1044 = vmax.f32 %v698, %v916
  %v1045 = vmax.f32 %v699, %v918
  %v1046 = vmax.f32 %v700, %v957
  %v1047 = vmax.f32 %v701, %v959
  %v1048 = vmax.f32 %v702, %v998
  %v1049 = vmax.f32 %v703, %v1000
  %v1050 = vmax.f32 %v704, %v1039
  %s1051 = scalar_lea.vmem %s0, 588
  %v1052 = vld [vmem:[%s1051] sm:$0xff]
  %v1053 = vld [vmem:[%s1051 + $0x8] sm:$0xff]
  %v1054 = vld [vmem:[%s1051 + $0x10] sm:$0xff]
  %v1055 = vld [vmem:[%s1051 + $0x18] sm:$0xf]
  %v1056 = vld [vmem:[%s1051 + $0x1c] sm:$0xff]
  %v1057 = vld [vmem:[%s1051 + $0x24] sm:$0xff]
  %v1058 = vld [vmem:[%s1051 + $0x2c] sm:$0xff]
  %v1059 = vld [vmem:[%s1051 + $0x34] sm:$0xf]
  %v1060 = vld [vmem:[%s1051 + $0x38] sm:$0xff]
  %v1061 = vld [vmem:[%s1051 + $0x40] sm:$0xff]
  %v1062 = vld [vmem:[%s1051 + $0x48] sm:$0xff]
  %v1063 = vld [vmem:[%s1051 + $0x50] sm:$0xf]
  %v1064 = vld [vmem:[%s1051 + $0x54] sm:$0xff]
  %v1065 = vld [vmem:[%s1051 + $0x5c] sm:$0xff]
  %v1066 = vld [vmem:[%s1051 + $0x64] sm:$0xff]
  %v1067 = vld [vmem:[%s1051 + $0x6c] sm:$0xf]
  %v1068 = vld [vmem:[%s1051 + $0x70] sm:$0xff]
  %v1069 = vld [vmem:[%s1051 + $0x78] sm:$0xff]
  %v1070 = vld [vmem:[%s1051 + $0x80] sm:$0xff]
  %v1071 = vld [vmem:[%s1051 + $0x88] sm:$0xf]
  %v1072 = vld [vmem:[%s1051 + $0x8c] sm:$0xff]
  %v1073 = vld [vmem:[%s1051 + $0x94] sm:$0xff]
  %v1074 = vld [vmem:[%s1051 + $0x9c] sm:$0xff]
  %v1075 = vld [vmem:[%s1051 + $0xa4] sm:$0xf]
  %v1076 = vld [vmem:[%s1051 + $0xa8] sm:$0x77]
  %v1077 = vld [vmem:[%s1051 + $0xb0] sm:$0x77]
  %v1078 = vld [vmem:[%s1051 + $0xb8] sm:$0x77]
  %v1079 = vld [vmem:[%s1051 + $0xc0] sm:$0x7]
  %v1108 = vunpack.c.l.b16 %v1052
  %v1109 = vunpack.c.h.b16 %v1052
  %v1110 = vunpack.c.l.b16 %v1053
  %v1111 = vunpack.c.h.b16 %v1053
  %v1112 = vunpack.c.l.b16 %v1054
  %v1113 = vunpack.c.h.b16 %v1054
  %v1114 = vunpack.c.l.b16 %v1055
  %v1115 = vunpack.c.l.b16 %v1056
  %v1116 = vunpack.c.h.b16 %v1056
  %v1117 = vunpack.c.l.b16 %v1057
  %v1118 = vunpack.c.h.b16 %v1057
  %v1119 = vunpack.c.l.b16 %v1058
  %v1120 = vunpack.c.h.b16 %v1058
  %v1121 = vunpack.c.l.b16 %v1059
  %v1122 = vunpack.c.l.b16 %v1060
  %v1123 = vunpack.c.h.b16 %v1060
  %v1124 = vunpack.c.l.b16 %v1061
  %v1125 = vunpack.c.h.b16 %v1061
  %v1126 = vunpack.c.l.b16 %v1062
  %v1127 = vunpack.c.h.b16 %v1062
  %v1128 = vunpack.c.l.b16 %v1063
  %v1129 = vunpack.c.l.b16 %v1064
  %v1130 = vunpack.c.h.b16 %v1064
  %v1131 = vunpack.c.l.b16 %v1065
  %v1132 = vunpack.c.h.b16 %v1065
  %v1133 = vunpack.c.l.b16 %v1066
  %v1134 = vunpack.c.h.b16 %v1066
  %v1135 = vunpack.c.l.b16 %v1067
  %v1136 = vunpack.c.l.b16 %v1068
  %v1137 = vunpack.c.h.b16 %v1068
  %v1138 = vunpack.c.l.b16 %v1069
  %v1139 = vunpack.c.h.b16 %v1069
  %v1140 = vunpack.c.l.b16 %v1070
  %v1141 = vunpack.c.h.b16 %v1070
  %v1142 = vunpack.c.l.b16 %v1071
  %v1143 = vunpack.c.l.b16 %v1072
  %v1144 = vunpack.c.h.b16 %v1072
  %v1145 = vunpack.c.l.b16 %v1073
  %v1146 = vunpack.c.h.b16 %v1073
  %v1147 = vunpack.c.l.b16 %v1074
  %v1148 = vunpack.c.h.b16 %v1074
  %v1149 = vunpack.c.l.b16 %v1075
  %v1150 = vunpack.c.l.b16 %v1076
  %v1151 = vunpack.c.h.b16 %v1076
  %v1152 = vunpack.c.l.b16 %v1077
  %v1153 = vunpack.c.h.b16 %v1077
  %v1154 = vunpack.c.l.b16 %v1078
  %v1155 = vunpack.c.h.b16 %v1078
  %v1156 = vunpack.c.l.b16 %v1079
  %v1157 = vpack.c.b16 %v1115, %v1108
  %v1158 = vpack.c.b16 %v1116, %v1109
  %v1159 = vpack.c.b16 %v1117, %v1110
  %v1160 = vpack.c.b16 %v1118, %v1111
  %v1161 = vpack.c.b16 %v1119, %v1112
  %v1162 = vpack.c.b16 %v1120, %v1113
  %v1163 = vpack.c.b16 %v1121, %v1114
  %v1164 = vpack.c.b16 %v1129, %v1122
  %v1165 = vpack.c.b16 %v1130, %v1123
  %v1166 = vpack.c.b16 %v1131, %v1124
  %v1167 = vpack.c.b16 %v1132, %v1125
  %v1168 = vpack.c.b16 %v1133, %v1126
  %v1169 = vpack.c.b16 %v1134, %v1127
  %v1170 = vpack.c.b16 %v1135, %v1128
  %v1171 = vpack.c.b16 %v1143, %v1136
  %v1172 = vpack.c.b16 %v1144, %v1137
  %v1173 = vpack.c.b16 %v1145, %v1138
  %v1174 = vpack.c.b16 %v1146, %v1139
  %v1175 = vpack.c.b16 %v1147, %v1140
  %v1176 = vpack.c.b16 %v1148, %v1141
  %v1177 = vpack.c.b16 %v1149, %v1142
  %v1178 = vpack.c.b16 %v1150, %v1150
  %v1179 = vpack.c.b16 %v1151, %v1151
  %v1180 = vpack.c.b16 %v1152, %v1152
  %v1181 = vpack.c.b16 %v1153, %v1153
  %v1182 = vpack.c.b16 %v1154, %v1154
  %v1183 = vpack.c.b16 %v1155, %v1155
  %v1184 = vpack.c.b16 %v1156, %v1156
  %v1207 = vsel %vm174, %v1178, 0
  %v1210 = vsel %vm174, %v1179, 0
  %v1213 = vsel %vm174, %v1180, 0
  %v1216 = vsel %vm174, %v1181, 0
  %v1219 = vsel %vm174, %v1182, 0
  %v1222 = vsel %vm174, %v1183, 0
  %v1225 = vsel %vm174, %v1184, 0
  %1227 = vmatprep.subr.bf16.mxu0 %v1158
  %1228 = vmatpush1.bf16.msra.mxu0 %v1157
  %1229 = vmatprep.subr.bf16.mxu0 %v1165
  %1230 = vmatpush1.bf16.msra.mxu0 %v1164
  %1231 = vmatprep.subr.bf16.mxu0 %v1172
  %1232 = vmatpush1.bf16.msra.mxu0 %v1171
  %1233 = vmatprep.subr.bf16.mxu0 %v1210
  %1234 = vmatpush1.bf16.msra.mxu0 %v1207
  %1235 = vmatprep.subr.bf16.mxu0 0
  %1236 = vmatpush1.bf16.msra.mxu0 0
  %1237 = vmatprep.subr.bf16.mxu0 0
  %1238 = vmatpush1.bf16.msra.mxu0 0
  %1239 = vmatprep.subr.bf16.mxu0 0
  %1240 = vmatpush1.bf16.msra.mxu0 0
  %1241 = vmatprep.subr.bf16.mxu0 0
  %1242 = vmatpush1.bf16.msra.mxu0 0
  %1243 = vmatprep.subr.bf16.mxu0 0
  %1244 = vmatpush1.bf16.msra.mxu0 0
  %1245 = vmatprep.subr.bf16.mxu0 0
  %1246 = vmatpush1.bf16.msra.mxu0 0
  %1247 = vmatprep.subr.bf16.mxu0 0
  %1248 = vmatpush1.bf16.msra.mxu0 0
  %1249 = vmatprep.subr.bf16.mxu0 0
  %1250 = vmatpush1.bf16.msra.mxu0 0
  %1251 = vmatprep.subr.bf16.mxu0 0
  %1252 = vmatpush1.bf16.msra.mxu0 0
  %1253 = vmatprep.subr.bf16.mxu0 0
  %1254 = vmatpush1.bf16.msra.mxu0 0
  %1255 = vmatprep.subr.bf16.mxu0 0
  %1256 = vmatpush1.bf16.msra.mxu0 0
  %1257 = vmatprep.subr.bf16.mxu0 0
  %1258 = vmatpush1.bf16.msra.mxu0 0
  %1259 = vmatprep.mubr.bf16.mxu0 0
  %1260 = vmatmul.mubr.bf16.gmra.mrb[0].mxu0 %v172
  %v1261 = vpop.f32.mrb[0].mxu0
  %v1262 = vadd.f32 0.0, %v1261
  %v1263 = vpop.f32.mrb[0].mxu0
  %v1264 = vadd.f32 0.0, %v1263
  %v1265 = vpop.f32.mrb[0].mxu0
  %v1266 = vpop.f32.mrb[0].mxu0
  %1267 = vdwg.mxu0
  %1268 = vmatprep.subr.bf16.mxu0 %v1160
  %1269 = vmatpush1.bf16.msra.mxu0 %v1159
  %1270 = vmatprep.subr.bf16.mxu0 %v1167
  %1271 = vmatpush1.bf16.msra.mxu0 %v1166
  %1272 = vmatprep.subr.bf16.mxu0 %v1174
  %1273 = vmatpush1.bf16.msra.mxu0 %v1173
  %1274 = vmatprep.subr.bf16.mxu0 %v1216
  %1275 = vmatpush1.bf16.msra.mxu0 %v1213
  %1276 = vmatprep.subr.bf16.mxu0 0
  %1277 = vmatpush1.bf16.msra.mxu0 0
  %1278 = vmatprep.subr.bf16.mxu0 0
  %1279 = vmatpush1.bf16.msra.mxu0 0
  %1280 = vmatprep.subr.bf16.mxu0 0
  %1281 = vmatpush1.bf16.msra.mxu0 0
  %1282 = vmatprep.subr.bf16.mxu0 0
  %1283 = vmatpush1.bf16.msra.mxu0 0
  %1284 = vmatprep.subr.bf16.mxu0 0
  %1285 = vmatpush1.bf16.msra.mxu0 0
  %1286 = vmatprep.subr.bf16.mxu0 0
  %1287 = vmatpush1.bf16.msra.mxu0 0
  %1288 = vmatprep.subr.bf16.mxu0 0
  %1289 = vmatpush1.bf16.msra.mxu0 0
  %1290 = vmatprep.subr.bf16.mxu0 0
  %1291 = vmatpush1.bf16.msra.mxu0 0
  %1292 = vmatprep.subr.bf16.mxu0 0
  %1293 = vmatpush1.bf16.msra.mxu0 0
  %1294 = vmatprep.subr.bf16.mxu0 0
  %1295 = vmatpush1.bf16.msra.mxu0 0
  %1296 = vmatprep.subr.bf16.mxu0 0
  %1297 = vmatpush1.bf16.msra.mxu0 0
  %1298 = vmatprep.subr.bf16.mxu0 0
  %1299 = vmatpush1.bf16.msra.mxu0 0
  %1300 = vmatprep.mubr.bf16.mxu0 0
  %1301 = vmatmul.mubr.bf16.gmra.mrb[0].mxu0 %v172
  %v1302 = vpop.f32.mrb[0].mxu0
  %v1303 = vadd.f32 0.0, %v1302
  %v1304 = vpop.f32.mrb[0].mxu0
  %v1305 = vadd.f32 0.0, %v1304
  %v1306 = vpop.f32.mrb[0].mxu0
  %v1307 = vpop.f32.mrb[0].mxu0
  %1308 = vdwg.mxu0
  %1309 = vmatprep.subr.bf16.mxu0 %v1162
  %1310 = vmatpush1.bf16.msra.mxu0 %v1161
  %1311 = vmatprep.subr.bf16.mxu0 %v1169
  %1312 = vmatpush1.bf16.msra.mxu0 %v1168
  %1313 = vmatprep.subr.bf16.mxu0 %v1176
  %1314 = vmatpush1.bf16.msra.mxu0 %v1175
  %1315 = vmatprep.subr.bf16.mxu0 %v1222
  %1316 = vmatpush1.bf16.msra.mxu0 %v1219
  %1317 = vmatprep.subr.bf16.mxu0 0
  %1318 = vmatpush1.bf16.msra.mxu0 0
  %1319 = vmatprep.subr.bf16.mxu0 0
  %1320 = vmatpush1.bf16.msra.mxu0 0
  %1321 = vmatprep.subr.bf16.mxu0 0
  %1322 = vmatpush1.bf16.msra.mxu0 0
  %1323 = vmatprep.subr.bf16.mxu0 0
  %1324 = vmatpush1.bf16.msra.mxu0 0
  %1325 = vmatprep.subr.bf16.mxu0 0
  %1326 = vmatpush1.bf16.msra.mxu0 0
  %1327 = vmatprep.subr.bf16.mxu0 0
  %1328 = vmatpush1.bf16.msra.mxu0 0
  %1329 = vmatprep.subr.bf16.mxu0 0
  %1330 = vmatpush1.bf16.msra.mxu0 0
  %1331 = vmatprep.subr.bf16.mxu0 0
  %1332 = vmatpush1.bf16.msra.mxu0 0
  %1333 = vmatprep.subr.bf16.mxu0 0
  %1334 = vmatpush1.bf16.msra.mxu0 0
  %1335 = vmatprep.subr.bf16.mxu0 0
  %1336 = vmatpush1.bf16.msra.mxu0 0
  %1337 = vmatprep.subr.bf16.mxu0 0
  %1338 = vmatpush1.bf16.msra.mxu0 0
  %1339 = vmatprep.subr.bf16.mxu0 0
  %1340 = vmatpush1.bf16.msra.mxu0 0
  %1341 = vmatprep.mubr.bf16.mxu0 0
  %1342 = vmatmul.mubr.bf16.gmra.mrb[0].mxu0 %v172
  %v1343 = vpop.f32.mrb[0].mxu0
  %v1344 = vadd.f32 0.0, %v1343
  %v1345 = vpop.f32.mrb[0].mxu0
  %v1346 = vadd.f32 0.0, %v1345
  %v1347 = vpop.f32.mrb[0].mxu0
  %v1348 = vpop.f32.mrb[0].mxu0
  %1349 = vdwg.mxu0
  %1350 = vmatprep.subr.bf16.mxu0 0
  %1351 = vmatpush1.bf16.msra.mxu0 %v1163
  %1352 = vmatprep.subr.bf16.mxu0 0
  %1353 = vmatpush1.bf16.msra.mxu0 %v1170
  %1354 = vmatprep.subr.bf16.mxu0 0
  %1355 = vmatpush1.bf16.msra.mxu0 %v1177
  %1356 = vmatprep.subr.bf16.mxu0 0
  %1357 = vmatpush1.bf16.msra.mxu0 %v1225
  %1358 = vmatprep.subr.bf16.mxu0 0
  %1359 = vmatpush1.bf16.msra.mxu0 0
  %1360 = vmatprep.subr.bf16.mxu0 0
  %1361 = vmatpush1.bf16.msra.mxu0 0
  %1362 = vmatprep.subr.bf16.mxu0 0
  %1363 = vmatpush1.bf16.msra.mxu0 0
  %1364 = vmatprep.subr.bf16.mxu0 0
  %1365 = vmatpush1.bf16.msra.mxu0 0
  %1366 = vmatprep.subr.bf16.mxu0 0
  %1367 = vmatpush1.bf16.msra.mxu0 0
  %1368 = vmatprep.subr.bf16.mxu0 0
  %1369 = vmatpush1.bf16.msra.mxu0 0
  %1370 = vmatprep.subr.bf16.mxu0 0
  %1371 = vmatpush1.bf16.msra.mxu0 0
  %1372 = vmatprep.subr.bf16.mxu0 0
  %1373 = vmatpush1.bf16.msra.mxu0 0
  %1374 = vmatprep.subr.bf16.mxu0 0
  %1375 = vmatpush1.bf16.msra.mxu0 0
  %1376 = vmatprep.subr.bf16.mxu0 0
  %1377 = vmatpush1.bf16.msra.mxu0 0
  %1378 = vmatprep.subr.bf16.mxu0 0
  %1379 = vmatpush1.bf16.msra.mxu0 0
  %1380 = vmatprep.subr.bf16.mxu0 0
  %1381 = vmatpush1.bf16.msra.mxu0 0
  %1382 = vmatprep.mubr.bf16.mxu0 0
  %1383 = vmatmul.mubr.bf16.gmra.mrb[0].mxu0 %v172
  %v1384 = vpop.f32.mrb[0].mxu0
  %v1385 = vadd.f32 0.0, %v1384
  %v1386 = vpop.f32.mrb[0].mxu0
  %v1387 = vpop.f32.mrb[0].mxu0
  %v1388 = vpop.f32.mrb[0].mxu0
  %1389 = vdwg.mxu0
  %v1390 = vmax.f32 %v1044, %v1262
  %v1391 = vmax.f32 %v1045, %v1264
  %v1392 = vmax.f32 %v1046, %v1303
  %v1393 = vmax.f32 %v1047, %v1305
  %v1394 = vmax.f32 %v1048, %v1344
  %v1395 = vmax.f32 %v1049, %v1346
  %v1396 = vmax.f32 %v1050, %v1385
  %v1397 = vld [vmem:[%s2] sm:$0x3f]
  %1399 = vset.pattern.permute.xlu0 0
  %1400 = vperm.xlu0 %1399, %v1397
  %v1401 = vpop.permute.xlu0 %1400
  %v1403 = vadd.f32 %v1390, %v1401
  %v1404 = vadd.f32 %v1391, %v1401
  %v1405 = vadd.f32 %v1392, %v1401
  %v1406 = vadd.f32 %v1393, %v1401
  %v1407 = vadd.f32 %v1394, %v1401
  %v1408 = vadd.f32 %v1395, %v1401
  %v1409 = vadd.f32 %v1396, %v1401
  %v1410 = vmax.f32 %v1403, 0.0
  %v1411 = vmax.f32 %v1404, 0.0
  %v1412 = vmax.f32 %v1405, 0.0
  %v1413 = vmax.f32 %v1406, 0.0
  %v1414 = vmax.f32 %v1407, 0.0
  %v1415 = vmax.f32 %v1408, 0.0
  %v1416 = vmax.f32 %v1409, 0.0
  %v1417 = vpack.c.bf16 %v1410, %v1410
  %v1418 = vpack.c.bf16 %v1411, %v1411
  %v1419 = vpack.c.bf16 %v1412, %v1412
  %v1420 = vpack.c.bf16 %v1413, %v1413
  %v1421 = vpack.c.bf16 %v1414, %v1414
  %v1422 = vpack.c.bf16 %v1415, %v1415
  %v1423 = vpack.c.bf16 %v1416, %v1416
  %v1431 = vunpack.c.l.b16 %v1417
  %v1432 = vunpack.c.l.b16 %v1418
  %v1433 = vunpack.c.l.b16 %v1419
  %v1434 = vunpack.c.l.b16 %v1420
  %v1435 = vunpack.c.l.b16 %v1421
  %v1436 = vunpack.c.l.b16 %v1422
  %v1437 = vunpack.c.l.b16 %v1423
  %v1438 = vpack.c.b16 %v1432, %v1431
  %v1439 = vpack.c.b16 %v1434, %v1433
  %v1440 = vpack.c.b16 %v1436, %v1435
  %v1441 = vpack.c.b16 %v1437, %v1437
  %1446 = vst [vmem:[%s3] sm:$0x77] %v1438
  %1447 = vst [vmem:[%s3 + $0x8] sm:$0x77] %v1439
  %1448 = vst [vmem:[%s3 + $0x10] sm:$0x77] %v1440
  %1449 = vst [vmem:[%s3 + $0x18] sm:$0x7] %v1441
  // Predicated region
  $region14: #{coon_forward.5} parent=0 // pred_check
    _
  $region15: #{coon_forward.5} parent=0 // pred_check_branch
    %1451 = sbr.rel (0) target = $region17
  $region16: #{coon_forward.5} parent=0 // pred_region
    _
  $region17: #{coon_forward.5} parent=0 // pred_fallthru
    _
  // Predicated region
  $region18: #{coon_forward.5} parent=0 // pred_check
    _
  $region19: #{coon_forward.5} parent=0 // pred_check_branch
    %1453 = sbr.rel (0) target = $region21
  $region20: #{coon_forward.5} parent=0 // pred_region
    _
  $region21: #{coon_forward.5} parent=0 // pred_fallthru
    _

// kernel: coon_forward.6
$region0: #{coon_forward.6}
  #allocation0 [shape = 'u32[]', space=smem, size = 0x4, offset = 0x4, fixed_abs, tag = 'smem constant byte address 0x4 - core index']
  #allocation1 [shape = 'u32[144,128]{1,0:T(1,128)}', space=vmem, size = 0x12000, scoped, tag = 'internal scratch']
  %s0 = inlined_call_operand.vmem [shape: bf16[4,54,256], index: 0, kind: input, shape index: {}]
  %s1 = inlined_call_operand.vmem [shape: bf16[12,54], index: 1, kind: input, shape index: {}]
  %s2 = inlined_call_operand.vmem [shape: f32[12,1], index: 2, kind: input, shape index: {}]
  %s3 = inlined_call_operand.vmem [shape: bf16[12,256], index: 3, kind: output, shape index: {}]
  %s4 = sld [smem:[#allocation0]]
  $region22: #{coon_forward.6} parent=0
    _
  %s6 = ssub.s32 1, %s4
  %s7 = scalar_select 0, %s6, %s4
  // Predicated region
  $region2: #{coon_forward.6} parent=0 // pred_check
    _
  $region3: #{coon_forward.6} parent=0 // pred_check_branch
    %9 = sbr.rel (0) target = $region5
  $region4: #{coon_forward.6} parent=0 // pred_region
    _
  $region5: #{coon_forward.6} parent=0 // pred_fallthru
    _
  // Predicated region
  $region6: #{coon_forward.6} parent=0 // pred_check
    _
  $region7: #{coon_forward.6} parent=0 // pred_check_branch
    %11 = sbr.rel (0) target = $region9
  $region8: #{coon_forward.6} parent=0 // pred_region
    _
  $region9: #{coon_forward.6} parent=0 // pred_fallthru
    _
  // Predicated region
  $region10: #{coon_forward.6} parent=0 // pred_check
    _
  $region11: #{coon_forward.6} parent=0 // pred_check_branch
    %13 = sbr.rel (0) target = $region13
  $region12: #{coon_forward.6} parent=0 // pred_region
    _
  $region13: #{coon_forward.6} parent=0 // pred_fallthru
    _
  %v15 = vld [vmem:[%s1] sm:$0xf]
  %v16 = vld [vmem:[%s1 + $0x4] sm:$0x3]
  %v17 = vld [vmem:[%s0] sm:$0xff]
  %v18 = vld [vmem:[%s0 + $0x8] sm:$0xff]
  %v19 = vld [vmem:[%s0 + $0x10] sm:$0xff]
  %v20 = vld [vmem:[%s0 + $0x18] sm:$0xff]
  %v21 = vld [vmem:[%s0 + $0x20] sm:$0xff]
  %v22 = vld [vmem:[%s0 + $0x28] sm:$0xff]
  %v23 = vld [vmem:[%s0 + $0x30] sm:$0x77]
  %v26 = vunpack.c.l.b16 %v15
  %v27 = vunpack.c.l.b16 %v16
  %v28 = vpack.c.b16 %v27, %v26
  %v36 = vunpack.c.l.b16 %v17
  %v37 = vunpack.c.h.b16 %v17
  %v38 = vunpack.c.l.b16 %v18
  %v39 = vunpack.c.h.b16 %v18
  %v40 = vunpack.c.l.b16 %v19
  %v41 = vunpack.c.h.b16 %v19
  %v42 = vunpack.c.l.b16 %v20
  %v43 = vunpack.c.h.b16 %v20
  %v44 = vunpack.c.l.b16 %v21
  %v45 = vunpack.c.h.b16 %v21
  %v46 = vunpack.c.l.b16 %v22
  %v47 = vunpack.c.h.b16 %v22
  %v48 = vunpack.c.l.b16 %v23
  %v49 = vunpack.c.h.b16 %v23
  %v50 = vpack.c.b16 %v38, %v36
  %v51 = vpack.c.b16 %v39, %v37
  %v52 = vpack.c.b16 %v42, %v40
  %v53 = vpack.c.b16 %v43, %v41
  %v54 = vpack.c.b16 %v46, %v44
  %v55 = vpack.c.b16 %v47, %v45
  %v56 = vpack.c.b16 %v48, %v48
  %v57 = vpack.c.b16 %v49, %v49
  %vm64 = vcmask 441344
  %v66 = vsel %vm64, %v28, 0
  %vm68 = vcmask 1042432
  %v70 = vsel %vm68, %v56, 0
  %v73 = vsel %vm68, %v57, 0
  %75 = vmatprep.subr.bf16.mxu0 %v51
  %76 = vmatpush1.bf16.msra.mxu0 %v50
  %77 = vmatprep.subr.bf16.mxu0 %v53
  %78 = vmatpush1.bf16.msra.mxu0 %v52
  %79 = vmatprep.subr.bf16.mxu0 %v55
  %80 = vmatpush1.bf16.msra.mxu0 %v54
  %81 = vmatprep.subr.bf16.mxu0 %v73
  %82 = vmatpush1.bf16.msra.mxu0 %v70
  %83 = vmatprep.subr.bf16.mxu0 0
  %84 = vmatpush1.bf16.msra.mxu0 0
  %85 = vmatprep.subr.bf16.mxu0 0
  %86 = vmatpush1.bf16.msra.mxu0 0
  %87 = vmatprep.subr.bf16.mxu0 0
  %88 = vmatpush1.bf16.msra.mxu0 0
  %89 = vmatprep.subr.bf16.mxu0 0
  %90 = vmatpush1.bf16.msra.mxu0 0
  %91 = vmatprep.subr.bf16.mxu0 0
  %92 = vmatpush1.bf16.msra.mxu0 0
  %93 = vmatprep.subr.bf16.mxu0 0
  %94 = vmatpush1.bf16.msra.mxu0 0
  %95 = vmatprep.subr.bf16.mxu0 0
  %96 = vmatpush1.bf16.msra.mxu0 0
  %97 = vmatprep.subr.bf16.mxu0 0
  %98 = vmatpush1.bf16.msra.mxu0 0
  %99 = vmatprep.subr.bf16.mxu0 0
  %100 = vmatpush1.bf16.msra.mxu0 0
  %101 = vmatprep.subr.bf16.mxu0 0
  %102 = vmatpush1.bf16.msra.mxu0 0
  %103 = vmatprep.subr.bf16.mxu0 0
  %104 = vmatpush1.bf16.msra.mxu0 0
  %105 = vmatprep.subr.bf16.mxu0 0
  %106 = vmatpush1.bf16.msra.mxu0 0
  %107 = vmatprep.mubr.bf16.mxu0 0
  %108 = vmatmul.mubr.bf16.gmra.mrb[0].mxu0 %v66
  %v109 = vpop.f32.mrb[0].mxu0
  %v110 = vadd.f32 0.0, %v109
  %v111 = vpop.f32.mrb[0].mxu0
  %v112 = vadd.f32 0.0, %v111
  %v113 = vpop.f32.mrb[0].mxu0
  %v114 = vadd.f32 0.0, %v113
  %v115 = vpop.f32.mrb[0].mxu0
  %v116 = vadd.f32 0.0, %v115
  %117 = vdwg.mxu0
  %s118 = scalar_lea.vmem %s0, 56
  %v119 = vld [vmem:[%s118] sm:$0xff]
  %v120 = vld [vmem:[%s118 + $0x8] sm:$0xff]
  %v121 = vld [vmem:[%s118 + $0x10] sm:$0xff]
  %v122 = vld [vmem:[%s118 + $0x18] sm:$0xff]
  %v123 = vld [vmem:[%s118 + $0x20] sm:$0xff]
  %v124 = vld [vmem:[%s118 + $0x28] sm:$0xff]
  %v125 = vld [vmem:[%s118 + $0x30] sm:$0x77]
  %v133 = vunpack.c.l.b16 %v119
  %v134 = vunpack.c.h.b16 %v119
  %v135 = vunpack.c.l.b16 %v120
  %v136 = vunpack.c.h.b16 %v120
  %v137 = vunpack.c.l.b16 %v121
  %v138 = vunpack.c.h.b16 %v121
  %v139 = vunpack.c.l.b16 %v122
  %v140 = vunpack.c.h.b16 %v122
  %v141 = vunpack.c.l.b16 %v123
  %v142 = vunpack.c.h.b16 %v123
  %v143 = vunpack.c.l.b16 %v124
  %v144 = vunpack.c.h.b16 %v124
  %v145 = vunpack.c.l.b16 %v125
  %v146 = vunpack.c.h.b16 %v125
  %v147 = vpack.c.b16 %v135, %v133
  %v148 = vpack.c.b16 %v136, %v134
  %v149 = vpack.c.b16 %v139, %v137
  %v150 = vpack.c.b16 %v140, %v138
  %v151 = vpack.c.b16 %v143, %v141
  %v152 = vpack.c.b16 %v144, %v142
  %v153 = vpack.c.b16 %v145, %v145
  %v154 = vpack.c.b16 %v146, %v146
  %v162 = vsel %vm68, %v153, 0
  %v165 = vsel %vm68, %v154, 0
  %167 = vmatprep.subr.bf16.mxu0 %v148
  %168 = vmatpush1.bf16.msra.mxu0 %v147
  %169 = vmatprep.subr.bf16.mxu0 %v150
  %170 = vmatpush1.bf16.msra.mxu0 %v149
  %171 = vmatprep.subr.bf16.mxu0 %v152
  %172 = vmatpush1.bf16.msra.mxu0 %v151
  %173 = vmatprep.subr.bf16.mxu0 %v165
  %174 = vmatpush1.bf16.msra.mxu0 %v162
  %175 = vmatprep.subr.bf16.mxu0 0
  %176 = vmatpush1.bf16.msra.mxu0 0
  %177 = vmatprep.subr.bf16.mxu0 0
  %178 = vmatpush1.bf16.msra.mxu0 0
  %179 = vmatprep.subr.bf16.mxu0 0
  %180 = vmatpush1.bf16.msra.mxu0 0
  %181 = vmatprep.subr.bf16.mxu0 0
  %182 = vmatpush1.bf16.msra.mxu0 0
  %183 = vmatprep.subr.bf16.mxu0 0
  %184 = vmatpush1.bf16.msra.mxu0 0
  %185 = vmatprep.subr.bf16.mxu0 0
  %186 = vmatpush1.bf16.msra.mxu0 0
  %187 = vmatprep.subr.bf16.mxu0 0
  %188 = vmatpush1.bf16.msra.mxu0 0
  %189 = vmatprep.subr.bf16.mxu0 0
  %190 = vmatpush1.bf16.msra.mxu0 0
  %191 = vmatprep.subr.bf16.mxu0 0
  %192 = vmatpush1.bf16.msra.mxu0 0
  %193 = vmatprep.subr.bf16.mxu0 0
  %194 = vmatpush1.bf16.msra.mxu0 0
  %195 = vmatprep.subr.bf16.mxu0 0
  %196 = vmatpush1.bf16.msra.mxu0 0
  %197 = vmatprep.subr.bf16.mxu0 0
  %198 = vmatpush1.bf16.msra.mxu0 0
  %199 = vmatprep.mubr.bf16.mxu0 0
  %200 = vmatmul.mubr.bf16.gmra.mrb[0].mxu0 %v66
  %v201 = vpop.f32.mrb[0].mxu0
  %v202 = vadd.f32 0.0, %v201
  %v203 = vpop.f32.mrb[0].mxu0
  %v204 = vadd.f32 0.0, %v203
  %v205 = vpop.f32.mrb[0].mxu0
  %v206 = vadd.f32 0.0, %v205
  %v207 = vpop.f32.mrb[0].mxu0
  %v208 = vadd.f32 0.0, %v207
  %209 = vdwg.mxu0
  %v210 = vmax.f32 %v110, %v202
  %v211 = vmax.f32 %v112, %v204
  %v212 = vmax.f32 %v114, %v206
  %v213 = vmax.f32 %v116, %v208
  %s214 = scalar_lea.vmem %s0, 112
  %v215 = vld [vmem:[%s214] sm:$0xff]
  %v216 = vld [vmem:[%s214 + $0x8] sm:$0xff]
  %v217 = vld [vmem:[%s214 + $0x10] sm:$0xff]
  %v218 = vld [vmem:[%s214 + $0x18] sm:$0xff]
  %v219 = vld [vmem:[%s214 + $0x20] sm:$0xff]
  %v220 = vld [vmem:[%s214 + $0x28] sm:$0xff]
  %v221 = vld [vmem:[%s214 + $0x30] sm:$0x77]
  %v229 = vunpack.c.l.b16 %v215
  %v230 = vunpack.c.h.b16 %v215
  %v231 = vunpack.c.l.b16 %v216
  %v232 = vunpack.c.h.b16 %v216
  %v233 = vunpack.c.l.b16 %v217
  %v234 = vunpack.c.h.b16 %v217
  %v235 = vunpack.c.l.b16 %v218
  %v236 = vunpack.c.h.b16 %v218
  %v237 = vunpack.c.l.b16 %v219
  %v238 = vunpack.c.h.b16 %v219
  %v239 = vunpack.c.l.b16 %v220
  %v240 = vunpack.c.h.b16 %v220
  %v241 = vunpack.c.l.b16 %v221
  %v242 = vunpack.c.h.b16 %v221
  %v243 = vpack.c.b16 %v231, %v229
  %v244 = vpack.c.b16 %v232, %v230
  %v245 = vpack.c.b16 %v235, %v233
  %v246 = vpack.c.b16 %v236, %v234
  %v247 = vpack.c.b16 %v239, %v237
  %v248 = vpack.c.b16 %v240, %v238
  %v249 = vpack.c.b16 %v241, %v241
  %v250 = vpack.c.b16 %v242, %v242
  %v258 = vsel %vm68, %v249, 0
  %v261 = vsel %vm68, %v250, 0
  %263 = vmatprep.subr.bf16.mxu0 %v244
  %264 = vmatpush1.bf16.msra.mxu0 %v243
  %265 = vmatprep.subr.bf16.mxu0 %v246
  %266 = vmatpush1.bf16.msra.mxu0 %v245
  %267 = vmatprep.subr.bf16.mxu0 %v248
  %268 = vmatpush1.bf16.msra.mxu0 %v247
  %269 = vmatprep.subr.bf16.mxu0 %v261
  %270 = vmatpush1.bf16.msra.mxu0 %v258
  %271 = vmatprep.subr.bf16.mxu0 0
  %272 = vmatpush1.bf16.msra.mxu0 0
  %273 = vmatprep.subr.bf16.mxu0 0
  %274 = vmatpush1.bf16.msra.mxu0 0
  %275 = vmatprep.subr.bf16.mxu0 0
  %276 = vmatpush1.bf16.msra.mxu0 0
  %277 = vmatprep.subr.bf16.mxu0 0
  %278 = vmatpush1.bf16.msra.mxu0 0
  %279 = vmatprep.subr.bf16.mxu0 0
  %280 = vmatpush1.bf16.msra.mxu0 0
  %281 = vmatprep.subr.bf16.mxu0 0
  %282 = vmatpush1.bf16.msra.mxu0 0
  %283 = vmatprep.subr.bf16.mxu0 0
  %284 = vmatpush1.bf16.msra.mxu0 0
  %285 = vmatprep.subr.bf16.mxu0 0
  %286 = vmatpush1.bf16.msra.mxu0 0
  %287 = vmatprep.subr.bf16.mxu0 0
  %288 = vmatpush1.bf16.msra.mxu0 0
  %289 = vmatprep.subr.bf16.mxu0 0
  %290 = vmatpush1.bf16.msra.mxu0 0
  %291 = vmatprep.subr.bf16.mxu0 0
  %292 = vmatpush1.bf16.msra.mxu0 0
  %293 = vmatprep.subr.bf16.mxu0 0
  %294 = vmatpush1.bf16.msra.mxu0 0
  %295 = vmatprep.mubr.bf16.mxu0 0
  %296 = vmatmul.mubr.bf16.gmra.mrb[0].mxu0 %v66
  %v297 = vpop.f32.mrb[0].mxu0
  %v298 = vadd.f32 0.0, %v297
  %v299 = vpop.f32.mrb[0].mxu0
  %v300 = vadd.f32 0.0, %v299
  %v301 = vpop.f32.mrb[0].mxu0
  %v302 = vadd.f32 0.0, %v301
  %v303 = vpop.f32.mrb[0].mxu0
  %v304 = vadd.f32 0.0, %v303
  %305 = vdwg.mxu0
  %v306 = vmax.f32 %v210, %v298
  %v307 = vmax.f32 %v211, %v300
  %v308 = vmax.f32 %v212, %v302
  %v309 = vmax.f32 %v213, %v304
  %s310 = scalar_lea.vmem %s0, 168
  %v311 = vld [vmem:[%s310] sm:$0xff]
  %v312 = vld [vmem:[%s310 + $0x8] sm:$0xff]
  %v313 = vld [vmem:[%s310 + $0x10] sm:$0xff]
  %v314 = vld [vmem:[%s310 + $0x18] sm:$0xff]
  %v315 = vld [vmem:[%s310 + $0x20] sm:$0xff]
  %v316 = vld [vmem:[%s310 + $0x28] sm:$0xff]
  %v317 = vld [vmem:[%s310 + $0x30] sm:$0x77]
  %v325 = vunpack.c.l.b16 %v311
  %v326 = vunpack.c.h.b16 %v311
  %v327 = vunpack.c.l.b16 %v312
  %v328 = vunpack.c.h.b16 %v312
  %v329 = vunpack.c.l.b16 %v313
  %v330 = vunpack.c.h.b16 %v313
  %v331 = vunpack.c.l.b16 %v314
  %v332 = vunpack.c.h.b16 %v314
  %v333 = vunpack.c.l.b16 %v315
  %v334 = vunpack.c.h.b16 %v315
  %v335 = vunpack.c.l.b16 %v316
  %v336 = vunpack.c.h.b16 %v316
  %v337 = vunpack.c.l.b16 %v317
  %v338 = vunpack.c.h.b16 %v317
  %v339 = vpack.c.b16 %v327, %v325
  %v340 = vpack.c.b16 %v328, %v326
  %v341 = vpack.c.b16 %v331, %v329
  %v342 = vpack.c.b16 %v332, %v330
  %v343 = vpack.c.b16 %v335, %v333
  %v344 = vpack.c.b16 %v336, %v334
  %v345 = vpack.c.b16 %v337, %v337
  %v346 = vpack.c.b16 %v338, %v338
  %v354 = vsel %vm68, %v345, 0
  %v357 = vsel %vm68, %v346, 0
  %359 = vmatprep.subr.bf16.mxu0 %v340
  %360 = vmatpush1.bf16.msra.mxu0 %v339
  %361 = vmatprep.subr.bf16.mxu0 %v342
  %362 = vmatpush1.bf16.msra.mxu0 %v341
  %363 = vmatprep.subr.bf16.mxu0 %v344
  %364 = vmatpush1.bf16.msra.mxu0 %v343
  %365 = vmatprep.subr.bf16.mxu0 %v357
  %366 = vmatpush1.bf16.msra.mxu0 %v354
  %367 = vmatprep.subr.bf16.mxu0 0
  %368 = vmatpush1.bf16.msra.mxu0 0
  %369 = vmatprep.subr.bf16.mxu0 0
  %370 = vmatpush1.bf16.msra.mxu0 0
  %371 = vmatprep.subr.bf16.mxu0 0
  %372 = vmatpush1.bf16.msra.mxu0 0
  %373 = vmatprep.subr.bf16.mxu0 0
  %374 = vmatpush1.bf16.msra.mxu0 0
  %375 = vmatprep.subr.bf16.mxu0 0
  %376 = vmatpush1.bf16.msra.mxu0 0
  %377 = vmatprep.subr.bf16.mxu0 0
  %378 = vmatpush1.bf16.msra.mxu0 0
  %379 = vmatprep.subr.bf16.mxu0 0
  %380 = vmatpush1.bf16.msra.mxu0 0
  %381 = vmatprep.subr.bf16.mxu0 0
  %382 = vmatpush1.bf16.msra.mxu0 0
  %383 = vmatprep.subr.bf16.mxu0 0
  %384 = vmatpush1.bf16.msra.mxu0 0
  %385 = vmatprep.subr.bf16.mxu0 0
  %386 = vmatpush1.bf16.msra.mxu0 0
  %387 = vmatprep.subr.bf16.mxu0 0
  %388 = vmatpush1.bf16.msra.mxu0 0
  %389 = vmatprep.subr.bf16.mxu0 0
  %390 = vmatpush1.bf16.msra.mxu0 0
  %391 = vmatprep.mubr.bf16.mxu0 0
  %392 = vmatmul.mubr.bf16.gmra.mrb[0].mxu0 %v66
  %v393 = vpop.f32.mrb[0].mxu0
  %v394 = vadd.f32 0.0, %v393
  %v395 = vpop.f32.mrb[0].mxu0
  %v396 = vadd.f32 0.0, %v395
  %v397 = vpop.f32.mrb[0].mxu0
  %v398 = vadd.f32 0.0, %v397
  %v399 = vpop.f32.mrb[0].mxu0
  %v400 = vadd.f32 0.0, %v399
  %401 = vdwg.mxu0
  %v402 = vmax.f32 %v306, %v394
  %v403 = vmax.f32 %v307, %v396
  %v404 = vmax.f32 %v308, %v398
  %v405 = vmax.f32 %v309, %v400
  %v406 = vld [vmem:[%s2] sm:$0xff]
  %v407 = vld [vmem:[%s2 + $0x8] sm:$0xf]
  %409 = vset.pattern.permute.xlu0 0
  %410 = vperm.xlu0 %409, %v406
  %v411 = vpop.permute.xlu0 %410
  %414 = vset.pattern.permute.xlu0 0
  %415 = vperm.xlu0 %414, %v407
  %v416 = vpop.permute.xlu0 %415
  %v418 = vadd.f32 %v402, %v411
  %v419 = vadd.f32 %v403, %v411
  %v420 = vadd.f32 %v404, %v416
  %v421 = vadd.f32 %v405, %v416
  %v422 = vmax.f32 %v418, 0.0
  %v423 = vmax.f32 %v419, 0.0
  %v424 = vmax.f32 %v420, 0.0
  %v425 = vmax.f32 %v421, 0.0
  %v426 = vpack.c.bf16 %v424, %v422
  %v427 = vpack.c.bf16 %v425, %v423
  %v430 = vunpack.c.l.b16 %v426
  %v431 = vunpack.c.l.b16 %v427
  %v432 = vunpack.c.h.b16 %v426
  %v433 = vunpack.c.h.b16 %v427
  %v434 = vpack.c.b16 %v431, %v430
  %v435 = vpack.c.b16 %v433, %v432
  %438 = vst [vmem:[%s3] sm:$0xff] %v434
  %439 = vst [vmem:[%s3 + $0x8] sm:$0x33] %v435
  // Predicated region
  $region14: #{coon_forward.6} parent=0 // pred_check
    _
  $region15: #{coon_forward.6} parent=0 // pred_check_branch
    %441 = sbr.rel (0) target = $region17
  $region16: #{coon_forward.6} parent=0 // pred_region
    _
  $region17: #{coon_forward.6} parent=0 // pred_fallthru
    _
  // Predicated region
  $region18: #{coon_forward.6} parent=0 // pred_check
    _
  $region19: #{coon_forward.6} parent=0 // pred_check_branch
    %443 = sbr.rel (0) target = $region21
  $region20: #{coon_forward.6} parent=0 // pred_region
    _
  $region21: #{coon_forward.6} parent=0 // pred_fallthru
    _

// kernel: coon_forward.7
$region0: #{coon_forward.7}
  #allocation0 [shape = 'u32[]', space=smem, size = 0x4, offset = 0x4, fixed_abs, tag = 'smem constant byte address 0x4 - core index']
  #allocation1 [shape = 'u32[144,128]{1,0:T(1,128)}', space=vmem, size = 0x12000, scoped, tag = 'internal scratch']
  %s0 = inlined_call_operand.vmem [shape: bf16[4,108,128], index: 0, kind: input, shape index: {}]
  %s1 = inlined_call_operand.vmem [shape: bf16[4,108,128], index: 1, kind: input, shape index: {}]
  %s2 = inlined_call_operand.vmem [shape: bf16[6,108], index: 2, kind: input, shape index: {}]
  %s3 = inlined_call_operand.vmem [shape: f32[6,1], index: 3, kind: input, shape index: {}]
  %s4 = inlined_call_operand.vmem [shape: f32[6,128], index: 4, kind: output, shape index: {}]
  %s5 = sld [smem:[#allocation0]]
  $region26: #{coon_forward.7} parent=0
    _
  %s7 = ssub.s32 1, %s5
  %s8 = scalar_select 0, %s7, %s5
  // Predicated region
  $region2: #{coon_forward.7} parent=0 // pred_check
    _
  $region3: #{coon_forward.7} parent=0 // pred_check_branch
    %10 = sbr.rel (0) target = $region5
  $region4: #{coon_forward.7} parent=0 // pred_region
    _
  $region5: #{coon_forward.7} parent=0 // pred_fallthru
    _
  // Predicated region
  $region6: #{coon_forward.7} parent=0 // pred_check
    _
  $region7: #{coon_forward.7} parent=0 // pred_check_branch
    %12 = sbr.rel (0) target = $region9
  $region8: #{coon_forward.7} parent=0 // pred_region
    _
  $region9: #{coon_forward.7} parent=0 // pred_fallthru
    _
  // Predicated region
  $region10: #{coon_forward.7} parent=0 // pred_check
    _
  $region11: #{coon_forward.7} parent=0 // pred_check_branch
    %14 = sbr.rel (0) target = $region13
  $region12: #{coon_forward.7} parent=0 // pred_region
    _
  $region13: #{coon_forward.7} parent=0 // pred_fallthru
    _
  // Predicated region
  $region14: #{coon_forward.7} parent=0 // pred_check
    _
  $region15: #{coon_forward.7} parent=0 // pred_check_branch
    %16 = sbr.rel (0) target = $region17
  $region16: #{coon_forward.7} parent=0 // pred_region
    _
  $region17: #{coon_forward.7} parent=0 // pred_fallthru
    _
  %v18 = vld [vmem:[%s2] sm:$0x7]
  %v19 = vld [vmem:[%s3] sm:$0x3f]
  %v20 = vld [vmem:[%s0] sm:$0xf]
  %v21 = vld [vmem:[%s0 + $0x4] sm:$0xf]
  %v22 = vld [vmem:[%s0 + $0x8] sm:$0xf]
  %v23 = vld [vmem:[%s0 + $0xc] sm:$0xf]
  %v24 = vld [vmem:[%s0 + $0x10] sm:$0xf]
  %v25 = vld [vmem:[%s0 + $0x14] sm:$0xf]
  %v26 = vld [vmem:[%s0 + $0x18] sm:$0xf]
  %v27 = vld [vmem:[%s0 + $0x1c] sm:$0xf]
  %v28 = vld [vmem:[%s0 + $0x20] sm:$0xf]
  %v29 = vld [vmem:[%s0 + $0x24] sm:$0xf]
  %v30 = vld [vmem:[%s0 + $0x28] sm:$0xf]
  %v31 = vld [vmem:[%s0 + $0x2c] sm:$0xf]
  %v32 = vld [vmem:[%s0 + $0x30] sm:$0xf]
  %v33 = vld [vmem:[%s0 + $0x34] sm:$0x3]
  %v48 = vunpack.c.l.b16 %v20
  %v49 = vunpack.c.l.b16 %v21
  %v50 = vunpack.c.l.b16 %v22
  %v51 = vunpack.c.l.b16 %v23
  %v52 = vunpack.c.l.b16 %v24
  %v53 = vunpack.c.l.b16 %v25
  %v54 = vunpack.c.l.b16 %v26
  %v55 = vunpack.c.l.b16 %v27
  %v56 = vunpack.c.l.b16 %v28
  %v57 = vunpack.c.l.b16 %v29
  %v58 = vunpack.c.l.b16 %v30
  %v59 = vunpack.c.l.b16 %v31
  %v60 = vunpack.c.l.b16 %v32
  %v61 = vunpack.c.l.b16 %v33
  %v62 = vpack.c.b16 %v49, %v48
  %v63 = vpack.c.b16 %v51, %v50
  %v64 = vpack.c.b16 %v53, %v52
  %v65 = vpack.c.b16 %v55, %v54
  %v66 = vpack.c.b16 %v57, %v56
  %v67 = vpack.c.b16 %v59, %v58
  %v68 = vpack.c.b16 %v61, %v60
  %vm75 = vcmask 883712
  %v77 = vsel %vm75, %v18, 0
  %vm79 = vcmask 1045504
  %v81 = vsel %vm79, %v68, 0
  %83 = vmatprep.subr.bf16.mxu0 0
  %84 = vmatpush1.bf16.msra.mxu0 %v62
  %85 = vmatprep.subr.bf16.mxu0 0
  %86 = vmatpush1.bf16.msra.mxu0 %v63
  %87 = vmatprep.subr.bf16.mxu0 0
  %88 = vmatpush1.bf16.msra.mxu0 %v64
  %89 = vmatprep.subr.bf16.mxu0 0
  %90 = vmatpush1.bf16.msra.mxu0 %v65
  %91 = vmatprep.subr.bf16.mxu0 0
  %92 = vmatpush1.bf16.msra.mxu0 %v66
  %93 = vmatprep.subr.bf16.mxu0 0
  %94 = vmatpush1.bf16.msra.mxu0 %v67
  %95 = vmatprep.subr.bf16.mxu0 0
  %96 = vmatpush1.bf16.msra.mxu0 %v81
  %97 = vmatprep.subr.bf16.mxu0 0
  %98 = vmatpush1.bf16.msra.mxu0 0
  %99 = vmatprep.subr.bf16.mxu0 0
  %100 = vmatpush1.bf16.msra.mxu0 0
  %101 = vmatprep.subr.bf16.mxu0 0
  %102 = vmatpush1.bf16.msra.mxu0 0
  %103 = vmatprep.subr.bf16.mxu0 0
  %104 = vmatpush1.bf16.msra.mxu0 0
  %105 = vmatprep.subr.bf16.mxu0 0
  %106 = vmatpush1.bf16.msra.mxu0 0
  %107 = vmatprep.subr.bf16.mxu0 0
  %108 = vmatpush1.bf16.msra.mxu0 0
  %109 = vmatprep.subr.bf16.mxu0 0
  %110 = vmatpush1.bf16.msra.mxu0 0
  %111 = vmatprep.subr.bf16.mxu0 0
  %112 = vmatpush1.bf16.msra.mxu0 0
  %113 = vmatprep.subr.bf16.mxu0 0
  %114 = vmatpush1.bf16.msra.mxu0 0
  %115 = vmatprep.mubr.bf16.mxu0 0
  %116 = vmatmul.mubr.bf16.gmra.mrb[0].mxu0 %v77
  %v117 = vpop.f32.mrb[0].mxu0
  %v118 = vadd.f32 0.0, %v117
  %v119 = vpop.f32.mrb[0].mxu0
  %v120 = vpop.f32.mrb[0].mxu0
  %v121 = vpop.f32.mrb[0].mxu0
  %122 = vdwg.mxu0
  %s123 = scalar_lea.vmem %s0, 56
  %v124 = vld [vmem:[%s123] sm:$0xf]
  %v125 = vld [vmem:[%s123 + $0x4] sm:$0xf]
  %v126 = vld [vmem:[%s123 + $0x8] sm:$0xf]
  %v127 = vld [vmem:[%s123 + $0xc] sm:$0xf]
  %v128 = vld [vmem:[%s123 + $0x10] sm:$0xf]
  %v129 = vld [vmem:[%s123 + $0x14] sm:$0xf]
  %v130 = vld [vmem:[%s123 + $0x18] sm:$0xf]
  %v131 = vld [vmem:[%s123 + $0x1c] sm:$0xf]
  %v132 = vld [vmem:[%s123 + $0x20] sm:$0xf]
  %v133 = vld [vmem:[%s123 + $0x24] sm:$0xf]
  %v134 = vld [vmem:[%s123 + $0x28] sm:$0xf]
  %v135 = vld [vmem:[%s123 + $0x2c] sm:$0xf]
  %v136 = vld [vmem:[%s123 + $0x30] sm:$0xf]
  %v137 = vld [vmem:[%s123 + $0x34] sm:$0x3]
  %v152 = vunpack.c.l.b16 %v124
  %v153 = vunpack.c.l.b16 %v125
  %v154 = vunpack.c.l.b16 %v126
  %v155 = vunpack.c.l.b16 %v127
  %v156 = vunpack.c.l.b16 %v128
  %v157 = vunpack.c.l.b16 %v129
  %v158 = vunpack.c.l.b16 %v130
  %v159 = vunpack.c.l.b16 %v131
  %v160 = vunpack.c.l.b16 %v132
  %v161 = vunpack.c.l.b16 %v133
  %v162 = vunpack.c.l.b16 %v134
  %v163 = vunpack.c.l.b16 %v135
  %v164 = vunpack.c.l.b16 %v136
  %v165 = vunpack.c.l.b16 %v137
  %v166 = vpack.c.b16 %v153, %v152
  %v167 = vpack.c.b16 %v155, %v154
  %v168 = vpack.c.b16 %v157, %v156
  %v169 = vpack.c.b16 %v159, %v158
  %v170 = vpack.c.b16 %v161, %v160
  %v171 = vpack.c.b16 %v163, %v162
  %v172 = vpack.c.b16 %v165, %v164
  %v180 = vsel %vm79, %v172, 0
  %182 = vmatprep.subr.bf16.mxu0 0
  %183 = vmatpush1.bf16.msra.mxu0 %v166
  %184 = vmatprep.subr.bf16.mxu0 0
  %185 = vmatpush1.bf16.msra.mxu0 %v167
  %186 = vmatprep.subr.bf16.mxu0 0
  %187 = vmatpush1.bf16.msra.mxu0 %v168
  %188 = vmatprep.subr.bf16.mxu0 0
  %189 = vmatpush1.bf16.msra.mxu0 %v169
  %190 = vmatprep.subr.bf16.mxu0 0
  %191 = vmatpush1.bf16.msra.mxu0 %v170
  %192 = vmatprep.subr.bf16.mxu0 0
  %193 = vmatpush1.bf16.msra.mxu0 %v171
  %194 = vmatprep.subr.bf16.mxu0 0
  %195 = vmatpush1.bf16.msra.mxu0 %v180
  %196 = vmatprep.subr.bf16.mxu0 0
  %197 = vmatpush1.bf16.msra.mxu0 0
  %198 = vmatprep.subr.bf16.mxu0 0
  %199 = vmatpush1.bf16.msra.mxu0 0
  %200 = vmatprep.subr.bf16.mxu0 0
  %201 = vmatpush1.bf16.msra.mxu0 0
  %202 = vmatprep.subr.bf16.mxu0 0
  %203 = vmatpush1.bf16.msra.mxu0 0
  %204 = vmatprep.subr.bf16.mxu0 0
  %205 = vmatpush1.bf16.msra.mxu0 0
  %206 = vmatprep.subr.bf16.mxu0 0
  %207 = vmatpush1.bf16.msra.mxu0 0
  %208 = vmatprep.subr.bf16.mxu0 0
  %209 = vmatpush1.bf16.msra.mxu0 0
  %210 = vmatprep.subr.bf16.mxu0 0
  %211 = vmatpush1.bf16.msra.mxu0 0
  %212 = vmatprep.subr.bf16.mxu0 0
  %213 = vmatpush1.bf16.msra.mxu0 0
  %214 = vmatprep.mubr.bf16.mxu0 0
  %215 = vmatmul.mubr.bf16.gmra.mrb[0].mxu0 %v77
  %v216 = vpop.f32.mrb[0].mxu0
  %v217 = vadd.f32 0.0, %v216
  %v218 = vpop.f32.mrb[0].mxu0
  %v219 = vpop.f32.mrb[0].mxu0
  %v220 = vpop.f32.mrb[0].mxu0
  %221 = vdwg.mxu0
  %v222 = vmax.f32 %v118, %v217
  %s223 = scalar_lea.vmem %s0, 112
  %v224 = vld [vmem:[%s223] sm:$0xf]
  %v225 = vld [vmem:[%s223 + $0x4] sm:$0xf]
  %v226 = vld [vmem:[%s223 + $0x8] sm:$0xf]
  %v227 = vld [vmem:[%s223 + $0xc] sm:$0xf]
  %v228 = vld [vmem:[%s223 + $0x10] sm:$0xf]
  %v229 = vld [vmem:[%s223 + $0x14] sm:$0xf]
  %v230 = vld [vmem:[%s223 + $0x18] sm:$0xf]
  %v231 = vld [vmem:[%s223 + $0x1c] sm:$0xf]
  %v232 = vld [vmem:[%s223 + $0x20] sm:$0xf]
  %v233 = vld [vmem:[%s223 + $0x24] sm:$0xf]
  %v234 = vld [vmem:[%s223 + $0x28] sm:$0xf]
  %v235 = vld [vmem:[%s223 + $0x2c] sm:$0xf]
  %v236 = vld [vmem:[%s223 + $0x30] sm:$0xf]
  %v237 = vld [vmem:[%s223 + $0x34] sm:$0x3]
  %v252 = vunpack.c.l.b16 %v224
  %v253 = vunpack.c.l.b16 %v225
  %v254 = vunpack.c.l.b16 %v226
  %v255 = vunpack.c.l.b16 %v227
  %v256 = vunpack.c.l.b16 %v228
  %v257 = vunpack.c.l.b16 %v229
  %v258 = vunpack.c.l.b16 %v230
  %v259 = vunpack.c.l.b16 %v231
  %v260 = vunpack.c.l.b16 %v232
  %v261 = vunpack.c.l.b16 %v233
  %v262 = vunpack.c.l.b16 %v234
  %v263 = vunpack.c.l.b16 %v235
  %v264 = vunpack.c.l.b16 %v236
  %v265 = vunpack.c.l.b16 %v237
  %v266 = vpack.c.b16 %v253, %v252
  %v267 = vpack.c.b16 %v255, %v254
  %v268 = vpack.c.b16 %v257, %v256
  %v269 = vpack.c.b16 %v259, %v258
  %v270 = vpack.c.b16 %v261, %v260
  %v271 = vpack.c.b16 %v263, %v262
  %v272 = vpack.c.b16 %v265, %v264
  %v280 = vsel %vm79, %v272, 0
  %282 = vmatprep.subr.bf16.mxu0 0
  %283 = vmatpush1.bf16.msra.mxu0 %v266
  %284 = vmatprep.subr.bf16.mxu0 0
  %285 = vmatpush1.bf16.msra.mxu0 %v267
  %286 = vmatprep.subr.bf16.mxu0 0
  %287 = vmatpush1.bf16.msra.mxu0 %v268
  %288 = vmatprep.subr.bf16.mxu0 0
  %289 = vmatpush1.bf16.msra.mxu0 %v269
  %290 = vmatprep.subr.bf16.mxu0 0
  %291 = vmatpush1.bf16.msra.mxu0 %v270
  %292 = vmatprep.subr.bf16.mxu0 0
  %293 = vmatpush1.bf16.msra.mxu0 %v271
  %294 = vmatprep.subr.bf16.mxu0 0
  %295 = vmatpush1.bf16.msra.mxu0 %v280
  %296 = vmatprep.subr.bf16.mxu0 0
  %297 = vmatpush1.bf16.msra.mxu0 0
  %298 = vmatprep.subr.bf16.mxu0 0
  %299 = vmatpush1.bf16.msra.mxu0 0
  %300 = vmatprep.subr.bf16.mxu0 0
  %301 = vmatpush1.bf16.msra.mxu0 0
  %302 = vmatprep.subr.bf16.mxu0 0
  %303 = vmatpush1.bf16.msra.mxu0 0
  %304 = vmatprep.subr.bf16.mxu0 0
  %305 = vmatpush1.bf16.msra.mxu0 0
  %306 = vmatprep.subr.bf16.mxu0 0
  %307 = vmatpush1.bf16.msra.mxu0 0
  %308 = vmatprep.subr.bf16.mxu0 0
  %309 = vmatpush1.bf16.msra.mxu0 0
  %310 = vmatprep.subr.bf16.mxu0 0
  %311 = vmatpush1.bf16.msra.mxu0 0
  %312 = vmatprep.subr.bf16.mxu0 0
  %313 = vmatpush1.bf16.msra.mxu0 0
  %314 = vmatprep.mubr.bf16.mxu0 0
  %315 = vmatmul.mubr.bf16.gmra.mrb[0].mxu0 %v77
  %v316 = vpop.f32.mrb[0].mxu0
  %v317 = vadd.f32 0.0, %v316
  %v318 = vpop.f32.mrb[0].mxu0
  %v319 = vpop.f32.mrb[0].mxu0
  %v320 = vpop.f32.mrb[0].mxu0
  %321 = vdwg.mxu0
  %v322 = vmax.f32 %v222, %v317
  %s323 = scalar_lea.vmem %s0, 168
  %v324 = vld [vmem:[%s323] sm:$0xf]
  %v325 = vld [vmem:[%s323 + $0x4] sm:$0xf]
  %v326 = vld [vmem:[%s323 + $0x8] sm:$0xf]
  %v327 = vld [vmem:[%s323 + $0xc] sm:$0xf]
  %v328 = vld [vmem:[%s323 + $0x10] sm:$0xf]
  %v329 = vld [vmem:[%s323 + $0x14] sm:$0xf]
  %v330 = vld [vmem:[%s323 + $0x18] sm:$0xf]
  %v331 = vld [vmem:[%s323 + $0x1c] sm:$0xf]
  %v332 = vld [vmem:[%s323 + $0x20] sm:$0xf]
  %v333 = vld [vmem:[%s323 + $0x24] sm:$0xf]
  %v334 = vld [vmem:[%s323 + $0x28] sm:$0xf]
  %v335 = vld [vmem:[%s323 + $0x2c] sm:$0xf]
  %v336 = vld [vmem:[%s323 + $0x30] sm:$0xf]
  %v337 = vld [vmem:[%s323 + $0x34] sm:$0x3]
  %v352 = vunpack.c.l.b16 %v324
  %v353 = vunpack.c.l.b16 %v325
  %v354 = vunpack.c.l.b16 %v326
  %v355 = vunpack.c.l.b16 %v327
  %v356 = vunpack.c.l.b16 %v328
  %v357 = vunpack.c.l.b16 %v329
  %v358 = vunpack.c.l.b16 %v330
  %v359 = vunpack.c.l.b16 %v331
  %v360 = vunpack.c.l.b16 %v332
  %v361 = vunpack.c.l.b16 %v333
  %v362 = vunpack.c.l.b16 %v334
  %v363 = vunpack.c.l.b16 %v335
  %v364 = vunpack.c.l.b16 %v336
  %v365 = vunpack.c.l.b16 %v337
  %v366 = vpack.c.b16 %v353, %v352
  %v367 = vpack.c.b16 %v355, %v354
  %v368 = vpack.c.b16 %v357, %v356
  %v369 = vpack.c.b16 %v359, %v358
  %v370 = vpack.c.b16 %v361, %v360
  %v371 = vpack.c.b16 %v363, %v362
  %v372 = vpack.c.b16 %v365, %v364
  %v380 = vsel %vm79, %v372, 0
  %382 = vmatprep.subr.bf16.mxu0 0
  %383 = vmatpush1.bf16.msra.mxu0 %v366
  %384 = vmatprep.subr.bf16.mxu0 0
  %385 = vmatpush1.bf16.msra.mxu0 %v367
  %386 = vmatprep.subr.bf16.mxu0 0
  %387 = vmatpush1.bf16.msra.mxu0 %v368
  %388 = vmatprep.subr.bf16.mxu0 0
  %389 = vmatpush1.bf16.msra.mxu0 %v369
  %390 = vmatprep.subr.bf16.mxu0 0
  %391 = vmatpush1.bf16.msra.mxu0 %v370
  %392 = vmatprep.subr.bf16.mxu0 0
  %393 = vmatpush1.bf16.msra.mxu0 %v371
  %394 = vmatprep.subr.bf16.mxu0 0
  %395 = vmatpush1.bf16.msra.mxu0 %v380
  %396 = vmatprep.subr.bf16.mxu0 0
  %397 = vmatpush1.bf16.msra.mxu0 0
  %398 = vmatprep.subr.bf16.mxu0 0
  %399 = vmatpush1.bf16.msra.mxu0 0
  %400 = vmatprep.subr.bf16.mxu0 0
  %401 = vmatpush1.bf16.msra.mxu0 0
  %402 = vmatprep.subr.bf16.mxu0 0
  %403 = vmatpush1.bf16.msra.mxu0 0
  %404 = vmatprep.subr.bf16.mxu0 0
  %405 = vmatpush1.bf16.msra.mxu0 0
  %406 = vmatprep.subr.bf16.mxu0 0
  %407 = vmatpush1.bf16.msra.mxu0 0
  %408 = vmatprep.subr.bf16.mxu0 0
  %409 = vmatpush1.bf16.msra.mxu0 0
  %410 = vmatprep.subr.bf16.mxu0 0
  %411 = vmatpush1.bf16.msra.mxu0 0
  %412 = vmatprep.subr.bf16.mxu0 0
  %413 = vmatpush1.bf16.msra.mxu0 0
  %414 = vmatprep.mubr.bf16.mxu0 0
  %415 = vmatmul.mubr.bf16.gmra.mrb[0].mxu0 %v77
  %v416 = vpop.f32.mrb[0].mxu0
  %v417 = vadd.f32 0.0, %v416
  %v418 = vpop.f32.mrb[0].mxu0
  %v419 = vpop.f32.mrb[0].mxu0
  %v420 = vpop.f32.mrb[0].mxu0
  %421 = vdwg.mxu0
  %v422 = vmax.f32 %v322, %v417
  %424 = vset.pattern.permute.xlu0 0
  %425 = vperm.xlu0 %424, %v19
  %v426 = vpop.permute.xlu0 %425
  %v428 = vadd.f32 %v422, %v426
  %v429 = vmax.f32 %v428, 0.0
  %v430 = vld [vmem:[%s1] sm:$0xf]
  %v431 = vld [vmem:[%s1 + $0x4] sm:$0xf]
  %v432 = vld [vmem:[%s1 + $0x8] sm:$0xf]
  %v433 = vld [vmem:[%s1 + $0xc] sm:$0xf]
  %v434 = vld [vmem:[%s1 + $0x10] sm:$0xf]
  %v435 = vld [vmem:[%s1 + $0x14] sm:$0xf]
  %v436 = vld [vmem:[%s1 + $0x18] sm:$0xf]
  %v437 = vld [vmem:[%s1 + $0x1c] sm:$0xf]
  %v438 = vld [vmem:[%s1 + $0x20] sm:$0xf]
  %v439 = vld [vmem:[%s1 + $0x24] sm:$0xf]
  %v440 = vld [vmem:[%s1 + $0x28] sm:$0xf]
  %v441 = vld [vmem:[%s1 + $0x2c] sm:$0xf]
  %v442 = vld [vmem:[%s1 + $0x30] sm:$0xf]
  %v443 = vld [vmem:[%s1 + $0x34] sm:$0x3]
  %v458 = vunpack.c.l.b16 %v430
  %v459 = vunpack.c.l.b16 %v431
  %v460 = vunpack.c.l.b16 %v432
  %v461 = vunpack.c.l.b16 %v433
  %v462 = vunpack.c.l.b16 %v434
  %v463 = vunpack.c.l.b16 %v435
  %v464 = vunpack.c.l.b16 %v436
  %v465 = vunpack.c.l.b16 %v437
  %v466 = vunpack.c.l.b16 %v438
  %v467 = vunpack.c.l.b16 %v439
  %v468 = vunpack.c.l.b16 %v440
  %v469 = vunpack.c.l.b16 %v441
  %v470 = vunpack.c.l.b16 %v442
  %v471 = vunpack.c.l.b16 %v443
  %v472 = vpack.c.b16 %v459, %v458
  %v473 = vpack.c.b16 %v461, %v460
  %v474 = vpack.c.b16 %v463, %v462
  %v475 = vpack.c.b16 %v465, %v464
  %v476 = vpack.c.b16 %v467, %v466
  %v477 = vpack.c.b16 %v469, %v468
  %v478 = vpack.c.b16 %v471, %v470
  %v486 = vsel %vm79, %v478, 0
  %488 = vmatprep.subr.bf16.mxu0 0
  %489 = vmatpush1.bf16.msra.mxu0 %v472
  %490 = vmatprep.subr.bf16.mxu0 0
  %491 = vmatpush1.bf16.msra.mxu0 %v473
  %492 = vmatprep.subr.bf16.mxu0 0
  %493 = vmatpush1.bf16.msra.mxu0 %v474
  %494 = vmatprep.subr.bf16.mxu0 0
  %495 = vmatpush1.bf16.msra.mxu0 %v475
  %496 = vmatprep.subr.bf16.mxu0 0
  %497 = vmatpush1.bf16.msra.mxu0 %v476
  %498 = vmatprep.subr.bf16.mxu0 0
  %499 = vmatpush1.bf16.msra.mxu0 %v477
  %500 = vmatprep.subr.bf16.mxu0 0
  %501 = vmatpush1.bf16.msra.mxu0 %v486
  %502 = vmatprep.subr.bf16.mxu0 0
  %503 = vmatpush1.bf16.msra.mxu0 0
  %504 = vmatprep.subr.bf16.mxu0 0
  %505 = vmatpush1.bf16.msra.mxu0 0
  %506 = vmatprep.subr.bf16.mxu0 0
  %507 = vmatpush1.bf16.msra.mxu0 0
  %508 = vmatprep.subr.bf16.mxu0 0
  %509 = vmatpush1.bf16.msra.mxu0 0
  %510 = vmatprep.subr.bf16.mxu0 0
  %511 = vmatpush1.bf16.msra.mxu0 0
  %512 = vmatprep.subr.bf16.mxu0 0
  %513 = vmatpush1.bf16.msra.mxu0 0
  %514 = vmatprep.subr.bf16.mxu0 0
  %515 = vmatpush1.bf16.msra.mxu0 0
  %516 = vmatprep.subr.bf16.mxu0 0
  %517 = vmatpush1.bf16.msra.mxu0 0
  %518 = vmatprep.subr.bf16.mxu0 0
  %519 = vmatpush1.bf16.msra.mxu0 0
  %520 = vmatprep.mubr.bf16.mxu0 0
  %521 = vmatmul.mubr.bf16.gmra.mrb[0].mxu0 %v77
  %v522 = vpop.f32.mrb[0].mxu0
  %v523 = vadd.f32 0.0, %v522
  %v524 = vpop.f32.mrb[0].mxu0
  %v525 = vpop.f32.mrb[0].mxu0
  %v526 = vpop.f32.mrb[0].mxu0
  %527 = vdwg.mxu0
  %s528 = scalar_lea.vmem %s1, 56
  %v529 = vld [vmem:[%s528] sm:$0xf]
  %v530 = vld [vmem:[%s528 + $0x4] sm:$0xf]
  %v531 = vld [vmem:[%s528 + $0x8] sm:$0xf]
  %v532 = vld [vmem:[%s528 + $0xc] sm:$0xf]
  %v533 = vld [vmem:[%s528 + $0x10] sm:$0xf]
  %v534 = vld [vmem:[%s528 + $0x14] sm:$0xf]
  %v535 = vld [vmem:[%s528 + $0x18] sm:$0xf]
  %v536 = vld [vmem:[%s528 + $0x1c] sm:$0xf]
  %v537 = vld [vmem:[%s528 + $0x20] sm:$0xf]
  %v538 = vld [vmem:[%s528 + $0x24] sm:$0xf]
  %v539 = vld [vmem:[%s528 + $0x28] sm:$0xf]
  %v540 = vld [vmem:[%s528 + $0x2c] sm:$0xf]
  %v541 = vld [vmem:[%s528 + $0x30] sm:$0xf]
  %v542 = vld [vmem:[%s528 + $0x34] sm:$0x3]
  %v557 = vunpack.c.l.b16 %v529
  %v558 = vunpack.c.l.b16 %v530
  %v559 = vunpack.c.l.b16 %v531
  %v560 = vunpack.c.l.b16 %v532
  %v561 = vunpack.c.l.b16 %v533
  %v562 = vunpack.c.l.b16 %v534
  %v563 = vunpack.c.l.b16 %v535
  %v564 = vunpack.c.l.b16 %v536
  %v565 = vunpack.c.l.b16 %v537
  %v566 = vunpack.c.l.b16 %v538
  %v567 = vunpack.c.l.b16 %v539
  %v568 = vunpack.c.l.b16 %v540
  %v569 = vunpack.c.l.b16 %v541
  %v570 = vunpack.c.l.b16 %v542
  %v571 = vpack.c.b16 %v558, %v557
  %v572 = vpack.c.b16 %v560, %v559
  %v573 = vpack.c.b16 %v562, %v561
  %v574 = vpack.c.b16 %v564, %v563
  %v575 = vpack.c.b16 %v566, %v565
  %v576 = vpack.c.b16 %v568, %v567
  %v577 = vpack.c.b16 %v570, %v569
  %v585 = vsel %vm79, %v577, 0
  %587 = vmatprep.subr.bf16.mxu0 0
  %588 = vmatpush1.bf16.msra.mxu0 %v571
  %589 = vmatprep.subr.bf16.mxu0 0
  %590 = vmatpush1.bf16.msra.mxu0 %v572
  %591 = vmatprep.subr.bf16.mxu0 0
  %592 = vmatpush1.bf16.msra.mxu0 %v573
  %593 = vmatprep.subr.bf16.mxu0 0
  %594 = vmatpush1.bf16.msra.mxu0 %v574
  %595 = vmatprep.subr.bf16.mxu0 0
  %596 = vmatpush1.bf16.msra.mxu0 %v575
  %597 = vmatprep.subr.bf16.mxu0 0
  %598 = vmatpush1.bf16.msra.mxu0 %v576
  %599 = vmatprep.subr.bf16.mxu0 0
  %600 = vmatpush1.bf16.msra.mxu0 %v585
  %601 = vmatprep.subr.bf16.mxu0 0
  %602 = vmatpush1.bf16.msra.mxu0 0
  %603 = vmatprep.subr.bf16.mxu0 0
  %604 = vmatpush1.bf16.msra.mxu0 0
  %605 = vmatprep.subr.bf16.mxu0 0
  %606 = vmatpush1.bf16.msra.mxu0 0
  %607 = vmatprep.subr.bf16.mxu0 0
  %608 = vmatpush1.bf16.msra.mxu0 0
  %609 = vmatprep.subr.bf16.mxu0 0
  %610 = vmatpush1.bf16.msra.mxu0 0
  %611 = vmatprep.subr.bf16.mxu0 0
  %612 = vmatpush1.bf16.msra.mxu0 0
  %613 = vmatprep.subr.bf16.mxu0 0
  %614 = vmatpush1.bf16.msra.mxu0 0
  %615 = vmatprep.subr.bf16.mxu0 0
  %616 = vmatpush1.bf16.msra.mxu0 0
  %617 = vmatprep.subr.bf16.mxu0 0
  %618 = vmatpush1.bf16.msra.mxu0 0
  %619 = vmatprep.mubr.bf16.mxu0 0
  %620 = vmatmul.mubr.bf16.gmra.mrb[0].mxu0 %v77
  %v621 = vpop.f32.mrb[0].mxu0
  %v622 = vadd.f32 0.0, %v621
  %v623 = vpop.f32.mrb[0].mxu0
  %v624 = vpop.f32.mrb[0].mxu0
  %v625 = vpop.f32.mrb[0].mxu0
  %626 = vdwg.mxu0
  %v627 = vmax.f32 %v523, %v622
  %s628 = scalar_lea.vmem %s1, 112
  %v629 = vld [vmem:[%s628] sm:$0xf]
  %v630 = vld [vmem:[%s628 + $0x4] sm:$0xf]
  %v631 = vld [vmem:[%s628 + $0x8] sm:$0xf]
  %v632 = vld [vmem:[%s628 + $0xc] sm:$0xf]
  %v633 = vld [vmem:[%s628 + $0x10] sm:$0xf]
  %v634 = vld [vmem:[%s628 + $0x14] sm:$0xf]
  %v635 = vld [vmem:[%s628 + $0x18] sm:$0xf]
  %v636 = vld [vmem:[%s628 + $0x1c] sm:$0xf]
  %v637 = vld [vmem:[%s628 + $0x20] sm:$0xf]
  %v638 = vld [vmem:[%s628 + $0x24] sm:$0xf]
  %v639 = vld [vmem:[%s628 + $0x28] sm:$0xf]
  %v640 = vld [vmem:[%s628 + $0x2c] sm:$0xf]
  %v641 = vld [vmem:[%s628 + $0x30] sm:$0xf]
  %v642 = vld [vmem:[%s628 + $0x34] sm:$0x3]
  %v657 = vunpack.c.l.b16 %v629
  %v658 = vunpack.c.l.b16 %v630
  %v659 = vunpack.c.l.b16 %v631
  %v660 = vunpack.c.l.b16 %v632
  %v661 = vunpack.c.l.b16 %v633
  %v662 = vunpack.c.l.b16 %v634
  %v663 = vunpack.c.l.b16 %v635
  %v664 = vunpack.c.l.b16 %v636
  %v665 = vunpack.c.l.b16 %v637
  %v666 = vunpack.c.l.b16 %v638
  %v667 = vunpack.c.l.b16 %v639
  %v668 = vunpack.c.l.b16 %v640
  %v669 = vunpack.c.l.b16 %v641
  %v670 = vunpack.c.l.b16 %v642
  %v671 = vpack.c.b16 %v658, %v657
  %v672 = vpack.c.b16 %v660, %v659
  %v673 = vpack.c.b16 %v662, %v661
  %v674 = vpack.c.b16 %v664, %v663
  %v675 = vpack.c.b16 %v666, %v665
  %v676 = vpack.c.b16 %v668, %v667
  %v677 = vpack.c.b16 %v670, %v669
  %v685 = vsel %vm79, %v677, 0
  %687 = vmatprep.subr.bf16.mxu0 0
  %688 = vmatpush1.bf16.msra.mxu0 %v671
  %689 = vmatprep.subr.bf16.mxu0 0
  %690 = vmatpush1.bf16.msra.mxu0 %v672
  %691 = vmatprep.subr.bf16.mxu0 0
  %692 = vmatpush1.bf16.msra.mxu0 %v673
  %693 = vmatprep.subr.bf16.mxu0 0
  %694 = vmatpush1.bf16.msra.mxu0 %v674
  %695 = vmatprep.subr.bf16.mxu0 0
  %696 = vmatpush1.bf16.msra.mxu0 %v675
  %697 = vmatprep.subr.bf16.mxu0 0
  %698 = vmatpush1.bf16.msra.mxu0 %v676
  %699 = vmatprep.subr.bf16.mxu0 0
  %700 = vmatpush1.bf16.msra.mxu0 %v685
  %701 = vmatprep.subr.bf16.mxu0 0
  %702 = vmatpush1.bf16.msra.mxu0 0
  %703 = vmatprep.subr.bf16.mxu0 0
  %704 = vmatpush1.bf16.msra.mxu0 0
  %705 = vmatprep.subr.bf16.mxu0 0
  %706 = vmatpush1.bf16.msra.mxu0 0
  %707 = vmatprep.subr.bf16.mxu0 0
  %708 = vmatpush1.bf16.msra.mxu0 0
  %709 = vmatprep.subr.bf16.mxu0 0
  %710 = vmatpush1.bf16.msra.mxu0 0
  %711 = vmatprep.subr.bf16.mxu0 0
  %712 = vmatpush1.bf16.msra.mxu0 0
  %713 = vmatprep.subr.bf16.mxu0 0
  %714 = vmatpush1.bf16.msra.mxu0 0
  %715 = vmatprep.subr.bf16.mxu0 0
  %716 = vmatpush1.bf16.msra.mxu0 0
  %717 = vmatprep.subr.bf16.mxu0 0
  %718 = vmatpush1.bf16.msra.mxu0 0
  %719 = vmatprep.mubr.bf16.mxu0 0
  %720 = vmatmul.mubr.bf16.gmra.mrb[0].mxu0 %v77
  %v721 = vpop.f32.mrb[0].mxu0
  %v722 = vadd.f32 0.0, %v721
  %v723 = vpop.f32.mrb[0].mxu0
  %v724 = vpop.f32.mrb[0].mxu0
  %v725 = vpop.f32.mrb[0].mxu0
  %726 = vdwg.mxu0
  %v727 = vmax.f32 %v627, %v722
  %s728 = scalar_lea.vmem %s1, 168
  %v729 = vld [vmem:[%s728] sm:$0xf]
  %v730 = vld [vmem:[%s728 + $0x4] sm:$0xf]
  %v731 = vld [vmem:[%s728 + $0x8] sm:$0xf]
  %v732 = vld [vmem:[%s728 + $0xc] sm:$0xf]
  %v733 = vld [vmem:[%s728 + $0x10] sm:$0xf]
  %v734 = vld [vmem:[%s728 + $0x14] sm:$0xf]
  %v735 = vld [vmem:[%s728 + $0x18] sm:$0xf]
  %v736 = vld [vmem:[%s728 + $0x1c] sm:$0xf]
  %v737 = vld [vmem:[%s728 + $0x20] sm:$0xf]
  %v738 = vld [vmem:[%s728 + $0x24] sm:$0xf]
  %v739 = vld [vmem:[%s728 + $0x28] sm:$0xf]
  %v740 = vld [vmem:[%s728 + $0x2c] sm:$0xf]
  %v741 = vld [vmem:[%s728 + $0x30] sm:$0xf]
  %v742 = vld [vmem:[%s728 + $0x34] sm:$0x3]
  %v757 = vunpack.c.l.b16 %v729
  %v758 = vunpack.c.l.b16 %v730
  %v759 = vunpack.c.l.b16 %v731
  %v760 = vunpack.c.l.b16 %v732
  %v761 = vunpack.c.l.b16 %v733
  %v762 = vunpack.c.l.b16 %v734
  %v763 = vunpack.c.l.b16 %v735
  %v764 = vunpack.c.l.b16 %v736
  %v765 = vunpack.c.l.b16 %v737
  %v766 = vunpack.c.l.b16 %v738
  %v767 = vunpack.c.l.b16 %v739
  %v768 = vunpack.c.l.b16 %v740
  %v769 = vunpack.c.l.b16 %v741
  %v770 = vunpack.c.l.b16 %v742
  %v771 = vpack.c.b16 %v758, %v757
  %v772 = vpack.c.b16 %v760, %v759
  %v773 = vpack.c.b16 %v762, %v761
  %v774 = vpack.c.b16 %v764, %v763
  %v775 = vpack.c.b16 %v766, %v765
  %v776 = vpack.c.b16 %v768, %v767
  %v777 = vpack.c.b16 %v770, %v769
  %v785 = vsel %vm79, %v777, 0
  %787 = vmatprep.subr.bf16.mxu0 0
  %788 = vmatpush1.bf16.msra.mxu0 %v771
  %789 = vmatprep.subr.bf16.mxu0 0
  %790 = vmatpush1.bf16.msra.mxu0 %v772
  %791 = vmatprep.subr.bf16.mxu0 0
  %792 = vmatpush1.bf16.msra.mxu0 %v773
  %793 = vmatprep.subr.bf16.mxu0 0
  %794 = vmatpush1.bf16.msra.mxu0 %v774
  %795 = vmatprep.subr.bf16.mxu0 0
  %796 = vmatpush1.bf16.msra.mxu0 %v775
  %797 = vmatprep.subr.bf16.mxu0 0
  %798 = vmatpush1.bf16.msra.mxu0 %v776
  %799 = vmatprep.subr.bf16.mxu0 0
  %800 = vmatpush1.bf16.msra.mxu0 %v785
  %801 = vmatprep.subr.bf16.mxu0 0
  %802 = vmatpush1.bf16.msra.mxu0 0
  %803 = vmatprep.subr.bf16.mxu0 0
  %804 = vmatpush1.bf16.msra.mxu0 0
  %805 = vmatprep.subr.bf16.mxu0 0
  %806 = vmatpush1.bf16.msra.mxu0 0
  %807 = vmatprep.subr.bf16.mxu0 0
  %808 = vmatpush1.bf16.msra.mxu0 0
  %809 = vmatprep.subr.bf16.mxu0 0
  %810 = vmatpush1.bf16.msra.mxu0 0
  %811 = vmatprep.subr.bf16.mxu0 0
  %812 = vmatpush1.bf16.msra.mxu0 0
  %813 = vmatprep.subr.bf16.mxu0 0
  %814 = vmatpush1.bf16.msra.mxu0 0
  %815 = vmatprep.subr.bf16.mxu0 0
  %816 = vmatpush1.bf16.msra.mxu0 0
  %817 = vmatprep.subr.bf16.mxu0 0
  %818 = vmatpush1.bf16.msra.mxu0 0
  %819 = vmatprep.mubr.bf16.mxu0 0
  %820 = vmatmul.mubr.bf16.gmra.mrb[0].mxu0 %v77
  %v821 = vpop.f32.mrb[0].mxu0
  %v822 = vadd.f32 0.0, %v821
  %v823 = vpop.f32.mrb[0].mxu0
  %v824 = vpop.f32.mrb[0].mxu0
  %v825 = vpop.f32.mrb[0].mxu0
  %826 = vdwg.mxu0
  %v827 = vmax.f32 %v727, %v822
  %v828 = vadd.f32 %v827, %v426
  %v829 = vmax.f32 %v828, 0.0
  %v830 = vadd.f32 %v429, %v829
  %v831 = vxor.u32 %v830, 2147483648
  %v832 = vmul.f32 %v831, 1.442695
  %v833 = vpow.pop %v832
  %v834 = vadd.f32 %v833, 1.0
  %v835 = vrcp.pop %v834
  %v836 = vmul.f32 1.0, %v835
  %837 = vst [vmem:[%s4] sm:$0x3f] %v836
  // Predicated region
  $region18: #{coon_forward.7} parent=0 // pred_check
    _
  $region19: #{coon_forward.7} parent=0 // pred_check_branch
    %839 = sbr.rel (0) target = $region21
  $region20: #{coon_forward.7} parent=0 // pred_region
    _
  $region21: #{coon_forward.7} parent=0 // pred_fallthru
    _
  // Predicated region
  $region22: #{coon_forward.7} parent=0 // pred_check
    _
  $region23: #{coon_forward.7} parent=0 // pred_check_branch
    %841 = sbr.rel (0) target = $region25
  $region24: #{coon_forward.7} parent=0 // pred_region
    _
  $region25: #{coon_forward.7} parent=0 // pred_fallthru
    _

</llo_original>
